<compile_context>
chip_gen: v6e
topology: v6e:2x2x1
jax: 0.10.0
libtpu: 0.0.40
codegen_flags: <defaults>
</compile_context>

<pallas_src>
import jax
import jax.numpy as jnp
from jax import lax
from jax.experimental import pallas as pl
from jax.experimental.pallas import tpu as pltpu

H = 128          # padded hidden width (true hidden = 32), lane-aligned
KIN = 8          # padded input-feature width (true = 3), sublane-aligned
CHUNK = 256      # batch rows per inner-loop chunk (32 vregs per (H, CHUNK) f32 stage)
TB_MAX = 4096    # batch rows per grid step (lane axis of the transposed blocks)


def _round_up(n, m):
    return (n + m - 1) // m * m


def _cdiv(a, b):
    return -(-a // b)


def _mlp_kernel(x_ref, w1_ref, b1_ref, w2_ref, b2_ref, w3_ref, b3_ref, out_ref):
    """One batch tile (transposed layout): Linear->ReLU->Linear->ReLU->Linear->Sigmoid.

    Shapes (f32):
      x_ref  : (KIN, tb)   padded/transposed inputs, lane axis = batch
      w1_ref : (H, KIN)    W1^T  (zero-padded)
      b1_ref : (H, 1)
      w2_ref : (H, H)      W2^T  (zero-padded)
      b2_ref : (H, 1)
      w3_ref : (KIN, H)    W3^T in row 0, rows 1..7 zero (sublane-padded)
      b3_ref : (1, 1)
      out_ref: (1, tb)     lane-dense outputs
    """
    tb = x_ref.shape[1]
    n_chunks = tb // CHUNK  # static

    hi = lax.Precision.HIGHEST

    def chunk_body(c, carry):
        start = pl.multiple_of(c * CHUNK, CHUNK)
        xc = x_ref[:, pl.ds(start, CHUNK)]                                   # (KIN, C)

        # Layer 1 (3 -> H) on the MXU (K padded to 8 with zero rows -> exact).
        h = jnp.dot(w1_ref[...], xc, preferred_element_type=jnp.float32,
                    precision=hi) + b1_ref[...]                              # (H, C)
        h = jnp.maximum(h, 0.0)

        # Layer 2 (H -> H) on the MXU (zero pads beyond the true 32x32 keep this exact).
        h = jnp.dot(w2_ref[...], h, preferred_element_type=jnp.float32,
                    precision=hi) + b2_ref[...]                              # (H, C)
        h = jnp.maximum(h, 0.0)

        # Output layer (H -> 1) on the MXU; only row 0 of w3 is non-zero, so the
        # result row 0 is the real output and is already lane-dense.
        o = jnp.dot(w3_ref[...], h, preferred_element_type=jnp.float32,
                    precision=hi)                                            # (KIN, C)
        o = o[0:1, :] + b3_ref[...]                                          # (1, C)
        out_ref[:, pl.ds(start, CHUNK)] = jax.nn.sigmoid(o).astype(out_ref.dtype)
        return carry

    lax.fori_loop(0, n_chunks, chunk_body, 0, unroll=True)


def prepare_params(params):
    """Transpose + zero-pad the (W, b) pairs ONCE (outside the per-call forward)."""
    (w1, b1), (w2, b2), (w3, b3) = params
    w1t = jnp.zeros((H, KIN), jnp.float32).at[: w1.shape[1], : w1.shape[0]].set(w1.T)
    b1c = jnp.zeros((H, 1), jnp.float32).at[: b1.shape[0], 0].set(b1)
    w2t = jnp.zeros((H, H), jnp.float32).at[: w2.shape[1], : w2.shape[0]].set(w2.T)
    b2c = jnp.zeros((H, 1), jnp.float32).at[: b2.shape[0], 0].set(b2)
    w3t = jnp.zeros((KIN, H), jnp.float32).at[0, : w3.shape[0]].set(w3[:, 0])
    b3c = jnp.reshape(b3.astype(jnp.float32), (1, 1))
    return (w1t, b1c, w2t, b2c, w3t, b3c)


def _choose_tiling(batch):
    pb = _round_up(batch, CHUNK)
    if pb <= CHUNK:
        tb = CHUNK
    else:
        # At least 2 grid tiles when the batch allows it, so both v7x TCs get work.
        tb = min(TB_MAX, _round_up(_cdiv(pb, 2), CHUNK))
    padded_batch = _round_up(pb, tb)
    return tb, padded_batch


@jax.jit
def net_forward(x, padded_params):
    """x: (batch, 3) float32. padded_params: output of prepare_params. Returns (batch, 1)."""
    w1t, b1c, w2t, b2c, w3t, b3c = padded_params
    batch, feat = x.shape
    tb, padded_batch = _choose_tiling(batch)
    grid = (padded_batch // tb,)

    # Present x lane-dense: pad features 3 -> 8, rows -> padded_batch, transpose to (8, B).
    xt = jnp.pad(x.astype(jnp.float32).T,
                 ((0, KIN - feat), (0, padded_batch - batch)))

    resident = lambda shape: pl.BlockSpec(shape, lambda i: (0, 0))

    out = pl.pallas_call(
        _mlp_kernel,
        out_shape=jax.ShapeDtypeStruct((1, padded_batch), jnp.float32),
        grid=grid,
        in_specs=[
            pl.BlockSpec((KIN, tb), lambda i: (0, i)),  # x^T: tiled over batch (lane axis)
            resident((H, KIN)),                         # W1^T (padded)
            resident((H, 1)),                           # b1
            resident((H, H)),                           # W2^T (padded)
            resident((H, 1)),                           # b2
            resident((KIN, H)),                         # W3^T (padded to 8 rows)
            resident((1, 1)),                           # b3
        ],
        out_specs=pl.BlockSpec((1, tb), lambda i: (0, i)),  # lane-dense output row
        compiler_params=pltpu.CompilerParams(
            dimension_semantics=("parallel",),          # shard batch tiles across TCs
            vmem_limit_bytes=32 * 1024 * 1024,          # safe on v5e/v6e/v7x; we use ~1 MB
        ),
    )(xt, w1t, b1c, w2t, b2c, w3t, b3c)

    return out[0, :batch][:, None]


def _reference(x, params):
    h = x
    for (w, b) in params[:-1]:
        h = jax.nn.relu(jnp.dot(h, w, precision=lax.Precision.HIGHEST) + b)
    w, b = params[-1]
    return jax.nn.sigmoid(jnp.dot(h, w, precision=lax.Precision.HIGHEST) + b)


def _init_params(key):
    """Deterministic PyTorch-style (uniform +/- 1/sqrt(fan_in)) init."""
    sizes = [(3, 32), (32, 32), (32, 1)]
    params = []
    for (fan_in, fan_out) in sizes:
        key, kw, kb = jax.random.split(key, 3)
        bound = 1.0 / jnp.sqrt(fan_in)
        w = jax.random.uniform(kw, (fan_in, fan_out), jnp.float32, -bound, bound)
        b = jax.random.uniform(kb, (fan_out,), jnp.float32, -bound, bound)
        params.append((w, b))
    return params


if __name__ == "__main__":
    key = jax.random.PRNGKey(0)
    key, kx, kx2 = jax.random.split(key, 3)

    params = _init_params(key)
    padded_params = prepare_params(params)   # one-time padding/transposition

    # Small example (single tile, single chunk).
    batch = 8
    x = jax.random.normal(kx, (batch, 3), dtype=jnp.float32)
    y = net_forward(x, padded_params)
    jax.block_until_ready(y)
    y_ref = _reference(x, params)
    assert y.shape == (batch, 1)
    assert jnp.allclose(y, y_ref, atol=1e-5, rtol=1e-5), "mismatch vs reference (small)"

    # Mid-size example exercising the multi-tile grid, multi-chunk inner loop and padding.
    batch2 = 777
    x2 = jax.random.normal(kx2, (batch2, 3), dtype=jnp.float32)
    y2 = net_forward(x2, padded_params)
    jax.block_until_ready(y2)
    y2_ref = _reference(x2, params)
    assert y2.shape == (batch2, 1)
    assert jnp.allclose(y2, y2_ref, atol=1e-5, rtol=1e-5), "mismatch vs reference (mid)"

    print("KERNEL_OK")
</pallas_src>

<mosaic_0001>
module attributes {stable_mosaic.version = 11 : i64} {
  func.func @_mlp_kernel(%arg0: i32, %arg1: memref<8x256xf32, #tpu.memory_space<vmem>>, %arg2: memref<128x8xf32, #tpu.memory_space<vmem>>, %arg3: memref<128x1xf32, #tpu.memory_space<vmem>>, %arg4: memref<128x128xf32, #tpu.memory_space<vmem>>, %arg5: memref<128x1xf32, #tpu.memory_space<vmem>>, %arg6: memref<8x128xf32, #tpu.memory_space<vmem>>, %arg7: memref<1x1xf32, #tpu.memory_space<vmem>>, %arg8: memref<1x256xf32, #tpu.memory_space<vmem>>) attributes {dimension_semantics = [#tpu.dimension_semantics<parallel>], iteration_bounds = array<i64: 1>, scalar_prefetch = 0 : i64, scratch_operands = 0 : i64, tpu.core_type = #tpu.core_type<tc>, window_params = [{transform_indices = @transform_0, window_bounds = array<i64: 8, 256>}, {pipeline_mode = #tpu.pipeline_mode<synchronous>, transform_indices = @transform_1, window_bounds = array<i64: 128, 8>}, {pipeline_mode = #tpu.pipeline_mode<synchronous>, transform_indices = @transform_2, window_bounds = array<i64: 128, 1>}, {pipeline_mode = #tpu.pipeline_mode<synchronous>, transform_indices = @transform_3, window_bounds = array<i64: 128, 128>}, {pipeline_mode = #tpu.pipeline_mode<synchronous>, transform_indices = @transform_4, window_bounds = array<i64: 128, 1>}, {pipeline_mode = #tpu.pipeline_mode<synchronous>, transform_indices = @transform_5, window_bounds = array<i64: 8, 128>}, {pipeline_mode = #tpu.pipeline_mode<synchronous>, transform_indices = @transform_6, window_bounds = array<i64: 1, 1>}, {transform_indices = @transform_7, window_bounds = array<i64: 1, 256>}]} {
    %c0_i32 = arith.constant 0 : i32
    %c256_i32 = arith.constant 256 : i32
    %0 = arith.muli %c0_i32, %c256_i32 : i32
    %1 = tpu.assume_multiple %0, 256 : i32
    %c0 = arith.constant 0 : index
    %2 = arith.index_cast %1 : i32 to index
    %3 = vector.load %arg1[%c0, %2] : memref<8x256xf32, #tpu.memory_space<vmem>>, vector<8x256xf32>
    %c0_0 = arith.constant 0 : index
    %c0_1 = arith.constant 0 : index
    %4 = vector.load %arg2[%c0_0, %c0_1] : memref<128x8xf32, #tpu.memory_space<vmem>>, vector<128x8xf32>
    %cst = arith.constant dense<0.000000e+00> : vector<128x256xf32>
    %5 = tpu.matmul %4, %3, %cst {dimension_numbers = #tpu.dot_dimension_numbers<[1], [0], [0], [1], [0, 0, 1, 1], [], []>, precision = #tpu.contract_precision<fp32>} : vector<128x8xf32>, vector<8x256xf32>, vector<128x256xf32> -> vector<128x256xf32>
    %c0_2 = arith.constant 0 : index
    %c0_3 = arith.constant 0 : index
    %6 = vector.load %arg3[%c0_2, %c0_3] : memref<128x1xf32, #tpu.memory_space<vmem>>, vector<128x1xf32>
    %7 = vector.broadcast %6 : vector<128x1xf32> to vector<128x256xf32>
    %8 = arith.addf %5, %7 : vector<128x256xf32>
    %cst_4 = arith.constant 0.000000e+00 : f32
    %9 = vector.broadcast %cst_4 : f32 to vector<128x256xf32>
    %10 = arith.maximumf %8, %9 : vector<128x256xf32>
    %c0_5 = arith.constant 0 : index
    %c0_6 = arith.constant 0 : index
    %11 = vector.load %arg4[%c0_5, %c0_6] : memref<128x128xf32, #tpu.memory_space<vmem>>, vector<128x128xf32>
    %cst_7 = arith.constant dense<0.000000e+00> : vector<128x256xf32>
    %12 = tpu.matmul %11, %10, %cst_7 {dimension_numbers = #tpu.dot_dimension_numbers<[1], [0], [0], [1], [0, 0, 1, 1], [], []>, precision = #tpu.contract_precision<fp32>} : vector<128x128xf32>, vector<128x256xf32>, vector<128x256xf32> -> vector<128x256xf32>
    %c0_8 = arith.constant 0 : index
    %c0_9 = arith.constant 0 : index
    %13 = vector.load %arg5[%c0_8, %c0_9] : memref<128x1xf32, #tpu.memory_space<vmem>>, vector<128x1xf32>
    %14 = vector.broadcast %13 : vector<128x1xf32> to vector<128x256xf32>
    %15 = arith.addf %12, %14 : vector<128x256xf32>
    %cst_10 = arith.constant 0.000000e+00 : f32
    %16 = vector.broadcast %cst_10 : f32 to vector<128x256xf32>
    %17 = arith.maximumf %15, %16 : vector<128x256xf32>
    %c0_11 = arith.constant 0 : index
    %c0_12 = arith.constant 0 : index
    %18 = vector.load %arg6[%c0_11, %c0_12] : memref<8x128xf32, #tpu.memory_space<vmem>>, vector<8x128xf32>
    %cst_13 = arith.constant dense<0.000000e+00> : vector<8x256xf32>
    %19 = tpu.matmul %18, %17, %cst_13 {dimension_numbers = #tpu.dot_dimension_numbers<[1], [0], [0], [1], [0, 0, 1, 1], [], []>, precision = #tpu.contract_precision<fp32>} : vector<8x128xf32>, vector<128x256xf32>, vector<8x256xf32> -> vector<8x256xf32>
    %20 = vector.extract_strided_slice %19 {offsets = [0, 0], sizes = [1, 256], strides = [1, 1]} : vector<8x256xf32> to vector<1x256xf32>
    %c0_14 = arith.constant 0 : index
    %c0_15 = arith.constant 0 : index
    %21 = vector.load %arg7[%c0_14, %c0_15] : memref<1x1xf32, #tpu.memory_space<vmem>>, vector<1x1xf32>
    %22 = vector.broadcast %21 : vector<1x1xf32> to vector<1x256xf32>
    %23 = arith.addf %20, %22 : vector<1x256xf32>
    %24 = arith.negf %23 : vector<1x256xf32>
    %25 = math.exp %24 : vector<1x256xf32>
    %cst_16 = arith.constant 1.000000e+00 : f32
    %26 = vector.broadcast %cst_16 : f32 to vector<1x256xf32>
    %27 = arith.addf %26, %25 : vector<1x256xf32>
    %28 = arith.divf %26, %27 : vector<1x256xf32>
    %c0_17 = arith.constant 0 : index
    %29 = arith.index_cast %1 : i32 to index
    %30 = vector.load %arg8[%c0_17, %29] : memref<1x256xf32, #tpu.memory_space<vmem>>, vector<1x256xf32>
    tpu.vector_store %arg8[%c0_17, %29], %28 {strides = array<i32>} : memref<1x256xf32, #tpu.memory_space<vmem>>, vector<1x256xf32>,
    %c1_i32 = arith.constant 1 : i32
    return
  }
  func.func @transform_0(%arg0: i32) -> (i32, i32) {
    %c0_i32 = arith.constant 0 : i32
    %c0_i32_0 = arith.constant 0 : i32
    return %c0_i32, %arg0 : i32, i32
  }
  func.func @transform_1(%arg0: i32) -> (i32, i32) {
    %c0_i32 = arith.constant 0 : i32
    %c0_i32_0 = arith.constant 0 : i32
    %c0_i32_1 = arith.constant 0 : i32
    return %c0_i32, %c0_i32_0 : i32, i32
  }
  func.func @transform_2(%arg0: i32) -> (i32, i32) {
    %c0_i32 = arith.constant 0 : i32
    %c0_i32_0 = arith.constant 0 : i32
    %c0_i32_1 = arith.constant 0 : i32
    return %c0_i32, %c0_i32_0 : i32, i32
  }
  func.func @transform_3(%arg0: i32) -> (i32, i32) {
    %c0_i32 = arith.constant 0 : i32
    %c0_i32_0 = arith.constant 0 : i32
    %c0_i32_1 = arith.constant 0 : i32
    return %c0_i32, %c0_i32_0 : i32, i32
  }
  func.func @transform_4(%arg0: i32) -> (i32, i32) {
    %c0_i32 = arith.constant 0 : i32
    %c0_i32_0 = arith.constant 0 : i32
    %c0_i32_1 = arith.constant 0 : i32
    return %c0_i32, %c0_i32_0 : i32, i32
  }
  func.func @transform_5(%arg0: i32) -> (i32, i32) {
    %c0_i32 = arith.constant 0 : i32
    %c0_i32_0 = arith.constant 0 : i32
    %c0_i32_1 = arith.constant 0 : i32
    return %c0_i32, %c0_i32_0 : i32, i32
  }
  func.func @transform_6(%arg0: i32) -> (i32, i32) {
    %c0_i32 = arith.constant 0 : i32
    %c0_i32_0 = arith.constant 0 : i32
    %c0_i32_1 = arith.constant 0 : i32
    return %c0_i32, %c0_i32_0 : i32, i32
  }
  func.func @transform_7(%arg0: i32) -> (i32, i32) {
    %c0_i32 = arith.constant 0 : i32
    %c0_i32_0 = arith.constant 0 : i32
    return %c0_i32, %arg0 : i32, i32
  }
}

</mosaic_0001>

<llo_original>
// kernel: net_forward.1
$region0: #{net_forward.1}
  #allocation0 [shape = 'u32[]', space=smem, size = 0x4, offset = 0x4, fixed_abs, tag = 'smem constant byte address 0x4 - core index']
  #allocation1 [shape = 'u32[144,128]{1,0:T(1,128)}', space=vmem, size = 0x12000, scoped, tag = 'internal scratch']
  #allocation2 [shape = 'f32[1,1]{1,0:T(1,128)S(1)}', space=vmem, size = 0x200, scoped, tag = 'scoped memory for net_forward.1']
  %s0 = inlined_call_operand.vmem [shape: f32[8,256], index: 0, kind: input, shape index: {}]
  %s1 = inlined_call_operand.vmem [shape: f32[128,8], index: 1, kind: input, shape index: {}]
  %s2 = inlined_call_operand.vmem [shape: f32[128,1], index: 2, kind: input, shape index: {}]
  %s3 = inlined_call_operand.vmem [shape: f32[128,128], index: 3, kind: input, shape index: {}]
  %s4 = inlined_call_operand.vmem [shape: f32[128,1], index: 4, kind: input, shape index: {}]
  %s5 = inlined_call_operand.vmem [shape: f32[8,128], index: 5, kind: input, shape index: {}]
  %s6 = inlined_call_operand.<no memory space> [shape: f32[1,1], index: 6, kind: input, shape index: {}]
  %s7 = inlined_call_operand.vmem [shape: f32[1,256], index: 7, kind: output, shape index: {}]
  %s8 = sld [smem:[#allocation0]]
  $region38: #{net_forward.1} parent=0
    _
  %s10 = ssub.s32 1, %s8
  %s11 = scalar_select 0, %s10, %s8
  %v12 = vstv %s6
  %13 = vst [vmem:[#allocation2] sm:$0x1] %v12
  // Predicated region
  $region2: #{net_forward.1} parent=0 // pred_check
    _
  $region3: #{net_forward.1} parent=0 // pred_check_branch
    %15 = sbr.rel (0) target = $region5
  $region4: #{net_forward.1} parent=0 // pred_region
    _
  $region5: #{net_forward.1} parent=0 // pred_fallthru
    _
  // Predicated region
  $region6: #{net_forward.1} parent=0 // pred_check
    _
  $region7: #{net_forward.1} parent=0 // pred_check_branch
    %17 = sbr.rel (0) target = $region9
  $region8: #{net_forward.1} parent=0 // pred_region
    _
  $region9: #{net_forward.1} parent=0 // pred_fallthru
    _
  // Predicated region
  $region10: #{net_forward.1} parent=0 // pred_check
    _
  $region11: #{net_forward.1} parent=0 // pred_check_branch
    %19 = sbr.rel (0) target = $region13
  $region12: #{net_forward.1} parent=0 // pred_region
    _
  $region13: #{net_forward.1} parent=0 // pred_fallthru
    _
  // Predicated region
  $region14: #{net_forward.1} parent=0 // pred_check
    _
  $region15: #{net_forward.1} parent=0 // pred_check_branch
    %21 = sbr.rel (0) target = $region17
  $region16: #{net_forward.1} parent=0 // pred_region
    _
  $region17: #{net_forward.1} parent=0 // pred_fallthru
    _
  // Predicated region
  $region18: #{net_forward.1} parent=0 // pred_check
    _
  $region19: #{net_forward.1} parent=0 // pred_check_branch
    %23 = sbr.rel (0) target = $region21
  $region20: #{net_forward.1} parent=0 // pred_region
    _
  $region21: #{net_forward.1} parent=0 // pred_fallthru
    _
  // Predicated region
  $region22: #{net_forward.1} parent=0 // pred_check
    _
  $region23: #{net_forward.1} parent=0 // pred_check_branch
    %25 = sbr.rel (0) target = $region25
  $region24: #{net_forward.1} parent=0 // pred_region
    _
  $region25: #{net_forward.1} parent=0 // pred_fallthru
    _
  // Predicated region
  $region26: #{net_forward.1} parent=0 // pred_check
    _
  $region27: #{net_forward.1} parent=0 // pred_check_branch
    %27 = sbr.rel (0) target = $region29
  $region28: #{net_forward.1} parent=0 // pred_region
    _
  $region29: #{net_forward.1} parent=0 // pred_fallthru
    _
  %v28 = vld [vmem:[%s0] sm:$0xff]
  %v29 = vld [vmem:[%s0 + $0x8] sm:$0xff]
  %v30 = vld [vmem:[%s1] sm:$0xff]
  %v31 = vld [vmem:[%s1 + $0x8] sm:$0xff]
  %v32 = vld [vmem:[%s1 + $0x10] sm:$0xff]
  %v33 = vld [vmem:[%s1 + $0x18] sm:$0xff]
  %v34 = vld [vmem:[%s1 + $0x20] sm:$0xff]
  %v35 = vld [vmem:[%s1 + $0x28] sm:$0xff]
  %v36 = vld [vmem:[%s1 + $0x30] sm:$0xff]
  %v37 = vld [vmem:[%s1 + $0x38] sm:$0xff]
  %v38 = vld [vmem:[%s1 + $0x40] sm:$0xff]
  %v39 = vld [vmem:[%s1 + $0x48] sm:$0xff]
  %v40 = vld [vmem:[%s1 + $0x50] sm:$0xff]
  %v41 = vld [vmem:[%s1 + $0x58] sm:$0xff]
  %v42 = vld [vmem:[%s1 + $0x60] sm:$0xff]
  %v43 = vld [vmem:[%s1 + $0x68] sm:$0xff]
  %v44 = vld [vmem:[%s1 + $0x70] sm:$0xff]
  %v45 = vld [vmem:[%s1 + $0x78] sm:$0xff]
  %v46 = vld [vmem:[%s2] sm:$0xff]
  %v47 = vld [vmem:[%s2 + $0x8] sm:$0xff]
  %v48 = vld [vmem:[%s2 + $0x10] sm:$0xff]
  %v49 = vld [vmem:[%s2 + $0x18] sm:$0xff]
  %v50 = vld [vmem:[%s2 + $0x20] sm:$0xff]
  %v51 = vld [vmem:[%s2 + $0x28] sm:$0xff]
  %v52 = vld [vmem:[%s2 + $0x30] sm:$0xff]
  %v53 = vld [vmem:[%s2 + $0x38] sm:$0xff]
  %v54 = vld [vmem:[%s2 + $0x40] sm:$0xff]
  %v55 = vld [vmem:[%s2 + $0x48] sm:$0xff]
  %v56 = vld [vmem:[%s2 + $0x50] sm:$0xff]
  %v57 = vld [vmem:[%s2 + $0x58] sm:$0xff]
  %v58 = vld [vmem:[%s2 + $0x60] sm:$0xff]
  %v59 = vld [vmem:[%s2 + $0x68] sm:$0xff]
  %v60 = vld [vmem:[%s2 + $0x70] sm:$0xff]
  %v61 = vld [vmem:[%s2 + $0x78] sm:$0xff]
  %63 = vset.pattern.permute.xlu0 0
  %64 = vperm.xlu0 %63, %v46
  %v65 = vpop.permute.xlu0 %64
  %68 = vset.pattern.permute.xlu0 0
  %69 = vperm.xlu0 %68, %v47
  %v70 = vpop.permute.xlu0 %69
  %73 = vset.pattern.permute.xlu0 0
  %74 = vperm.xlu0 %73, %v48
  %v75 = vpop.permute.xlu0 %74
  %78 = vset.pattern.permute.xlu0 0
  %79 = vperm.xlu0 %78, %v49
  %v80 = vpop.permute.xlu0 %79
  %83 = vset.pattern.permute.xlu0 0
  %84 = vperm.xlu0 %83, %v50
  %v85 = vpop.permute.xlu0 %84
  %88 = vset.pattern.permute.xlu0 0
  %89 = vperm.xlu0 %88, %v51
  %v90 = vpop.permute.xlu0 %89
  %93 = vset.pattern.permute.xlu0 0
  %94 = vperm.xlu0 %93, %v52
  %v95 = vpop.permute.xlu0 %94
  %98 = vset.pattern.permute.xlu0 0
  %99 = vperm.xlu0 %98, %v53
  %v100 = vpop.permute.xlu0 %99
  %103 = vset.pattern.permute.xlu0 0
  %104 = vperm.xlu0 %103, %v54
  %v105 = vpop.permute.xlu0 %104
  %108 = vset.pattern.permute.xlu0 0
  %109 = vperm.xlu0 %108, %v55
  %v110 = vpop.permute.xlu0 %109
  %113 = vset.pattern.permute.xlu0 0
  %114 = vperm.xlu0 %113, %v56
  %v115 = vpop.permute.xlu0 %114
  %118 = vset.pattern.permute.xlu0 0
  %119 = vperm.xlu0 %118, %v57
  %v120 = vpop.permute.xlu0 %119
  %123 = vset.pattern.permute.xlu0 0
  %124 = vperm.xlu0 %123, %v58
  %v125 = vpop.permute.xlu0 %124
  %128 = vset.pattern.permute.xlu0 0
  %129 = vperm.xlu0 %128, %v59
  %v130 = vpop.permute.xlu0 %129
  %133 = vset.pattern.permute.xlu0 0
  %134 = vperm.xlu0 %133, %v60
  %v135 = vpop.permute.xlu0 %134
  %138 = vset.pattern.permute.xlu0 0
  %139 = vperm.xlu0 %138, %v61
  %v140 = vpop.permute.xlu0 %139
  %vm142 = vcmask 64512
  %v144 = vsel %vm142, %v30, 0
  %v147 = vsel %vm142, %v31, 0
  %v150 = vsel %vm142, %v32, 0
  %v153 = vsel %vm142, %v33, 0
  %v156 = vsel %vm142, %v34, 0
  %v159 = vsel %vm142, %v35, 0
  %v162 = vsel %vm142, %v36, 0
  %v165 = vsel %vm142, %v37, 0
  %v168 = vsel %vm142, %v38, 0
  %v171 = vsel %vm142, %v39, 0
  %v174 = vsel %vm142, %v40, 0
  %v177 = vsel %vm142, %v41, 0
  %v180 = vsel %vm142, %v42, 0
  %v183 = vsel %vm142, %v43, 0
  %v186 = vsel %vm142, %v44, 0
  %v189 = vsel %vm142, %v45, 0
  %191 = vmatprep.subr.mxu0 0.0
  %192 = vmatpush1.msra.mxu0 0.0
  %193 = vmatprep.subr.mxu0 0.0
  %194 = vmatpush1.msra.mxu0 0.0
  %195 = vmatprep.subr.mxu0 0.0
  %196 = vmatpush1.msra.mxu0 0.0
  %197 = vmatprep.subr.mxu0 0.0
  %198 = vmatpush1.msra.mxu0 0.0
  %199 = vmatprep.subr.mxu0 0.0
  %200 = vmatpush1.msra.mxu0 0.0
  %201 = vmatprep.subr.mxu0 0.0
  %202 = vmatpush1.msra.mxu0 0.0
  %203 = vmatprep.subr.mxu0 0.0
  %204 = vmatpush1.msra.mxu0 0.0
  %205 = vmatprep.subr.mxu0 0.0
  %206 = vmatpush1.msra.mxu0 0.0
  %207 = vmatprep.subr.mxu0 0.0
  %208 = vmatpush1.msra.mxu0 0.0
  %209 = vmatprep.subr.mxu0 0.0
  %210 = vmatpush1.msra.mxu0 0.0
  %211 = vmatprep.subr.mxu0 0.0
  %212 = vmatpush1.msra.mxu0 0.0
  %213 = vmatprep.subr.mxu0 0.0
  %214 = vmatpush1.msra.mxu0 0.0
  %215 = vmatprep.subr.mxu0 0.0
  %216 = vmatpush1.msra.mxu0 0.0
  %217 = vmatprep.subr.mxu0 0.0
  %218 = vmatpush1.msra.mxu0 0.0
  %219 = vmatprep.subr.mxu0 0.0
  %220 = vmatpush1.msra.mxu0 0.0
  %v221 = vand.u32 %v29, 4294901760
  %222 = vmatprep.subr.mxu0 %v221
  %v223 = vand.u32 %v28, 4294901760
  %224 = vmatpush1.msra.mxu0 %v223
  %225 = vmatprep.subr.mxu0 0.0
  %226 = vmatpush2.msra.mxu0 0.0
  %227 = vmatprep.subr.mxu0 0.0
  %228 = vmatpush2.msra.mxu0 0.0
  %229 = vmatprep.subr.mxu0 0.0
  %230 = vmatpush2.msra.mxu0 0.0
  %231 = vmatprep.subr.mxu0 0.0
  %232 = vmatpush2.msra.mxu0 0.0
  %233 = vmatprep.subr.mxu0 0.0
  %234 = vmatpush2.msra.mxu0 0.0
  %235 = vmatprep.subr.mxu0 0.0
  %236 = vmatpush2.msra.mxu0 0.0
  %237 = vmatprep.subr.mxu0 0.0
  %238 = vmatpush2.msra.mxu0 0.0
  %239 = vmatprep.subr.mxu0 0.0
  %240 = vmatpush2.msra.mxu0 0.0
  %241 = vmatprep.subr.mxu0 0.0
  %242 = vmatpush2.msra.mxu0 0.0
  %243 = vmatprep.subr.mxu0 0.0
  %244 = vmatpush2.msra.mxu0 0.0
  %245 = vmatprep.subr.mxu0 0.0
  %246 = vmatpush2.msra.mxu0 0.0
  %247 = vmatprep.subr.mxu0 0.0
  %248 = vmatpush2.msra.mxu0 0.0
  %249 = vmatprep.subr.mxu0 0.0
  %250 = vmatpush2.msra.mxu0 0.0
  %251 = vmatprep.subr.mxu0 0.0
  %252 = vmatpush2.msra.mxu0 0.0
  %253 = vmatprep.subr.mxu0 0.0
  %254 = vmatpush2.msra.mxu0 0.0
  %255 = vmatprep.subr.mxu0 0.0
  %256 = vmatpush2.msra.mxu0 0.0
  %257 = vmatprep.mubr.f32.mxu0 0.0
  %v258 = vand.u32 %v144, 4294901760
  %v259 = vsub.f32 %v144, %v258
  %v260 = vand.u32 %v259, 4294901760
  %v261 = vsub.f32 %v259, %v260
  %v262 = vand.u32 %v261, 4294901760
  %263 = vmatmul.mubr.f32.gmra.mxu0 %v262
  %v264 = vpop.f32.mrf.mxu0
  %v265 = vadd.f32 %v65, %v264
  %v266 = vpop.f32.mrf.mxu0
  %v267 = vadd.f32 %v65, %v266
  %268 = vmatprep.mubr.f32.mxu0 0.0
  %v269 = vand.u32 %v147, 4294901760
  %v270 = vsub.f32 %v147, %v269
  %v271 = vand.u32 %v270, 4294901760
  %v272 = vsub.f32 %v270, %v271
  %v273 = vand.u32 %v272, 4294901760
  %274 = vmatmul.mubr.f32.gmra.mxu0 %v273
  %v275 = vpop.f32.mrf.mxu0
  %v276 = vadd.f32 %v70, %v275
  %v277 = vpop.f32.mrf.mxu0
  %v278 = vadd.f32 %v70, %v277
  %279 = vmatprep.mubr.f32.mxu0 0.0
  %v280 = vand.u32 %v150, 4294901760
  %v281 = vsub.f32 %v150, %v280
  %v282 = vand.u32 %v281, 4294901760
  %v283 = vsub.f32 %v281, %v282
  %v284 = vand.u32 %v283, 4294901760
  %285 = vmatmul.mubr.f32.gmra.mxu0 %v284
  %v286 = vpop.f32.mrf.mxu0
  %v287 = vadd.f32 %v75, %v286
  %v288 = vpop.f32.mrf.mxu0
  %v289 = vadd.f32 %v75, %v288
  %290 = vmatprep.mubr.f32.mxu0 0.0
  %v291 = vand.u32 %v153, 4294901760
  %v292 = vsub.f32 %v153, %v291
  %v293 = vand.u32 %v292, 4294901760
  %v294 = vsub.f32 %v292, %v293
  %v295 = vand.u32 %v294, 4294901760
  %296 = vmatmul.mubr.f32.gmra.mxu0 %v295
  %v297 = vpop.f32.mrf.mxu0
  %v298 = vadd.f32 %v80, %v297
  %v299 = vpop.f32.mrf.mxu0
  %v300 = vadd.f32 %v80, %v299
  %301 = vmatprep.mubr.f32.mxu0 0.0
  %v302 = vand.u32 %v156, 4294901760
  %v303 = vsub.f32 %v156, %v302
  %v304 = vand.u32 %v303, 4294901760
  %v305 = vsub.f32 %v303, %v304
  %v306 = vand.u32 %v305, 4294901760
  %307 = vmatmul.mubr.f32.gmra.mxu0 %v306
  %v308 = vpop.f32.mrf.mxu0
  %v309 = vadd.f32 %v85, %v308
  %v310 = vpop.f32.mrf.mxu0
  %v311 = vadd.f32 %v85, %v310
  %312 = vmatprep.mubr.f32.mxu0 0.0
  %v313 = vand.u32 %v159, 4294901760
  %v314 = vsub.f32 %v159, %v313
  %v315 = vand.u32 %v314, 4294901760
  %v316 = vsub.f32 %v314, %v315
  %v317 = vand.u32 %v316, 4294901760
  %318 = vmatmul.mubr.f32.gmra.mxu0 %v317
  %v319 = vpop.f32.mrf.mxu0
  %v320 = vadd.f32 %v90, %v319
  %v321 = vpop.f32.mrf.mxu0
  %v322 = vadd.f32 %v90, %v321
  %323 = vmatprep.mubr.f32.mxu0 0.0
  %v324 = vand.u32 %v162, 4294901760
  %v325 = vsub.f32 %v162, %v324
  %v326 = vand.u32 %v325, 4294901760
  %v327 = vsub.f32 %v325, %v326
  %v328 = vand.u32 %v327, 4294901760
  %329 = vmatmul.mubr.f32.gmra.mxu0 %v328
  %v330 = vpop.f32.mrf.mxu0
  %v331 = vadd.f32 %v95, %v330
  %v332 = vpop.f32.mrf.mxu0
  %v333 = vadd.f32 %v95, %v332
  %334 = vmatprep.mubr.f32.mxu0 0.0
  %v335 = vand.u32 %v165, 4294901760
  %v336 = vsub.f32 %v165, %v335
  %v337 = vand.u32 %v336, 4294901760
  %v338 = vsub.f32 %v336, %v337
  %v339 = vand.u32 %v338, 4294901760
  %340 = vmatmul.mubr.f32.gmra.mxu0 %v339
  %v341 = vpop.f32.mrf.mxu0
  %v342 = vadd.f32 %v100, %v341
  %v343 = vpop.f32.mrf.mxu0
  %v344 = vadd.f32 %v100, %v343
  %345 = vmatprep.mubr.f32.mxu0 0.0
  %v346 = vand.u32 %v168, 4294901760
  %v347 = vsub.f32 %v168, %v346
  %v348 = vand.u32 %v347, 4294901760
  %v349 = vsub.f32 %v347, %v348
  %v350 = vand.u32 %v349, 4294901760
  %351 = vmatmul.mubr.f32.gmra.mxu0 %v350
  %v352 = vpop.f32.mrf.mxu0
  %v353 = vadd.f32 %v105, %v352
  %v354 = vpop.f32.mrf.mxu0
  %v355 = vadd.f32 %v105, %v354
  %356 = vmatprep.mubr.f32.mxu0 0.0
  %v357 = vand.u32 %v171, 4294901760
  %v358 = vsub.f32 %v171, %v357
  %v359 = vand.u32 %v358, 4294901760
  %v360 = vsub.f32 %v358, %v359
  %v361 = vand.u32 %v360, 4294901760
  %362 = vmatmul.mubr.f32.gmra.mxu0 %v361
  %v363 = vpop.f32.mrf.mxu0
  %v364 = vadd.f32 %v110, %v363
  %v365 = vpop.f32.mrf.mxu0
  %v366 = vadd.f32 %v110, %v365
  %367 = vmatprep.mubr.f32.mxu0 0.0
  %v368 = vand.u32 %v174, 4294901760
  %v369 = vsub.f32 %v174, %v368
  %v370 = vand.u32 %v369, 4294901760
  %v371 = vsub.f32 %v369, %v370
  %v372 = vand.u32 %v371, 4294901760
  %373 = vmatmul.mubr.f32.gmra.mxu0 %v372
  %v374 = vpop.f32.mrf.mxu0
  %v375 = vadd.f32 %v115, %v374
  %v376 = vpop.f32.mrf.mxu0
  %v377 = vadd.f32 %v115, %v376
  %378 = vmatprep.mubr.f32.mxu0 0.0
  %v379 = vand.u32 %v177, 4294901760
  %v380 = vsub.f32 %v177, %v379
  %v381 = vand.u32 %v380, 4294901760
  %v382 = vsub.f32 %v380, %v381
  %v383 = vand.u32 %v382, 4294901760
  %384 = vmatmul.mubr.f32.gmra.mxu0 %v383
  %v385 = vpop.f32.mrf.mxu0
  %v386 = vadd.f32 %v120, %v385
  %v387 = vpop.f32.mrf.mxu0
  %v388 = vadd.f32 %v120, %v387
  %389 = vmatprep.mubr.f32.mxu0 0.0
  %v390 = vand.u32 %v180, 4294901760
  %v391 = vsub.f32 %v180, %v390
  %v392 = vand.u32 %v391, 4294901760
  %v393 = vsub.f32 %v391, %v392
  %v394 = vand.u32 %v393, 4294901760
  %395 = vmatmul.mubr.f32.gmra.mxu0 %v394
  %v396 = vpop.f32.mrf.mxu0
  %v397 = vadd.f32 %v125, %v396
  %v398 = vpop.f32.mrf.mxu0
  %v399 = vadd.f32 %v125, %v398
  %400 = vmatprep.mubr.f32.mxu0 0.0
  %v401 = vand.u32 %v183, 4294901760
  %v402 = vsub.f32 %v183, %v401
  %v403 = vand.u32 %v402, 4294901760
  %v404 = vsub.f32 %v402, %v403
  %v405 = vand.u32 %v404, 4294901760
  %406 = vmatmul.mubr.f32.gmra.mxu0 %v405
  %v407 = vpop.f32.mrf.mxu0
  %v408 = vadd.f32 %v130, %v407
  %v409 = vpop.f32.mrf.mxu0
  %v410 = vadd.f32 %v130, %v409
  %411 = vmatprep.mubr.f32.mxu0 0.0
  %v412 = vand.u32 %v186, 4294901760
  %v413 = vsub.f32 %v186, %v412
  %v414 = vand.u32 %v413, 4294901760
  %v415 = vsub.f32 %v413, %v414
  %v416 = vand.u32 %v415, 4294901760
  %417 = vmatmul.mubr.f32.gmra.mxu0 %v416
  %v418 = vpop.f32.mrf.mxu0
  %v419 = vadd.f32 %v135, %v418
  %v420 = vpop.f32.mrf.mxu0
  %v421 = vadd.f32 %v135, %v420
  %422 = vmatprep.mubr.f32.mxu0 0.0
  %v423 = vand.u32 %v189, 4294901760
  %v424 = vsub.f32 %v189, %v423
  %v425 = vand.u32 %v424, 4294901760
  %v426 = vsub.f32 %v424, %v425
  %v427 = vand.u32 %v426, 4294901760
  %428 = vmatmul.mubr.f32.gmra.mxu0 %v427
  %v429 = vpop.f32.mrf.mxu0
  %v430 = vadd.f32 %v140, %v429
  %v431 = vpop.f32.mrf.mxu0
  %v432 = vadd.f32 %v140, %v431
  %433 = vdwg.mxu0
  %434 = vmatprep.subr.mxu0 0.0
  %435 = vmatpush1.msra.mxu0 0.0
  %436 = vmatprep.subr.mxu0 0.0
  %437 = vmatpush1.msra.mxu0 0.0
  %438 = vmatprep.subr.mxu0 0.0
  %439 = vmatpush1.msra.mxu0 0.0
  %440 = vmatprep.subr.mxu0 0.0
  %441 = vmatpush1.msra.mxu0 0.0
  %442 = vmatprep.subr.mxu0 0.0
  %443 = vmatpush1.msra.mxu0 0.0
  %444 = vmatprep.subr.mxu0 0.0
  %445 = vmatpush1.msra.mxu0 0.0
  %446 = vmatprep.subr.mxu0 0.0
  %447 = vmatpush1.msra.mxu0 0.0
  %448 = vmatprep.subr.mxu0 0.0
  %449 = vmatpush1.msra.mxu0 0.0
  %450 = vmatprep.subr.mxu0 0.0
  %451 = vmatpush1.msra.mxu0 0.0
  %452 = vmatprep.subr.mxu0 0.0
  %453 = vmatpush1.msra.mxu0 0.0
  %454 = vmatprep.subr.mxu0 0.0
  %455 = vmatpush1.msra.mxu0 0.0
  %456 = vmatprep.subr.mxu0 0.0
  %457 = vmatpush1.msra.mxu0 0.0
  %458 = vmatprep.subr.mxu0 0.0
  %459 = vmatpush1.msra.mxu0 0.0
  %460 = vmatprep.subr.mxu0 0.0
  %461 = vmatpush1.msra.mxu0 0.0
  %462 = vmatprep.subr.mxu0 0.0
  %463 = vmatpush1.msra.mxu0 0.0
  %v464 = vand.u32 %v29, 4294901760
  %v465 = vsub.f32 %v29, %v464
  %v466 = vand.u32 %v465, 4294901760
  %v467 = vsub.f32 %v465, %v466
  %v468 = vand.u32 %v467, 4294901760
  %469 = vmatprep.subr.mxu0 %v468
  %v470 = vand.u32 %v28, 4294901760
  %v471 = vsub.f32 %v28, %v470
  %v472 = vand.u32 %v471, 4294901760
  %v473 = vsub.f32 %v471, %v472
  %v474 = vand.u32 %v473, 4294901760
  %475 = vmatpush1.msra.mxu0 %v474
  %476 = vmatprep.subr.mxu0 0.0
  %477 = vmatpush2.msra.mxu0 0.0
  %478 = vmatprep.subr.mxu0 0.0
  %479 = vmatpush2.msra.mxu0 0.0
  %480 = vmatprep.subr.mxu0 0.0
  %481 = vmatpush2.msra.mxu0 0.0
  %482 = vmatprep.subr.mxu0 0.0
  %483 = vmatpush2.msra.mxu0 0.0
  %484 = vmatprep.subr.mxu0 0.0
  %485 = vmatpush2.msra.mxu0 0.0
  %486 = vmatprep.subr.mxu0 0.0
  %487 = vmatpush2.msra.mxu0 0.0
  %488 = vmatprep.subr.mxu0 0.0
  %489 = vmatpush2.msra.mxu0 0.0
  %490 = vmatprep.subr.mxu0 0.0
  %491 = vmatpush2.msra.mxu0 0.0
  %492 = vmatprep.subr.mxu0 0.0
  %493 = vmatpush2.msra.mxu0 0.0
  %494 = vmatprep.subr.mxu0 0.0
  %495 = vmatpush2.msra.mxu0 0.0
  %496 = vmatprep.subr.mxu0 0.0
  %497 = vmatpush2.msra.mxu0 0.0
  %498 = vmatprep.subr.mxu0 0.0
  %499 = vmatpush2.msra.mxu0 0.0
  %500 = vmatprep.subr.mxu0 0.0
  %501 = vmatpush2.msra.mxu0 0.0
  %502 = vmatprep.subr.mxu0 0.0
  %503 = vmatpush2.msra.mxu0 0.0
  %504 = vmatprep.subr.mxu0 0.0
  %505 = vmatpush2.msra.mxu0 0.0
  %506 = vmatprep.subr.mxu0 0.0
  %507 = vmatpush2.msra.mxu0 0.0
  %508 = vmatprep.mubr.f32.mxu0 0.0
  %v509 = vand.u32 %v144, 4294901760
  %510 = vmatmul.mubr.f32.gmra.mxu0 %v509
  %v511 = vpop.f32.mrf.mxu0
  %v512 = vadd.f32 %v265, %v511
  %v513 = vpop.f32.mrf.mxu0
  %v514 = vadd.f32 %v267, %v513
  %515 = vmatprep.mubr.f32.mxu0 0.0
  %v516 = vand.u32 %v147, 4294901760
  %517 = vmatmul.mubr.f32.gmra.mxu0 %v516
  %v518 = vpop.f32.mrf.mxu0
  %v519 = vadd.f32 %v276, %v518
  %v520 = vpop.f32.mrf.mxu0
  %v521 = vadd.f32 %v278, %v520
  %522 = vmatprep.mubr.f32.mxu0 0.0
  %v523 = vand.u32 %v150, 4294901760
  %524 = vmatmul.mubr.f32.gmra.mxu0 %v523
  %v525 = vpop.f32.mrf.mxu0
  %v526 = vadd.f32 %v287, %v525
  %v527 = vpop.f32.mrf.mxu0
  %v528 = vadd.f32 %v289, %v527
  %529 = vmatprep.mubr.f32.mxu0 0.0
  %v530 = vand.u32 %v153, 4294901760
  %531 = vmatmul.mubr.f32.gmra.mxu0 %v530
  %v532 = vpop.f32.mrf.mxu0
  %v533 = vadd.f32 %v298, %v532
  %v534 = vpop.f32.mrf.mxu0
  %v535 = vadd.f32 %v300, %v534
  %536 = vmatprep.mubr.f32.mxu0 0.0
  %v537 = vand.u32 %v156, 4294901760
  %538 = vmatmul.mubr.f32.gmra.mxu0 %v537
  %v539 = vpop.f32.mrf.mxu0
  %v540 = vadd.f32 %v309, %v539
  %v541 = vpop.f32.mrf.mxu0
  %v542 = vadd.f32 %v311, %v541
  %543 = vmatprep.mubr.f32.mxu0 0.0
  %v544 = vand.u32 %v159, 4294901760
  %545 = vmatmul.mubr.f32.gmra.mxu0 %v544
  %v546 = vpop.f32.mrf.mxu0
  %v547 = vadd.f32 %v320, %v546
  %v548 = vpop.f32.mrf.mxu0
  %v549 = vadd.f32 %v322, %v548
  %550 = vmatprep.mubr.f32.mxu0 0.0
  %v551 = vand.u32 %v162, 4294901760
  %552 = vmatmul.mubr.f32.gmra.mxu0 %v551
  %v553 = vpop.f32.mrf.mxu0
  %v554 = vadd.f32 %v331, %v553
  %v555 = vpop.f32.mrf.mxu0
  %v556 = vadd.f32 %v333, %v555
  %557 = vmatprep.mubr.f32.mxu0 0.0
  %v558 = vand.u32 %v165, 4294901760
  %559 = vmatmul.mubr.f32.gmra.mxu0 %v558
  %v560 = vpop.f32.mrf.mxu0
  %v561 = vadd.f32 %v342, %v560
  %v562 = vpop.f32.mrf.mxu0
  %v563 = vadd.f32 %v344, %v562
  %564 = vmatprep.mubr.f32.mxu0 0.0
  %v565 = vand.u32 %v168, 4294901760
  %566 = vmatmul.mubr.f32.gmra.mxu0 %v565
  %v567 = vpop.f32.mrf.mxu0
  %v568 = vadd.f32 %v353, %v567
  %v569 = vpop.f32.mrf.mxu0
  %v570 = vadd.f32 %v355, %v569
  %571 = vmatprep.mubr.f32.mxu0 0.0
  %v572 = vand.u32 %v171, 4294901760
  %573 = vmatmul.mubr.f32.gmra.mxu0 %v572
  %v574 = vpop.f32.mrf.mxu0
  %v575 = vadd.f32 %v364, %v574
  %v576 = vpop.f32.mrf.mxu0
  %v577 = vadd.f32 %v366, %v576
  %578 = vmatprep.mubr.f32.mxu0 0.0
  %v579 = vand.u32 %v174, 4294901760
  %580 = vmatmul.mubr.f32.gmra.mxu0 %v579
  %v581 = vpop.f32.mrf.mxu0
  %v582 = vadd.f32 %v375, %v581
  %v583 = vpop.f32.mrf.mxu0
  %v584 = vadd.f32 %v377, %v583
  %585 = vmatprep.mubr.f32.mxu0 0.0
  %v586 = vand.u32 %v177, 4294901760
  %587 = vmatmul.mubr.f32.gmra.mxu0 %v586
  %v588 = vpop.f32.mrf.mxu0
  %v589 = vadd.f32 %v386, %v588
  %v590 = vpop.f32.mrf.mxu0
  %v591 = vadd.f32 %v388, %v590
  %592 = vmatprep.mubr.f32.mxu0 0.0
  %v593 = vand.u32 %v180, 4294901760
  %594 = vmatmul.mubr.f32.gmra.mxu0 %v593
  %v595 = vpop.f32.mrf.mxu0
  %v596 = vadd.f32 %v397, %v595
  %v597 = vpop.f32.mrf.mxu0
  %v598 = vadd.f32 %v399, %v597
  %599 = vmatprep.mubr.f32.mxu0 0.0
  %v600 = vand.u32 %v183, 4294901760
  %601 = vmatmul.mubr.f32.gmra.mxu0 %v600
  %v602 = vpop.f32.mrf.mxu0
  %v603 = vadd.f32 %v408, %v602
  %v604 = vpop.f32.mrf.mxu0
  %v605 = vadd.f32 %v410, %v604
  %606 = vmatprep.mubr.f32.mxu0 0.0
  %v607 = vand.u32 %v186, 4294901760
  %608 = vmatmul.mubr.f32.gmra.mxu0 %v607
  %v609 = vpop.f32.mrf.mxu0
  %v610 = vadd.f32 %v419, %v609
  %v611 = vpop.f32.mrf.mxu0
  %v612 = vadd.f32 %v421, %v611
  %613 = vmatprep.mubr.f32.mxu0 0.0
  %v614 = vand.u32 %v189, 4294901760
  %615 = vmatmul.mubr.f32.gmra.mxu0 %v614
  %v616 = vpop.f32.mrf.mxu0
  %v617 = vadd.f32 %v430, %v616
  %v618 = vpop.f32.mrf.mxu0
  %v619 = vadd.f32 %v432, %v618
  %620 = vdwg.mxu0
  %621 = vmatprep.subr.mxu0 0.0
  %622 = vmatpush1.msra.mxu0 0.0
  %623 = vmatprep.subr.mxu0 0.0
  %624 = vmatpush1.msra.mxu0 0.0
  %625 = vmatprep.subr.mxu0 0.0
  %626 = vmatpush1.msra.mxu0 0.0
  %627 = vmatprep.subr.mxu0 0.0
  %628 = vmatpush1.msra.mxu0 0.0
  %629 = vmatprep.subr.mxu0 0.0
  %630 = vmatpush1.msra.mxu0 0.0
  %631 = vmatprep.subr.mxu0 0.0
  %632 = vmatpush1.msra.mxu0 0.0
  %633 = vmatprep.subr.mxu0 0.0
  %634 = vmatpush1.msra.mxu0 0.0
  %635 = vmatprep.subr.mxu0 0.0
  %636 = vmatpush1.msra.mxu0 0.0
  %637 = vmatprep.subr.mxu0 0.0
  %638 = vmatpush1.msra.mxu0 0.0
  %639 = vmatprep.subr.mxu0 0.0
  %640 = vmatpush1.msra.mxu0 0.0
  %641 = vmatprep.subr.mxu0 0.0
  %642 = vmatpush1.msra.mxu0 0.0
  %643 = vmatprep.subr.mxu0 0.0
  %644 = vmatpush1.msra.mxu0 0.0
  %645 = vmatprep.subr.mxu0 0.0
  %646 = vmatpush1.msra.mxu0 0.0
  %647 = vmatprep.subr.mxu0 0.0
  %648 = vmatpush1.msra.mxu0 0.0
  %649 = vmatprep.subr.mxu0 0.0
  %650 = vmatpush1.msra.mxu0 0.0
  %v651 = vand.u32 %v29, 4294901760
  %v652 = vsub.f32 %v29, %v651
  %653 = vmatprep.subr.mxu0 %v652
  %v654 = vand.u32 %v28, 4294901760
  %v655 = vsub.f32 %v28, %v654
  %656 = vmatpush1.msra.mxu0 %v655
  %657 = vmatprep.subr.mxu0 0.0
  %658 = vmatpush2.msra.mxu0 0.0
  %659 = vmatprep.subr.mxu0 0.0
  %660 = vmatpush2.msra.mxu0 0.0
  %661 = vmatprep.subr.mxu0 0.0
  %662 = vmatpush2.msra.mxu0 0.0
  %663 = vmatprep.subr.mxu0 0.0
  %664 = vmatpush2.msra.mxu0 0.0
  %665 = vmatprep.subr.mxu0 0.0
  %666 = vmatpush2.msra.mxu0 0.0
  %667 = vmatprep.subr.mxu0 0.0
  %668 = vmatpush2.msra.mxu0 0.0
  %669 = vmatprep.subr.mxu0 0.0
  %670 = vmatpush2.msra.mxu0 0.0
  %671 = vmatprep.subr.mxu0 0.0
  %672 = vmatpush2.msra.mxu0 0.0
  %673 = vmatprep.subr.mxu0 0.0
  %674 = vmatpush2.msra.mxu0 0.0
  %675 = vmatprep.subr.mxu0 0.0
  %676 = vmatpush2.msra.mxu0 0.0
  %677 = vmatprep.subr.mxu0 0.0
  %678 = vmatpush2.msra.mxu0 0.0
  %679 = vmatprep.subr.mxu0 0.0
  %680 = vmatpush2.msra.mxu0 0.0
  %681 = vmatprep.subr.mxu0 0.0
  %682 = vmatpush2.msra.mxu0 0.0
  %683 = vmatprep.subr.mxu0 0.0
  %684 = vmatpush2.msra.mxu0 0.0
  %685 = vmatprep.subr.mxu0 0.0
  %686 = vmatpush2.msra.mxu0 0.0
  %687 = vmatprep.subr.mxu0 0.0
  %688 = vmatpush2.msra.mxu0 0.0
  %689 = vmatprep.mubr.f32.mxu0 0.0
  %v690 = vand.u32 %v144, 4294901760
  %v691 = vsub.f32 %v144, %v690
  %692 = vmatmul.mubr.f32.gmra.mxu0 %v691
  %v693 = vpop.f32.mrf.mxu0
  %v694 = vadd.f32 %v512, %v693
  %v695 = vpop.f32.mrf.mxu0
  %v696 = vadd.f32 %v514, %v695
  %697 = vmatprep.mubr.f32.mxu0 0.0
  %v698 = vand.u32 %v147, 4294901760
  %v699 = vsub.f32 %v147, %v698
  %700 = vmatmul.mubr.f32.gmra.mxu0 %v699
  %v701 = vpop.f32.mrf.mxu0
  %v702 = vadd.f32 %v519, %v701
  %v703 = vpop.f32.mrf.mxu0
  %v704 = vadd.f32 %v521, %v703
  %705 = vmatprep.mubr.f32.mxu0 0.0
  %v706 = vand.u32 %v150, 4294901760
  %v707 = vsub.f32 %v150, %v706
  %708 = vmatmul.mubr.f32.gmra.mxu0 %v707
  %v709 = vpop.f32.mrf.mxu0
  %v710 = vadd.f32 %v526, %v709
  %v711 = vpop.f32.mrf.mxu0
  %v712 = vadd.f32 %v528, %v711
  %713 = vmatprep.mubr.f32.mxu0 0.0
  %v714 = vand.u32 %v153, 4294901760
  %v715 = vsub.f32 %v153, %v714
  %716 = vmatmul.mubr.f32.gmra.mxu0 %v715
  %v717 = vpop.f32.mrf.mxu0
  %v718 = vadd.f32 %v533, %v717
  %v719 = vpop.f32.mrf.mxu0
  %v720 = vadd.f32 %v535, %v719
  %721 = vmatprep.mubr.f32.mxu0 0.0
  %v722 = vand.u32 %v156, 4294901760
  %v723 = vsub.f32 %v156, %v722
  %724 = vmatmul.mubr.f32.gmra.mxu0 %v723
  %v725 = vpop.f32.mrf.mxu0
  %v726 = vadd.f32 %v540, %v725
  %v727 = vpop.f32.mrf.mxu0
  %v728 = vadd.f32 %v542, %v727
  %729 = vmatprep.mubr.f32.mxu0 0.0
  %v730 = vand.u32 %v159, 4294901760
  %v731 = vsub.f32 %v159, %v730
  %732 = vmatmul.mubr.f32.gmra.mxu0 %v731
  %v733 = vpop.f32.mrf.mxu0
  %v734 = vadd.f32 %v547, %v733
  %v735 = vpop.f32.mrf.mxu0
  %v736 = vadd.f32 %v549, %v735
  %737 = vmatprep.mubr.f32.mxu0 0.0
  %v738 = vand.u32 %v162, 4294901760
  %v739 = vsub.f32 %v162, %v738
  %740 = vmatmul.mubr.f32.gmra.mxu0 %v739
  %v741 = vpop.f32.mrf.mxu0
  %v742 = vadd.f32 %v554, %v741
  %v743 = vpop.f32.mrf.mxu0
  %v744 = vadd.f32 %v556, %v743
  %745 = vmatprep.mubr.f32.mxu0 0.0
  %v746 = vand.u32 %v165, 4294901760
  %v747 = vsub.f32 %v165, %v746
  %748 = vmatmul.mubr.f32.gmra.mxu0 %v747
  %v749 = vpop.f32.mrf.mxu0
  %v750 = vadd.f32 %v561, %v749
  %v751 = vpop.f32.mrf.mxu0
  %v752 = vadd.f32 %v563, %v751
  %753 = vmatprep.mubr.f32.mxu0 0.0
  %v754 = vand.u32 %v168, 4294901760
  %v755 = vsub.f32 %v168, %v754
  %756 = vmatmul.mubr.f32.gmra.mxu0 %v755
  %v757 = vpop.f32.mrf.mxu0
  %v758 = vadd.f32 %v568, %v757
  %v759 = vpop.f32.mrf.mxu0
  %v760 = vadd.f32 %v570, %v759
  %761 = vmatprep.mubr.f32.mxu0 0.0
  %v762 = vand.u32 %v171, 4294901760
  %v763 = vsub.f32 %v171, %v762
  %764 = vmatmul.mubr.f32.gmra.mxu0 %v763
  %v765 = vpop.f32.mrf.mxu0
  %v766 = vadd.f32 %v575, %v765
  %v767 = vpop.f32.mrf.mxu0
  %v768 = vadd.f32 %v577, %v767
  %769 = vmatprep.mubr.f32.mxu0 0.0
  %v770 = vand.u32 %v174, 4294901760
  %v771 = vsub.f32 %v174, %v770
  %772 = vmatmul.mubr.f32.gmra.mxu0 %v771
  %v773 = vpop.f32.mrf.mxu0
  %v774 = vadd.f32 %v582, %v773
  %v775 = vpop.f32.mrf.mxu0
  %v776 = vadd.f32 %v584, %v775
  %777 = vmatprep.mubr.f32.mxu0 0.0
  %v778 = vand.u32 %v177, 4294901760
  %v779 = vsub.f32 %v177, %v778
  %780 = vmatmul.mubr.f32.gmra.mxu0 %v779
  %v781 = vpop.f32.mrf.mxu0
  %v782 = vadd.f32 %v589, %v781
  %v783 = vpop.f32.mrf.mxu0
  %v784 = vadd.f32 %v591, %v783
  %785 = vmatprep.mubr.f32.mxu0 0.0
  %v786 = vand.u32 %v180, 4294901760
  %v787 = vsub.f32 %v180, %v786
  %788 = vmatmul.mubr.f32.gmra.mxu0 %v787
  %v789 = vpop.f32.mrf.mxu0
  %v790 = vadd.f32 %v596, %v789
  %v791 = vpop.f32.mrf.mxu0
  %v792 = vadd.f32 %v598, %v791
  %793 = vmatprep.mubr.f32.mxu0 0.0
  %v794 = vand.u32 %v183, 4294901760
  %v795 = vsub.f32 %v183, %v794
  %796 = vmatmul.mubr.f32.gmra.mxu0 %v795
  %v797 = vpop.f32.mrf.mxu0
  %v798 = vadd.f32 %v603, %v797
  %v799 = vpop.f32.mrf.mxu0
  %v800 = vadd.f32 %v605, %v799
  %801 = vmatprep.mubr.f32.mxu0 0.0
  %v802 = vand.u32 %v186, 4294901760
  %v803 = vsub.f32 %v186, %v802
  %804 = vmatmul.mubr.f32.gmra.mxu0 %v803
  %v805 = vpop.f32.mrf.mxu0
  %v806 = vadd.f32 %v610, %v805
  %v807 = vpop.f32.mrf.mxu0
  %v808 = vadd.f32 %v612, %v807
  %809 = vmatprep.mubr.f32.mxu0 0.0
  %v810 = vand.u32 %v189, 4294901760
  %v811 = vsub.f32 %v189, %v810
  %812 = vmatmul.mubr.f32.gmra.mxu0 %v811
  %v813 = vpop.f32.mrf.mxu0
  %v814 = vadd.f32 %v617, %v813
  %v815 = vpop.f32.mrf.mxu0
  %v816 = vadd.f32 %v619, %v815
  %817 = vdwg.mxu0
  %818 = vmatprep.subr.mxu0 0.0
  %819 = vmatpush1.msra.mxu0 0.0
  %820 = vmatprep.subr.mxu0 0.0
  %821 = vmatpush1.msra.mxu0 0.0
  %822 = vmatprep.subr.mxu0 0.0
  %823 = vmatpush1.msra.mxu0 0.0
  %824 = vmatprep.subr.mxu0 0.0
  %825 = vmatpush1.msra.mxu0 0.0
  %826 = vmatprep.subr.mxu0 0.0
  %827 = vmatpush1.msra.mxu0 0.0
  %828 = vmatprep.subr.mxu0 0.0
  %829 = vmatpush1.msra.mxu0 0.0
  %830 = vmatprep.subr.mxu0 0.0
  %831 = vmatpush1.msra.mxu0 0.0
  %832 = vmatprep.subr.mxu0 0.0
  %833 = vmatpush1.msra.mxu0 0.0
  %834 = vmatprep.subr.mxu0 0.0
  %835 = vmatpush1.msra.mxu0 0.0
  %836 = vmatprep.subr.mxu0 0.0
  %837 = vmatpush1.msra.mxu0 0.0
  %838 = vmatprep.subr.mxu0 0.0
  %839 = vmatpush1.msra.mxu0 0.0
  %840 = vmatprep.subr.mxu0 0.0
  %841 = vmatpush1.msra.mxu0 0.0
  %842 = vmatprep.subr.mxu0 0.0
  %843 = vmatpush1.msra.mxu0 0.0
  %844 = vmatprep.subr.mxu0 0.0
  %845 = vmatpush1.msra.mxu0 0.0
  %846 = vmatprep.subr.mxu0 0.0
  %847 = vmatpush1.msra.mxu0 0.0
  %v848 = vand.u32 %v29, 4294901760
  %849 = vmatprep.subr.mxu0 %v848
  %v850 = vand.u32 %v28, 4294901760
  %851 = vmatpush1.msra.mxu0 %v850
  %852 = vmatprep.subr.mxu0 0.0
  %853 = vmatpush2.msra.mxu0 0.0
  %854 = vmatprep.subr.mxu0 0.0
  %855 = vmatpush2.msra.mxu0 0.0
  %856 = vmatprep.subr.mxu0 0.0
  %857 = vmatpush2.msra.mxu0 0.0
  %858 = vmatprep.subr.mxu0 0.0
  %859 = vmatpush2.msra.mxu0 0.0
  %860 = vmatprep.subr.mxu0 0.0
  %861 = vmatpush2.msra.mxu0 0.0
  %862 = vmatprep.subr.mxu0 0.0
  %863 = vmatpush2.msra.mxu0 0.0
  %864 = vmatprep.subr.mxu0 0.0
  %865 = vmatpush2.msra.mxu0 0.0
  %866 = vmatprep.subr.mxu0 0.0
  %867 = vmatpush2.msra.mxu0 0.0
  %868 = vmatprep.subr.mxu0 0.0
  %869 = vmatpush2.msra.mxu0 0.0
  %870 = vmatprep.subr.mxu0 0.0
  %871 = vmatpush2.msra.mxu0 0.0
  %872 = vmatprep.subr.mxu0 0.0
  %873 = vmatpush2.msra.mxu0 0.0
  %874 = vmatprep.subr.mxu0 0.0
  %875 = vmatpush2.msra.mxu0 0.0
  %876 = vmatprep.subr.mxu0 0.0
  %877 = vmatpush2.msra.mxu0 0.0
  %878 = vmatprep.subr.mxu0 0.0
  %879 = vmatpush2.msra.mxu0 0.0
  %880 = vmatprep.subr.mxu0 0.0
  %881 = vmatpush2.msra.mxu0 0.0
  %882 = vmatprep.subr.mxu0 0.0
  %883 = vmatpush2.msra.mxu0 0.0
  %884 = vmatprep.mubr.f32.mxu0 0.0
  %v885 = vand.u32 %v144, 4294901760
  %v886 = vsub.f32 %v144, %v885
  %v887 = vand.u32 %v886, 4294901760
  %888 = vmatmul.mubr.f32.gmra.mxu0 %v887
  %v889 = vpop.f32.mrf.mxu0
  %v890 = vadd.f32 %v694, %v889
  %v891 = vpop.f32.mrf.mxu0
  %v892 = vadd.f32 %v696, %v891
  %893 = vmatprep.mubr.f32.mxu0 0.0
  %v894 = vand.u32 %v147, 4294901760
  %v895 = vsub.f32 %v147, %v894
  %v896 = vand.u32 %v895, 4294901760
  %897 = vmatmul.mubr.f32.gmra.mxu0 %v896
  %v898 = vpop.f32.mrf.mxu0
  %v899 = vadd.f32 %v702, %v898
  %v900 = vpop.f32.mrf.mxu0
  %v901 = vadd.f32 %v704, %v900
  %902 = vmatprep.mubr.f32.mxu0 0.0
  %v903 = vand.u32 %v150, 4294901760
  %v904 = vsub.f32 %v150, %v903
  %v905 = vand.u32 %v904, 4294901760
  %906 = vmatmul.mubr.f32.gmra.mxu0 %v905
  %v907 = vpop.f32.mrf.mxu0
  %v908 = vadd.f32 %v710, %v907
  %v909 = vpop.f32.mrf.mxu0
  %v910 = vadd.f32 %v712, %v909
  %911 = vmatprep.mubr.f32.mxu0 0.0
  %v912 = vand.u32 %v153, 4294901760
  %v913 = vsub.f32 %v153, %v912
  %v914 = vand.u32 %v913, 4294901760
  %915 = vmatmul.mubr.f32.gmra.mxu0 %v914
  %v916 = vpop.f32.mrf.mxu0
  %v917 = vadd.f32 %v718, %v916
  %v918 = vpop.f32.mrf.mxu0
  %v919 = vadd.f32 %v720, %v918
  %920 = vmatprep.mubr.f32.mxu0 0.0
  %v921 = vand.u32 %v156, 4294901760
  %v922 = vsub.f32 %v156, %v921
  %v923 = vand.u32 %v922, 4294901760
  %924 = vmatmul.mubr.f32.gmra.mxu0 %v923
  %v925 = vpop.f32.mrf.mxu0
  %v926 = vadd.f32 %v726, %v925
  %v927 = vpop.f32.mrf.mxu0
  %v928 = vadd.f32 %v728, %v927
  %929 = vmatprep.mubr.f32.mxu0 0.0
  %v930 = vand.u32 %v159, 4294901760
  %v931 = vsub.f32 %v159, %v930
  %v932 = vand.u32 %v931, 4294901760
  %933 = vmatmul.mubr.f32.gmra.mxu0 %v932
  %v934 = vpop.f32.mrf.mxu0
  %v935 = vadd.f32 %v734, %v934
  %v936 = vpop.f32.mrf.mxu0
  %v937 = vadd.f32 %v736, %v936
  %938 = vmatprep.mubr.f32.mxu0 0.0
  %v939 = vand.u32 %v162, 4294901760
  %v940 = vsub.f32 %v162, %v939
  %v941 = vand.u32 %v940, 4294901760
  %942 = vmatmul.mubr.f32.gmra.mxu0 %v941
  %v943 = vpop.f32.mrf.mxu0
  %v944 = vadd.f32 %v742, %v943
  %v945 = vpop.f32.mrf.mxu0
  %v946 = vadd.f32 %v744, %v945
  %947 = vmatprep.mubr.f32.mxu0 0.0
  %v948 = vand.u32 %v165, 4294901760
  %v949 = vsub.f32 %v165, %v948
  %v950 = vand.u32 %v949, 4294901760
  %951 = vmatmul.mubr.f32.gmra.mxu0 %v950
  %v952 = vpop.f32.mrf.mxu0
  %v953 = vadd.f32 %v750, %v952
  %v954 = vpop.f32.mrf.mxu0
  %v955 = vadd.f32 %v752, %v954
  %956 = vmatprep.mubr.f32.mxu0 0.0
  %v957 = vand.u32 %v168, 4294901760
  %v958 = vsub.f32 %v168, %v957
  %v959 = vand.u32 %v958, 4294901760
  %960 = vmatmul.mubr.f32.gmra.mxu0 %v959
  %v961 = vpop.f32.mrf.mxu0
  %v962 = vadd.f32 %v758, %v961
  %v963 = vpop.f32.mrf.mxu0
  %v964 = vadd.f32 %v760, %v963
  %965 = vmatprep.mubr.f32.mxu0 0.0
  %v966 = vand.u32 %v171, 4294901760
  %v967 = vsub.f32 %v171, %v966
  %v968 = vand.u32 %v967, 4294901760
  %969 = vmatmul.mubr.f32.gmra.mxu0 %v968
  %v970 = vpop.f32.mrf.mxu0
  %v971 = vadd.f32 %v766, %v970
  %v972 = vpop.f32.mrf.mxu0
  %v973 = vadd.f32 %v768, %v972
  %974 = vmatprep.mubr.f32.mxu0 0.0
  %v975 = vand.u32 %v174, 4294901760
  %v976 = vsub.f32 %v174, %v975
  %v977 = vand.u32 %v976, 4294901760
  %978 = vmatmul.mubr.f32.gmra.mxu0 %v977
  %v979 = vpop.f32.mrf.mxu0
  %v980 = vadd.f32 %v774, %v979
  %v981 = vpop.f32.mrf.mxu0
  %v982 = vadd.f32 %v776, %v981
  %983 = vmatprep.mubr.f32.mxu0 0.0
  %v984 = vand.u32 %v177, 4294901760
  %v985 = vsub.f32 %v177, %v984
  %v986 = vand.u32 %v985, 4294901760
  %987 = vmatmul.mubr.f32.gmra.mxu0 %v986
  %v988 = vpop.f32.mrf.mxu0
  %v989 = vadd.f32 %v782, %v988
  %v990 = vpop.f32.mrf.mxu0
  %v991 = vadd.f32 %v784, %v990
  %992 = vmatprep.mubr.f32.mxu0 0.0
  %v993 = vand.u32 %v180, 4294901760
  %v994 = vsub.f32 %v180, %v993
  %v995 = vand.u32 %v994, 4294901760
  %996 = vmatmul.mubr.f32.gmra.mxu0 %v995
  %v997 = vpop.f32.mrf.mxu0
  %v998 = vadd.f32 %v790, %v997
  %v999 = vpop.f32.mrf.mxu0
  %v1000 = vadd.f32 %v792, %v999
  %1001 = vmatprep.mubr.f32.mxu0 0.0
  %v1002 = vand.u32 %v183, 4294901760
  %v1003 = vsub.f32 %v183, %v1002
  %v1004 = vand.u32 %v1003, 4294901760
  %1005 = vmatmul.mubr.f32.gmra.mxu0 %v1004
  %v1006 = vpop.f32.mrf.mxu0
  %v1007 = vadd.f32 %v798, %v1006
  %v1008 = vpop.f32.mrf.mxu0
  %v1009 = vadd.f32 %v800, %v1008
  %1010 = vmatprep.mubr.f32.mxu0 0.0
  %v1011 = vand.u32 %v186, 4294901760
  %v1012 = vsub.f32 %v186, %v1011
  %v1013 = vand.u32 %v1012, 4294901760
  %1014 = vmatmul.mubr.f32.gmra.mxu0 %v1013
  %v1015 = vpop.f32.mrf.mxu0
  %v1016 = vadd.f32 %v806, %v1015
  %v1017 = vpop.f32.mrf.mxu0
  %v1018 = vadd.f32 %v808, %v1017
  %1019 = vmatprep.mubr.f32.mxu0 0.0
  %v1020 = vand.u32 %v189, 4294901760
  %v1021 = vsub.f32 %v189, %v1020
  %v1022 = vand.u32 %v1021, 4294901760
  %1023 = vmatmul.mubr.f32.gmra.mxu0 %v1022
  %v1024 = vpop.f32.mrf.mxu0
  %v1025 = vadd.f32 %v814, %v1024
  %v1026 = vpop.f32.mrf.mxu0
  %v1027 = vadd.f32 %v816, %v1026
  %1028 = vdwg.mxu0
  %1029 = vmatprep.subr.mxu0 0.0
  %1030 = vmatpush1.msra.mxu0 0.0
  %1031 = vmatprep.subr.mxu0 0.0
  %1032 = vmatpush1.msra.mxu0 0.0
  %1033 = vmatprep.subr.mxu0 0.0
  %1034 = vmatpush1.msra.mxu0 0.0
  %1035 = vmatprep.subr.mxu0 0.0
  %1036 = vmatpush1.msra.mxu0 0.0
  %1037 = vmatprep.subr.mxu0 0.0
  %1038 = vmatpush1.msra.mxu0 0.0
  %1039 = vmatprep.subr.mxu0 0.0
  %1040 = vmatpush1.msra.mxu0 0.0
  %1041 = vmatprep.subr.mxu0 0.0
  %1042 = vmatpush1.msra.mxu0 0.0
  %1043 = vmatprep.subr.mxu0 0.0
  %1044 = vmatpush1.msra.mxu0 0.0
  %1045 = vmatprep.subr.mxu0 0.0
  %1046 = vmatpush1.msra.mxu0 0.0
  %1047 = vmatprep.subr.mxu0 0.0
  %1048 = vmatpush1.msra.mxu0 0.0
  %1049 = vmatprep.subr.mxu0 0.0
  %1050 = vmatpush1.msra.mxu0 0.0
  %1051 = vmatprep.subr.mxu0 0.0
  %1052 = vmatpush1.msra.mxu0 0.0
  %1053 = vmatprep.subr.mxu0 0.0
  %1054 = vmatpush1.msra.mxu0 0.0
  %1055 = vmatprep.subr.mxu0 0.0
  %1056 = vmatpush1.msra.mxu0 0.0
  %1057 = vmatprep.subr.mxu0 0.0
  %1058 = vmatpush1.msra.mxu0 0.0
  %v1059 = vand.u32 %v29, 4294901760
  %v1060 = vsub.f32 %v29, %v1059
  %v1061 = vand.u32 %v1060, 4294901760
  %1062 = vmatprep.subr.mxu0 %v1061
  %v1063 = vand.u32 %v28, 4294901760
  %v1064 = vsub.f32 %v28, %v1063
  %v1065 = vand.u32 %v1064, 4294901760
  %1066 = vmatpush1.msra.mxu0 %v1065
  %1067 = vmatprep.subr.mxu0 0.0
  %1068 = vmatpush2.msra.mxu0 0.0
  %1069 = vmatprep.subr.mxu0 0.0
  %1070 = vmatpush2.msra.mxu0 0.0
  %1071 = vmatprep.subr.mxu0 0.0
  %1072 = vmatpush2.msra.mxu0 0.0
  %1073 = vmatprep.subr.mxu0 0.0
  %1074 = vmatpush2.msra.mxu0 0.0
  %1075 = vmatprep.subr.mxu0 0.0
  %1076 = vmatpush2.msra.mxu0 0.0
  %1077 = vmatprep.subr.mxu0 0.0
  %1078 = vmatpush2.msra.mxu0 0.0
  %1079 = vmatprep.subr.mxu0 0.0
  %1080 = vmatpush2.msra.mxu0 0.0
  %1081 = vmatprep.subr.mxu0 0.0
  %1082 = vmatpush2.msra.mxu0 0.0
  %1083 = vmatprep.subr.mxu0 0.0
  %1084 = vmatpush2.msra.mxu0 0.0
  %1085 = vmatprep.subr.mxu0 0.0
  %1086 = vmatpush2.msra.mxu0 0.0
  %1087 = vmatprep.subr.mxu0 0.0
  %1088 = vmatpush2.msra.mxu0 0.0
  %1089 = vmatprep.subr.mxu0 0.0
  %1090 = vmatpush2.msra.mxu0 0.0
  %1091 = vmatprep.subr.mxu0 0.0
  %1092 = vmatpush2.msra.mxu0 0.0
  %1093 = vmatprep.subr.mxu0 0.0
  %1094 = vmatpush2.msra.mxu0 0.0
  %1095 = vmatprep.subr.mxu0 0.0
  %1096 = vmatpush2.msra.mxu0 0.0
  %1097 = vmatprep.subr.mxu0 0.0
  %1098 = vmatpush2.msra.mxu0 0.0
  %1099 = vmatprep.mubr.f32.mxu0 0.0
  %v1100 = vand.u32 %v144, 4294901760
  %1101 = vmatmul.mubr.f32.gmra.mxu0 %v1100
  %v1102 = vpop.f32.mrf.mxu0
  %v1103 = vadd.f32 %v890, %v1102
  %v1104 = vpop.f32.mrf.mxu0
  %v1105 = vadd.f32 %v892, %v1104
  %1106 = vmatprep.mubr.f32.mxu0 0.0
  %v1107 = vand.u32 %v147, 4294901760
  %1108 = vmatmul.mubr.f32.gmra.mxu0 %v1107
  %v1109 = vpop.f32.mrf.mxu0
  %v1110 = vadd.f32 %v899, %v1109
  %v1111 = vpop.f32.mrf.mxu0
  %v1112 = vadd.f32 %v901, %v1111
  %1113 = vmatprep.mubr.f32.mxu0 0.0
  %v1114 = vand.u32 %v150, 4294901760
  %1115 = vmatmul.mubr.f32.gmra.mxu0 %v1114
  %v1116 = vpop.f32.mrf.mxu0
  %v1117 = vadd.f32 %v908, %v1116
  %v1118 = vpop.f32.mrf.mxu0
  %v1119 = vadd.f32 %v910, %v1118
  %1120 = vmatprep.mubr.f32.mxu0 0.0
  %v1121 = vand.u32 %v153, 4294901760
  %1122 = vmatmul.mubr.f32.gmra.mxu0 %v1121
  %v1123 = vpop.f32.mrf.mxu0
  %v1124 = vadd.f32 %v917, %v1123
  %v1125 = vpop.f32.mrf.mxu0
  %v1126 = vadd.f32 %v919, %v1125
  %1127 = vmatprep.mubr.f32.mxu0 0.0
  %v1128 = vand.u32 %v156, 4294901760
  %1129 = vmatmul.mubr.f32.gmra.mxu0 %v1128
  %v1130 = vpop.f32.mrf.mxu0
  %v1131 = vadd.f32 %v926, %v1130
  %v1132 = vpop.f32.mrf.mxu0
  %v1133 = vadd.f32 %v928, %v1132
  %1134 = vmatprep.mubr.f32.mxu0 0.0
  %v1135 = vand.u32 %v159, 4294901760
  %1136 = vmatmul.mubr.f32.gmra.mxu0 %v1135
  %v1137 = vpop.f32.mrf.mxu0
  %v1138 = vadd.f32 %v935, %v1137
  %v1139 = vpop.f32.mrf.mxu0
  %v1140 = vadd.f32 %v937, %v1139
  %1141 = vmatprep.mubr.f32.mxu0 0.0
  %v1142 = vand.u32 %v162, 4294901760
  %1143 = vmatmul.mubr.f32.gmra.mxu0 %v1142
  %v1144 = vpop.f32.mrf.mxu0
  %v1145 = vadd.f32 %v944, %v1144
  %v1146 = vpop.f32.mrf.mxu0
  %v1147 = vadd.f32 %v946, %v1146
  %1148 = vmatprep.mubr.f32.mxu0 0.0
  %v1149 = vand.u32 %v165, 4294901760
  %1150 = vmatmul.mubr.f32.gmra.mxu0 %v1149
  %v1151 = vpop.f32.mrf.mxu0
  %v1152 = vadd.f32 %v953, %v1151
  %v1153 = vpop.f32.mrf.mxu0
  %v1154 = vadd.f32 %v955, %v1153
  %1155 = vmatprep.mubr.f32.mxu0 0.0
  %v1156 = vand.u32 %v168, 4294901760
  %1157 = vmatmul.mubr.f32.gmra.mxu0 %v1156
  %v1158 = vpop.f32.mrf.mxu0
  %v1159 = vadd.f32 %v962, %v1158
  %v1160 = vpop.f32.mrf.mxu0
  %v1161 = vadd.f32 %v964, %v1160
  %1162 = vmatprep.mubr.f32.mxu0 0.0
  %v1163 = vand.u32 %v171, 4294901760
  %1164 = vmatmul.mubr.f32.gmra.mxu0 %v1163
  %v1165 = vpop.f32.mrf.mxu0
  %v1166 = vadd.f32 %v971, %v1165
  %v1167 = vpop.f32.mrf.mxu0
  %v1168 = vadd.f32 %v973, %v1167
  %1169 = vmatprep.mubr.f32.mxu0 0.0
  %v1170 = vand.u32 %v174, 4294901760
  %1171 = vmatmul.mubr.f32.gmra.mxu0 %v1170
  %v1172 = vpop.f32.mrf.mxu0
  %v1173 = vadd.f32 %v980, %v1172
  %v1174 = vpop.f32.mrf.mxu0
  %v1175 = vadd.f32 %v982, %v1174
  %1176 = vmatprep.mubr.f32.mxu0 0.0
  %v1177 = vand.u32 %v177, 4294901760
  %1178 = vmatmul.mubr.f32.gmra.mxu0 %v1177
  %v1179 = vpop.f32.mrf.mxu0
  %v1180 = vadd.f32 %v989, %v1179
  %v1181 = vpop.f32.mrf.mxu0
  %v1182 = vadd.f32 %v991, %v1181
  %1183 = vmatprep.mubr.f32.mxu0 0.0
  %v1184 = vand.u32 %v180, 4294901760
  %1185 = vmatmul.mubr.f32.gmra.mxu0 %v1184
  %v1186 = vpop.f32.mrf.mxu0
  %v1187 = vadd.f32 %v998, %v1186
  %v1188 = vpop.f32.mrf.mxu0
  %v1189 = vadd.f32 %v1000, %v1188
  %1190 = vmatprep.mubr.f32.mxu0 0.0
  %v1191 = vand.u32 %v183, 4294901760
  %1192 = vmatmul.mubr.f32.gmra.mxu0 %v1191
  %v1193 = vpop.f32.mrf.mxu0
  %v1194 = vadd.f32 %v1007, %v1193
  %v1195 = vpop.f32.mrf.mxu0
  %v1196 = vadd.f32 %v1009, %v1195
  %1197 = vmatprep.mubr.f32.mxu0 0.0
  %v1198 = vand.u32 %v186, 4294901760
  %1199 = vmatmul.mubr.f32.gmra.mxu0 %v1198
  %v1200 = vpop.f32.mrf.mxu0
  %v1201 = vadd.f32 %v1016, %v1200
  %v1202 = vpop.f32.mrf.mxu0
  %v1203 = vadd.f32 %v1018, %v1202
  %1204 = vmatprep.mubr.f32.mxu0 0.0
  %v1205 = vand.u32 %v189, 4294901760
  %1206 = vmatmul.mubr.f32.gmra.mxu0 %v1205
  %v1207 = vpop.f32.mrf.mxu0
  %v1208 = vadd.f32 %v1025, %v1207
  %v1209 = vpop.f32.mrf.mxu0
  %v1210 = vadd.f32 %v1027, %v1209
  %1211 = vdwg.mxu0
  %1212 = vmatprep.subr.mxu0 0.0
  %1213 = vmatpush1.msra.mxu0 0.0
  %1214 = vmatprep.subr.mxu0 0.0
  %1215 = vmatpush1.msra.mxu0 0.0
  %1216 = vmatprep.subr.mxu0 0.0
  %1217 = vmatpush1.msra.mxu0 0.0
  %1218 = vmatprep.subr.mxu0 0.0
  %1219 = vmatpush1.msra.mxu0 0.0
  %1220 = vmatprep.subr.mxu0 0.0
  %1221 = vmatpush1.msra.mxu0 0.0
  %1222 = vmatprep.subr.mxu0 0.0
  %1223 = vmatpush1.msra.mxu0 0.0
  %1224 = vmatprep.subr.mxu0 0.0
  %1225 = vmatpush1.msra.mxu0 0.0
  %1226 = vmatprep.subr.mxu0 0.0
  %1227 = vmatpush1.msra.mxu0 0.0
  %1228 = vmatprep.subr.mxu0 0.0
  %1229 = vmatpush1.msra.mxu0 0.0
  %1230 = vmatprep.subr.mxu0 0.0
  %1231 = vmatpush1.msra.mxu0 0.0
  %1232 = vmatprep.subr.mxu0 0.0
  %1233 = vmatpush1.msra.mxu0 0.0
  %1234 = vmatprep.subr.mxu0 0.0
  %1235 = vmatpush1.msra.mxu0 0.0
  %1236 = vmatprep.subr.mxu0 0.0
  %1237 = vmatpush1.msra.mxu0 0.0
  %1238 = vmatprep.subr.mxu0 0.0
  %1239 = vmatpush1.msra.mxu0 0.0
  %1240 = vmatprep.subr.mxu0 0.0
  %1241 = vmatpush1.msra.mxu0 0.0
  %v1242 = vand.u32 %v29, 4294901760
  %1243 = vmatprep.subr.mxu0 %v1242
  %v1244 = vand.u32 %v28, 4294901760
  %1245 = vmatpush1.msra.mxu0 %v1244
  %1246 = vmatprep.subr.mxu0 0.0
  %1247 = vmatpush2.msra.mxu0 0.0
  %1248 = vmatprep.subr.mxu0 0.0
  %1249 = vmatpush2.msra.mxu0 0.0
  %1250 = vmatprep.subr.mxu0 0.0
  %1251 = vmatpush2.msra.mxu0 0.0
  %1252 = vmatprep.subr.mxu0 0.0
  %1253 = vmatpush2.msra.mxu0 0.0
  %1254 = vmatprep.subr.mxu0 0.0
  %1255 = vmatpush2.msra.mxu0 0.0
  %1256 = vmatprep.subr.mxu0 0.0
  %1257 = vmatpush2.msra.mxu0 0.0
  %1258 = vmatprep.subr.mxu0 0.0
  %1259 = vmatpush2.msra.mxu0 0.0
  %1260 = vmatprep.subr.mxu0 0.0
  %1261 = vmatpush2.msra.mxu0 0.0
  %1262 = vmatprep.subr.mxu0 0.0
  %1263 = vmatpush2.msra.mxu0 0.0
  %1264 = vmatprep.subr.mxu0 0.0
  %1265 = vmatpush2.msra.mxu0 0.0
  %1266 = vmatprep.subr.mxu0 0.0
  %1267 = vmatpush2.msra.mxu0 0.0
  %1268 = vmatprep.subr.mxu0 0.0
  %1269 = vmatpush2.msra.mxu0 0.0
  %1270 = vmatprep.subr.mxu0 0.0
  %1271 = vmatpush2.msra.mxu0 0.0
  %1272 = vmatprep.subr.mxu0 0.0
  %1273 = vmatpush2.msra.mxu0 0.0
  %1274 = vmatprep.subr.mxu0 0.0
  %1275 = vmatpush2.msra.mxu0 0.0
  %1276 = vmatprep.subr.mxu0 0.0
  %1277 = vmatpush2.msra.mxu0 0.0
  %1278 = vmatprep.mubr.f32.mxu0 0.0
  %v1279 = vand.u32 %v144, 4294901760
  %1280 = vmatmul.mubr.f32.gmra.mxu0 %v1279
  %v1281 = vpop.f32.mrf.mxu0
  %v1282 = vadd.f32 %v1103, %v1281
  %v1283 = vpop.f32.mrf.mxu0
  %v1284 = vadd.f32 %v1105, %v1283
  %1285 = vmatprep.mubr.f32.mxu0 0.0
  %v1286 = vand.u32 %v147, 4294901760
  %1287 = vmatmul.mubr.f32.gmra.mxu0 %v1286
  %v1288 = vpop.f32.mrf.mxu0
  %v1289 = vadd.f32 %v1110, %v1288
  %v1290 = vpop.f32.mrf.mxu0
  %v1291 = vadd.f32 %v1112, %v1290
  %1292 = vmatprep.mubr.f32.mxu0 0.0
  %v1293 = vand.u32 %v150, 4294901760
  %1294 = vmatmul.mubr.f32.gmra.mxu0 %v1293
  %v1295 = vpop.f32.mrf.mxu0
  %v1296 = vadd.f32 %v1117, %v1295
  %v1297 = vpop.f32.mrf.mxu0
  %v1298 = vadd.f32 %v1119, %v1297
  %1299 = vmatprep.mubr.f32.mxu0 0.0
  %v1300 = vand.u32 %v153, 4294901760
  %1301 = vmatmul.mubr.f32.gmra.mxu0 %v1300
  %v1302 = vpop.f32.mrf.mxu0
  %v1303 = vadd.f32 %v1124, %v1302
  %v1304 = vpop.f32.mrf.mxu0
  %v1305 = vadd.f32 %v1126, %v1304
  %1306 = vmatprep.mubr.f32.mxu0 0.0
  %v1307 = vand.u32 %v156, 4294901760
  %1308 = vmatmul.mubr.f32.gmra.mxu0 %v1307
  %v1309 = vpop.f32.mrf.mxu0
  %v1310 = vadd.f32 %v1131, %v1309
  %v1311 = vpop.f32.mrf.mxu0
  %v1312 = vadd.f32 %v1133, %v1311
  %1313 = vmatprep.mubr.f32.mxu0 0.0
  %v1314 = vand.u32 %v159, 4294901760
  %1315 = vmatmul.mubr.f32.gmra.mxu0 %v1314
  %v1316 = vpop.f32.mrf.mxu0
  %v1317 = vadd.f32 %v1138, %v1316
  %v1318 = vpop.f32.mrf.mxu0
  %v1319 = vadd.f32 %v1140, %v1318
  %1320 = vmatprep.mubr.f32.mxu0 0.0
  %v1321 = vand.u32 %v162, 4294901760
  %1322 = vmatmul.mubr.f32.gmra.mxu0 %v1321
  %v1323 = vpop.f32.mrf.mxu0
  %v1324 = vadd.f32 %v1145, %v1323
  %v1325 = vpop.f32.mrf.mxu0
  %v1326 = vadd.f32 %v1147, %v1325
  %1327 = vmatprep.mubr.f32.mxu0 0.0
  %v1328 = vand.u32 %v165, 4294901760
  %1329 = vmatmul.mubr.f32.gmra.mxu0 %v1328
  %v1330 = vpop.f32.mrf.mxu0
  %v1331 = vadd.f32 %v1152, %v1330
  %v1332 = vpop.f32.mrf.mxu0
  %v1333 = vadd.f32 %v1154, %v1332
  %1334 = vmatprep.mubr.f32.mxu0 0.0
  %v1335 = vand.u32 %v168, 4294901760
  %1336 = vmatmul.mubr.f32.gmra.mxu0 %v1335
  %v1337 = vpop.f32.mrf.mxu0
  %v1338 = vadd.f32 %v1159, %v1337
  %v1339 = vpop.f32.mrf.mxu0
  %v1340 = vadd.f32 %v1161, %v1339
  %1341 = vmatprep.mubr.f32.mxu0 0.0
  %v1342 = vand.u32 %v171, 4294901760
  %1343 = vmatmul.mubr.f32.gmra.mxu0 %v1342
  %v1344 = vpop.f32.mrf.mxu0
  %v1345 = vadd.f32 %v1166, %v1344
  %v1346 = vpop.f32.mrf.mxu0
  %v1347 = vadd.f32 %v1168, %v1346
  %1348 = vmatprep.mubr.f32.mxu0 0.0
  %v1349 = vand.u32 %v174, 4294901760
  %1350 = vmatmul.mubr.f32.gmra.mxu0 %v1349
  %v1351 = vpop.f32.mrf.mxu0
  %v1352 = vadd.f32 %v1173, %v1351
  %v1353 = vpop.f32.mrf.mxu0
  %v1354 = vadd.f32 %v1175, %v1353
  %1355 = vmatprep.mubr.f32.mxu0 0.0
  %v1356 = vand.u32 %v177, 4294901760
  %1357 = vmatmul.mubr.f32.gmra.mxu0 %v1356
  %v1358 = vpop.f32.mrf.mxu0
  %v1359 = vadd.f32 %v1180, %v1358
  %v1360 = vpop.f32.mrf.mxu0
  %v1361 = vadd.f32 %v1182, %v1360
  %1362 = vmatprep.mubr.f32.mxu0 0.0
  %v1363 = vand.u32 %v180, 4294901760
  %1364 = vmatmul.mubr.f32.gmra.mxu0 %v1363
  %v1365 = vpop.f32.mrf.mxu0
  %v1366 = vadd.f32 %v1187, %v1365
  %v1367 = vpop.f32.mrf.mxu0
  %v1368 = vadd.f32 %v1189, %v1367
  %1369 = vmatprep.mubr.f32.mxu0 0.0
  %v1370 = vand.u32 %v183, 4294901760
  %1371 = vmatmul.mubr.f32.gmra.mxu0 %v1370
  %v1372 = vpop.f32.mrf.mxu0
  %v1373 = vadd.f32 %v1194, %v1372
  %v1374 = vpop.f32.mrf.mxu0
  %v1375 = vadd.f32 %v1196, %v1374
  %1376 = vmatprep.mubr.f32.mxu0 0.0
  %v1377 = vand.u32 %v186, 4294901760
  %1378 = vmatmul.mubr.f32.gmra.mxu0 %v1377
  %v1379 = vpop.f32.mrf.mxu0
  %v1380 = vadd.f32 %v1201, %v1379
  %v1381 = vpop.f32.mrf.mxu0
  %v1382 = vadd.f32 %v1203, %v1381
  %1383 = vmatprep.mubr.f32.mxu0 0.0
  %v1384 = vand.u32 %v189, 4294901760
  %1385 = vmatmul.mubr.f32.gmra.mxu0 %v1384
  %v1386 = vpop.f32.mrf.mxu0
  %v1387 = vadd.f32 %v1208, %v1386
  %v1388 = vpop.f32.mrf.mxu0
  %v1389 = vadd.f32 %v1210, %v1388
  %1390 = vdwg.mxu0
  %v1391 = vmax.f32 %v1282, 0.0
  %v1392 = vmax.f32 %v1284, 0.0
  %v1393 = vmax.f32 %v1289, 0.0
  %v1394 = vmax.f32 %v1291, 0.0
  %v1395 = vmax.f32 %v1296, 0.0
  %v1396 = vmax.f32 %v1298, 0.0
  %v1397 = vmax.f32 %v1303, 0.0
  %v1398 = vmax.f32 %v1305, 0.0
  %v1399 = vmax.f32 %v1310, 0.0
  %v1400 = vmax.f32 %v1312, 0.0
  %v1401 = vmax.f32 %v1317, 0.0
  %v1402 = vmax.f32 %v1319, 0.0
  %v1403 = vmax.f32 %v1324, 0.0
  %v1404 = vmax.f32 %v1326, 0.0
  %v1405 = vmax.f32 %v1331, 0.0
  %v1406 = vmax.f32 %v1333, 0.0
  %v1407 = vmax.f32 %v1338, 0.0
  %v1408 = vmax.f32 %v1340, 0.0
  %v1409 = vmax.f32 %v1345, 0.0
  %v1410 = vmax.f32 %v1347, 0.0
  %v1411 = vmax.f32 %v1352, 0.0
  %v1412 = vmax.f32 %v1354, 0.0
  %v1413 = vmax.f32 %v1359, 0.0
  %v1414 = vmax.f32 %v1361, 0.0
  %v1415 = vmax.f32 %v1366, 0.0
  %v1416 = vmax.f32 %v1368, 0.0
  %v1417 = vmax.f32 %v1373, 0.0
  %v1418 = vmax.f32 %v1375, 0.0
  %v1419 = vmax.f32 %v1380, 0.0
  %v1420 = vmax.f32 %v1382, 0.0
  %v1421 = vmax.f32 %v1387, 0.0
  %v1422 = vmax.f32 %v1389, 0.0
  %v1423 = vld [vmem:[%s3] sm:$0xff]
  %v1424 = vld [vmem:[%s3 + $0x8] sm:$0xff]
  %v1425 = vld [vmem:[%s3 + $0x10] sm:$0xff]
  %v1426 = vld [vmem:[%s3 + $0x18] sm:$0xff]
  %v1427 = vld [vmem:[%s3 + $0x20] sm:$0xff]
  %v1428 = vld [vmem:[%s3 + $0x28] sm:$0xff]
  %v1429 = vld [vmem:[%s3 + $0x30] sm:$0xff]
  %v1430 = vld [vmem:[%s3 + $0x38] sm:$0xff]
  %v1431 = vld [vmem:[%s3 + $0x40] sm:$0xff]
  %v1432 = vld [vmem:[%s3 + $0x48] sm:$0xff]
  %v1433 = vld [vmem:[%s3 + $0x50] sm:$0xff]
  %v1434 = vld [vmem:[%s3 + $0x58] sm:$0xff]
  %v1435 = vld [vmem:[%s3 + $0x60] sm:$0xff]
  %v1436 = vld [vmem:[%s3 + $0x68] sm:$0xff]
  %v1437 = vld [vmem:[%s3 + $0x70] sm:$0xff]
  %v1438 = vld [vmem:[%s3 + $0x78] sm:$0xff]
  %v1439 = vld [vmem:[%s4] sm:$0xff]
  %v1440 = vld [vmem:[%s4 + $0x8] sm:$0xff]
  %v1441 = vld [vmem:[%s4 + $0x10] sm:$0xff]
  %v1442 = vld [vmem:[%s4 + $0x18] sm:$0xff]
  %v1443 = vld [vmem:[%s4 + $0x20] sm:$0xff]
  %v1444 = vld [vmem:[%s4 + $0x28] sm:$0xff]
  %v1445 = vld [vmem:[%s4 + $0x30] sm:$0xff]
  %v1446 = vld [vmem:[%s4 + $0x38] sm:$0xff]
  %v1447 = vld [vmem:[%s4 + $0x40] sm:$0xff]
  %v1448 = vld [vmem:[%s4 + $0x48] sm:$0xff]
  %v1449 = vld [vmem:[%s4 + $0x50] sm:$0xff]
  %v1450 = vld [vmem:[%s4 + $0x58] sm:$0xff]
  %v1451 = vld [vmem:[%s4 + $0x60] sm:$0xff]
  %v1452 = vld [vmem:[%s4 + $0x68] sm:$0xff]
  %v1453 = vld [vmem:[%s4 + $0x70] sm:$0xff]
  %v1454 = vld [vmem:[%s4 + $0x78] sm:$0xff]
  %1456 = vset.pattern.permute.xlu0 0
  %1457 = vperm.xlu0 %1456, %v1439
  %v1458 = vpop.permute.xlu0 %1457
  %1461 = vset.pattern.permute.xlu0 0
  %1462 = vperm.xlu0 %1461, %v1440
  %v1463 = vpop.permute.xlu0 %1462
  %1466 = vset.pattern.permute.xlu0 0
  %1467 = vperm.xlu0 %1466, %v1441
  %v1468 = vpop.permute.xlu0 %1467
  %1471 = vset.pattern.permute.xlu0 0
  %1472 = vperm.xlu0 %1471, %v1442
  %v1473 = vpop.permute.xlu0 %1472
  %1476 = vset.pattern.permute.xlu0 0
  %1477 = vperm.xlu0 %1476, %v1443
  %v1478 = vpop.permute.xlu0 %1477
  %1481 = vset.pattern.permute.xlu0 0
  %1482 = vperm.xlu0 %1481, %v1444
  %v1483 = vpop.permute.xlu0 %1482
  %1486 = vset.pattern.permute.xlu0 0
  %1487 = vperm.xlu0 %1486, %v1445
  %v1488 = vpop.permute.xlu0 %1487
  %1491 = vset.pattern.permute.xlu0 0
  %1492 = vperm.xlu0 %1491, %v1446
  %v1493 = vpop.permute.xlu0 %1492
  %1496 = vset.pattern.permute.xlu0 0
  %1497 = vperm.xlu0 %1496, %v1447
  %v1498 = vpop.permute.xlu0 %1497
  %1501 = vset.pattern.permute.xlu0 0
  %1502 = vperm.xlu0 %1501, %v1448
  %v1503 = vpop.permute.xlu0 %1502
  %1506 = vset.pattern.permute.xlu0 0
  %1507 = vperm.xlu0 %1506, %v1449
  %v1508 = vpop.permute.xlu0 %1507
  %1511 = vset.pattern.permute.xlu0 0
  %1512 = vperm.xlu0 %1511, %v1450
  %v1513 = vpop.permute.xlu0 %1512
  %1516 = vset.pattern.permute.xlu0 0
  %1517 = vperm.xlu0 %1516, %v1451
  %v1518 = vpop.permute.xlu0 %1517
  %1521 = vset.pattern.permute.xlu0 0
  %1522 = vperm.xlu0 %1521, %v1452
  %v1523 = vpop.permute.xlu0 %1522
  %1526 = vset.pattern.permute.xlu0 0
  %1527 = vperm.xlu0 %1526, %v1453
  %v1528 = vpop.permute.xlu0 %1527
  %1531 = vset.pattern.permute.xlu0 0
  %1532 = vperm.xlu0 %1531, %v1454
  %v1533 = vpop.permute.xlu0 %1532
  %v1535 = vand.u32 %v1422, 4294901760
  %1536 = vmatprep.subr.mxu0 %v1535
  %v1537 = vand.u32 %v1421, 4294901760
  %1538 = vmatpush1.msra.mxu0 %v1537
  %v1539 = vand.u32 %v1420, 4294901760
  %1540 = vmatprep.subr.mxu0 %v1539
  %v1541 = vand.u32 %v1419, 4294901760
  %1542 = vmatpush1.msra.mxu0 %v1541
  %v1543 = vand.u32 %v1418, 4294901760
  %1544 = vmatprep.subr.mxu0 %v1543
  %v1545 = vand.u32 %v1417, 4294901760
  %1546 = vmatpush1.msra.mxu0 %v1545
  %v1547 = vand.u32 %v1416, 4294901760
  %1548 = vmatprep.subr.mxu0 %v1547
  %v1549 = vand.u32 %v1415, 4294901760
  %1550 = vmatpush1.msra.mxu0 %v1549
  %v1551 = vand.u32 %v1414, 4294901760
  %1552 = vmatprep.subr.mxu0 %v1551
  %v1553 = vand.u32 %v1413, 4294901760
  %1554 = vmatpush1.msra.mxu0 %v1553
  %v1555 = vand.u32 %v1412, 4294901760
  %1556 = vmatprep.subr.mxu0 %v1555
  %v1557 = vand.u32 %v1411, 4294901760
  %1558 = vmatpush1.msra.mxu0 %v1557
  %v1559 = vand.u32 %v1410, 4294901760
  %1560 = vmatprep.subr.mxu0 %v1559
  %v1561 = vand.u32 %v1409, 4294901760
  %1562 = vmatpush1.msra.mxu0 %v1561
  %v1563 = vand.u32 %v1408, 4294901760
  %1564 = vmatprep.subr.mxu0 %v1563
  %v1565 = vand.u32 %v1407, 4294901760
  %1566 = vmatpush1.msra.mxu0 %v1565
  %v1567 = vand.u32 %v1406, 4294901760
  %1568 = vmatprep.subr.mxu0 %v1567
  %v1569 = vand.u32 %v1405, 4294901760
  %1570 = vmatpush1.msra.mxu0 %v1569
  %v1571 = vand.u32 %v1404, 4294901760
  %1572 = vmatprep.subr.mxu0 %v1571
  %v1573 = vand.u32 %v1403, 4294901760
  %1574 = vmatpush1.msra.mxu0 %v1573
  %v1575 = vand.u32 %v1402, 4294901760
  %1576 = vmatprep.subr.mxu0 %v1575
  %v1577 = vand.u32 %v1401, 4294901760
  %1578 = vmatpush1.msra.mxu0 %v1577
  %v1579 = vand.u32 %v1400, 4294901760
  %1580 = vmatprep.subr.mxu0 %v1579
  %v1581 = vand.u32 %v1399, 4294901760
  %1582 = vmatpush1.msra.mxu0 %v1581
  %v1583 = vand.u32 %v1398, 4294901760
  %1584 = vmatprep.subr.mxu0 %v1583
  %v1585 = vand.u32 %v1397, 4294901760
  %1586 = vmatpush1.msra.mxu0 %v1585
  %v1587 = vand.u32 %v1396, 4294901760
  %1588 = vmatprep.subr.mxu0 %v1587
  %v1589 = vand.u32 %v1395, 4294901760
  %1590 = vmatpush1.msra.mxu0 %v1589
  %v1591 = vand.u32 %v1394, 4294901760
  %1592 = vmatprep.subr.mxu0 %v1591
  %v1593 = vand.u32 %v1393, 4294901760
  %1594 = vmatpush1.msra.mxu0 %v1593
  %v1595 = vand.u32 %v1392, 4294901760
  %1596 = vmatprep.subr.mxu0 %v1595
  %v1597 = vand.u32 %v1391, 4294901760
  %1598 = vmatpush1.msra.mxu0 %v1597
  %1599 = vmatprep.subr.mxu0 0.0
  %1600 = vmatpush2.msra.mxu0 0.0
  %1601 = vmatprep.subr.mxu0 0.0
  %1602 = vmatpush2.msra.mxu0 0.0
  %1603 = vmatprep.subr.mxu0 0.0
  %1604 = vmatpush2.msra.mxu0 0.0
  %1605 = vmatprep.subr.mxu0 0.0
  %1606 = vmatpush2.msra.mxu0 0.0
  %1607 = vmatprep.subr.mxu0 0.0
  %1608 = vmatpush2.msra.mxu0 0.0
  %1609 = vmatprep.subr.mxu0 0.0
  %1610 = vmatpush2.msra.mxu0 0.0
  %1611 = vmatprep.subr.mxu0 0.0
  %1612 = vmatpush2.msra.mxu0 0.0
  %1613 = vmatprep.subr.mxu0 0.0
  %1614 = vmatpush2.msra.mxu0 0.0
  %1615 = vmatprep.subr.mxu0 0.0
  %1616 = vmatpush2.msra.mxu0 0.0
  %1617 = vmatprep.subr.mxu0 0.0
  %1618 = vmatpush2.msra.mxu0 0.0
  %1619 = vmatprep.subr.mxu0 0.0
  %1620 = vmatpush2.msra.mxu0 0.0
  %1621 = vmatprep.subr.mxu0 0.0
  %1622 = vmatpush2.msra.mxu0 0.0
  %1623 = vmatprep.subr.mxu0 0.0
  %1624 = vmatpush2.msra.mxu0 0.0
  %1625 = vmatprep.subr.mxu0 0.0
  %1626 = vmatpush2.msra.mxu0 0.0
  %1627 = vmatprep.subr.mxu0 0.0
  %1628 = vmatpush2.msra.mxu0 0.0
  %1629 = vmatprep.subr.mxu0 0.0
  %1630 = vmatpush2.msra.mxu0 0.0
  %1631 = vmatprep.mubr.f32.mxu0 0.0
  %v1632 = vand.u32 %v1423, 4294901760
  %v1633 = vsub.f32 %v1423, %v1632
  %v1634 = vand.u32 %v1633, 4294901760
  %v1635 = vsub.f32 %v1633, %v1634
  %v1636 = vand.u32 %v1635, 4294901760
  %1637 = vmatmul.mubr.f32.gmra.mxu0 %v1636
  %v1638 = vpop.f32.mrf.mxu0
  %v1639 = vadd.f32 %v1458, %v1638
  %v1640 = vpop.f32.mrf.mxu0
  %v1641 = vadd.f32 %v1458, %v1640
  %1642 = vmatprep.mubr.f32.mxu0 0.0
  %v1643 = vand.u32 %v1424, 4294901760
  %v1644 = vsub.f32 %v1424, %v1643
  %v1645 = vand.u32 %v1644, 4294901760
  %v1646 = vsub.f32 %v1644, %v1645
  %v1647 = vand.u32 %v1646, 4294901760
  %1648 = vmatmul.mubr.f32.gmra.mxu0 %v1647
  %v1649 = vpop.f32.mrf.mxu0
  %v1650 = vadd.f32 %v1463, %v1649
  %v1651 = vpop.f32.mrf.mxu0
  %v1652 = vadd.f32 %v1463, %v1651
  %1653 = vmatprep.mubr.f32.mxu0 0.0
  %v1654 = vand.u32 %v1425, 4294901760
  %v1655 = vsub.f32 %v1425, %v1654
  %v1656 = vand.u32 %v1655, 4294901760
  %v1657 = vsub.f32 %v1655, %v1656
  %v1658 = vand.u32 %v1657, 4294901760
  %1659 = vmatmul.mubr.f32.gmra.mxu0 %v1658
  %v1660 = vpop.f32.mrf.mxu0
  %v1661 = vadd.f32 %v1468, %v1660
  %v1662 = vpop.f32.mrf.mxu0
  %v1663 = vadd.f32 %v1468, %v1662
  %1664 = vmatprep.mubr.f32.mxu0 0.0
  %v1665 = vand.u32 %v1426, 4294901760
  %v1666 = vsub.f32 %v1426, %v1665
  %v1667 = vand.u32 %v1666, 4294901760
  %v1668 = vsub.f32 %v1666, %v1667
  %v1669 = vand.u32 %v1668, 4294901760
  %1670 = vmatmul.mubr.f32.gmra.mxu0 %v1669
  %v1671 = vpop.f32.mrf.mxu0
  %v1672 = vadd.f32 %v1473, %v1671
  %v1673 = vpop.f32.mrf.mxu0
  %v1674 = vadd.f32 %v1473, %v1673
  %1675 = vmatprep.mubr.f32.mxu0 0.0
  %v1676 = vand.u32 %v1427, 4294901760
  %v1677 = vsub.f32 %v1427, %v1676
  %v1678 = vand.u32 %v1677, 4294901760
  %v1679 = vsub.f32 %v1677, %v1678
  %v1680 = vand.u32 %v1679, 4294901760
  %1681 = vmatmul.mubr.f32.gmra.mxu0 %v1680
  %v1682 = vpop.f32.mrf.mxu0
  %v1683 = vadd.f32 %v1478, %v1682
  %v1684 = vpop.f32.mrf.mxu0
  %v1685 = vadd.f32 %v1478, %v1684
  %1686 = vmatprep.mubr.f32.mxu0 0.0
  %v1687 = vand.u32 %v1428, 4294901760
  %v1688 = vsub.f32 %v1428, %v1687
  %v1689 = vand.u32 %v1688, 4294901760
  %v1690 = vsub.f32 %v1688, %v1689
  %v1691 = vand.u32 %v1690, 4294901760
  %1692 = vmatmul.mubr.f32.gmra.mxu0 %v1691
  %v1693 = vpop.f32.mrf.mxu0
  %v1694 = vadd.f32 %v1483, %v1693
  %v1695 = vpop.f32.mrf.mxu0
  %v1696 = vadd.f32 %v1483, %v1695
  %1697 = vmatprep.mubr.f32.mxu0 0.0
  %v1698 = vand.u32 %v1429, 4294901760
  %v1699 = vsub.f32 %v1429, %v1698
  %v1700 = vand.u32 %v1699, 4294901760
  %v1701 = vsub.f32 %v1699, %v1700
  %v1702 = vand.u32 %v1701, 4294901760
  %1703 = vmatmul.mubr.f32.gmra.mxu0 %v1702
  %v1704 = vpop.f32.mrf.mxu0
  %v1705 = vadd.f32 %v1488, %v1704
  %v1706 = vpop.f32.mrf.mxu0
  %v1707 = vadd.f32 %v1488, %v1706
  %1708 = vmatprep.mubr.f32.mxu0 0.0
  %v1709 = vand.u32 %v1430, 4294901760
  %v1710 = vsub.f32 %v1430, %v1709
  %v1711 = vand.u32 %v1710, 4294901760
  %v1712 = vsub.f32 %v1710, %v1711
  %v1713 = vand.u32 %v1712, 4294901760
  %1714 = vmatmul.mubr.f32.gmra.mxu0 %v1713
  %v1715 = vpop.f32.mrf.mxu0
  %v1716 = vadd.f32 %v1493, %v1715
  %v1717 = vpop.f32.mrf.mxu0
  %v1718 = vadd.f32 %v1493, %v1717
  %1719 = vmatprep.mubr.f32.mxu0 0.0
  %v1720 = vand.u32 %v1431, 4294901760
  %v1721 = vsub.f32 %v1431, %v1720
  %v1722 = vand.u32 %v1721, 4294901760
  %v1723 = vsub.f32 %v1721, %v1722
  %v1724 = vand.u32 %v1723, 4294901760
  %1725 = vmatmul.mubr.f32.gmra.mxu0 %v1724
  %v1726 = vpop.f32.mrf.mxu0
  %v1727 = vadd.f32 %v1498, %v1726
  %v1728 = vpop.f32.mrf.mxu0
  %v1729 = vadd.f32 %v1498, %v1728
  %1730 = vmatprep.mubr.f32.mxu0 0.0
  %v1731 = vand.u32 %v1432, 4294901760
  %v1732 = vsub.f32 %v1432, %v1731
  %v1733 = vand.u32 %v1732, 4294901760
  %v1734 = vsub.f32 %v1732, %v1733
  %v1735 = vand.u32 %v1734, 4294901760
  %1736 = vmatmul.mubr.f32.gmra.mxu0 %v1735
  %v1737 = vpop.f32.mrf.mxu0
  %v1738 = vadd.f32 %v1503, %v1737
  %v1739 = vpop.f32.mrf.mxu0
  %v1740 = vadd.f32 %v1503, %v1739
  %1741 = vmatprep.mubr.f32.mxu0 0.0
  %v1742 = vand.u32 %v1433, 4294901760
  %v1743 = vsub.f32 %v1433, %v1742
  %v1744 = vand.u32 %v1743, 4294901760
  %v1745 = vsub.f32 %v1743, %v1744
  %v1746 = vand.u32 %v1745, 4294901760
  %1747 = vmatmul.mubr.f32.gmra.mxu0 %v1746
  %v1748 = vpop.f32.mrf.mxu0
  %v1749 = vadd.f32 %v1508, %v1748
  %v1750 = vpop.f32.mrf.mxu0
  %v1751 = vadd.f32 %v1508, %v1750
  %1752 = vmatprep.mubr.f32.mxu0 0.0
  %v1753 = vand.u32 %v1434, 4294901760
  %v1754 = vsub.f32 %v1434, %v1753
  %v1755 = vand.u32 %v1754, 4294901760
  %v1756 = vsub.f32 %v1754, %v1755
  %v1757 = vand.u32 %v1756, 4294901760
  %1758 = vmatmul.mubr.f32.gmra.mxu0 %v1757
  %v1759 = vpop.f32.mrf.mxu0
  %v1760 = vadd.f32 %v1513, %v1759
  %v1761 = vpop.f32.mrf.mxu0
  %v1762 = vadd.f32 %v1513, %v1761
  %1763 = vmatprep.mubr.f32.mxu0 0.0
  %v1764 = vand.u32 %v1435, 4294901760
  %v1765 = vsub.f32 %v1435, %v1764
  %v1766 = vand.u32 %v1765, 4294901760
  %v1767 = vsub.f32 %v1765, %v1766
  %v1768 = vand.u32 %v1767, 4294901760
  %1769 = vmatmul.mubr.f32.gmra.mxu0 %v1768
  %v1770 = vpop.f32.mrf.mxu0
  %v1771 = vadd.f32 %v1518, %v1770
  %v1772 = vpop.f32.mrf.mxu0
  %v1773 = vadd.f32 %v1518, %v1772
  %1774 = vmatprep.mubr.f32.mxu0 0.0
  %v1775 = vand.u32 %v1436, 4294901760
  %v1776 = vsub.f32 %v1436, %v1775
  %v1777 = vand.u32 %v1776, 4294901760
  %v1778 = vsub.f32 %v1776, %v1777
  %v1779 = vand.u32 %v1778, 4294901760
  %1780 = vmatmul.mubr.f32.gmra.mxu0 %v1779
  %v1781 = vpop.f32.mrf.mxu0
  %v1782 = vadd.f32 %v1523, %v1781
  %v1783 = vpop.f32.mrf.mxu0
  %v1784 = vadd.f32 %v1523, %v1783
  %1785 = vmatprep.mubr.f32.mxu0 0.0
  %v1786 = vand.u32 %v1437, 4294901760
  %v1787 = vsub.f32 %v1437, %v1786
  %v1788 = vand.u32 %v1787, 4294901760
  %v1789 = vsub.f32 %v1787, %v1788
  %v1790 = vand.u32 %v1789, 4294901760
  %1791 = vmatmul.mubr.f32.gmra.mxu0 %v1790
  %v1792 = vpop.f32.mrf.mxu0
  %v1793 = vadd.f32 %v1528, %v1792
  %v1794 = vpop.f32.mrf.mxu0
  %v1795 = vadd.f32 %v1528, %v1794
  %1796 = vmatprep.mubr.f32.mxu0 0.0
  %v1797 = vand.u32 %v1438, 4294901760
  %v1798 = vsub.f32 %v1438, %v1797
  %v1799 = vand.u32 %v1798, 4294901760
  %v1800 = vsub.f32 %v1798, %v1799
  %v1801 = vand.u32 %v1800, 4294901760
  %1802 = vmatmul.mubr.f32.gmra.mxu0 %v1801
  %v1803 = vpop.f32.mrf.mxu0
  %v1804 = vadd.f32 %v1533, %v1803
  %v1805 = vpop.f32.mrf.mxu0
  %v1806 = vadd.f32 %v1533, %v1805
  %1807 = vdwg.mxu0
  %v1808 = vand.u32 %v1422, 4294901760
  %v1809 = vsub.f32 %v1422, %v1808
  %v1810 = vand.u32 %v1809, 4294901760
  %v1811 = vsub.f32 %v1809, %v1810
  %v1812 = vand.u32 %v1811, 4294901760
  %1813 = vmatprep.subr.mxu0 %v1812
  %v1814 = vand.u32 %v1421, 4294901760
  %v1815 = vsub.f32 %v1421, %v1814
  %v1816 = vand.u32 %v1815, 4294901760
  %v1817 = vsub.f32 %v1815, %v1816
  %v1818 = vand.u32 %v1817, 4294901760
  %1819 = vmatpush1.msra.mxu0 %v1818
  %v1820 = vand.u32 %v1420, 4294901760
  %v1821 = vsub.f32 %v1420, %v1820
  %v1822 = vand.u32 %v1821, 4294901760
  %v1823 = vsub.f32 %v1821, %v1822
  %v1824 = vand.u32 %v1823, 4294901760
  %1825 = vmatprep.subr.mxu0 %v1824
  %v1826 = vand.u32 %v1419, 4294901760
  %v1827 = vsub.f32 %v1419, %v1826
  %v1828 = vand.u32 %v1827, 4294901760
  %v1829 = vsub.f32 %v1827, %v1828
  %v1830 = vand.u32 %v1829, 4294901760
  %1831 = vmatpush1.msra.mxu0 %v1830
  %v1832 = vand.u32 %v1418, 4294901760
  %v1833 = vsub.f32 %v1418, %v1832
  %v1834 = vand.u32 %v1833, 4294901760
  %v1835 = vsub.f32 %v1833, %v1834
  %v1836 = vand.u32 %v1835, 4294901760
  %1837 = vmatprep.subr.mxu0 %v1836
  %v1838 = vand.u32 %v1417, 4294901760
  %v1839 = vsub.f32 %v1417, %v1838
  %v1840 = vand.u32 %v1839, 4294901760
  %v1841 = vsub.f32 %v1839, %v1840
  %v1842 = vand.u32 %v1841, 4294901760
  %1843 = vmatpush1.msra.mxu0 %v1842
  %v1844 = vand.u32 %v1416, 4294901760
  %v1845 = vsub.f32 %v1416, %v1844
  %v1846 = vand.u32 %v1845, 4294901760
  %v1847 = vsub.f32 %v1845, %v1846
  %v1848 = vand.u32 %v1847, 4294901760
  %1849 = vmatprep.subr.mxu0 %v1848
  %v1850 = vand.u32 %v1415, 4294901760
  %v1851 = vsub.f32 %v1415, %v1850
  %v1852 = vand.u32 %v1851, 4294901760
  %v1853 = vsub.f32 %v1851, %v1852
  %v1854 = vand.u32 %v1853, 4294901760
  %1855 = vmatpush1.msra.mxu0 %v1854
  %v1856 = vand.u32 %v1414, 4294901760
  %v1857 = vsub.f32 %v1414, %v1856
  %v1858 = vand.u32 %v1857, 4294901760
  %v1859 = vsub.f32 %v1857, %v1858
  %v1860 = vand.u32 %v1859, 4294901760
  %1861 = vmatprep.subr.mxu0 %v1860
  %v1862 = vand.u32 %v1413, 4294901760
  %v1863 = vsub.f32 %v1413, %v1862
  %v1864 = vand.u32 %v1863, 4294901760
  %v1865 = vsub.f32 %v1863, %v1864
  %v1866 = vand.u32 %v1865, 4294901760
  %1867 = vmatpush1.msra.mxu0 %v1866
  %v1868 = vand.u32 %v1412, 4294901760
  %v1869 = vsub.f32 %v1412, %v1868
  %v1870 = vand.u32 %v1869, 4294901760
  %v1871 = vsub.f32 %v1869, %v1870
  %v1872 = vand.u32 %v1871, 4294901760
  %1873 = vmatprep.subr.mxu0 %v1872
  %v1874 = vand.u32 %v1411, 4294901760
  %v1875 = vsub.f32 %v1411, %v1874
  %v1876 = vand.u32 %v1875, 4294901760
  %v1877 = vsub.f32 %v1875, %v1876
  %v1878 = vand.u32 %v1877, 4294901760
  %1879 = vmatpush1.msra.mxu0 %v1878
  %v1880 = vand.u32 %v1410, 4294901760
  %v1881 = vsub.f32 %v1410, %v1880
  %v1882 = vand.u32 %v1881, 4294901760
  %v1883 = vsub.f32 %v1881, %v1882
  %v1884 = vand.u32 %v1883, 4294901760
  %1885 = vmatprep.subr.mxu0 %v1884
  %v1886 = vand.u32 %v1409, 4294901760
  %v1887 = vsub.f32 %v1409, %v1886
  %v1888 = vand.u32 %v1887, 4294901760
  %v1889 = vsub.f32 %v1887, %v1888
  %v1890 = vand.u32 %v1889, 4294901760
  %1891 = vmatpush1.msra.mxu0 %v1890
  %v1892 = vand.u32 %v1408, 4294901760
  %v1893 = vsub.f32 %v1408, %v1892
  %v1894 = vand.u32 %v1893, 4294901760
  %v1895 = vsub.f32 %v1893, %v1894
  %v1896 = vand.u32 %v1895, 4294901760
  %1897 = vmatprep.subr.mxu0 %v1896
  %v1898 = vand.u32 %v1407, 4294901760
  %v1899 = vsub.f32 %v1407, %v1898
  %v1900 = vand.u32 %v1899, 4294901760
  %v1901 = vsub.f32 %v1899, %v1900
  %v1902 = vand.u32 %v1901, 4294901760
  %1903 = vmatpush1.msra.mxu0 %v1902
  %v1904 = vand.u32 %v1406, 4294901760
  %v1905 = vsub.f32 %v1406, %v1904
  %v1906 = vand.u32 %v1905, 4294901760
  %v1907 = vsub.f32 %v1905, %v1906
  %v1908 = vand.u32 %v1907, 4294901760
  %1909 = vmatprep.subr.mxu0 %v1908
  %v1910 = vand.u32 %v1405, 4294901760
  %v1911 = vsub.f32 %v1405, %v1910
  %v1912 = vand.u32 %v1911, 4294901760
  %v1913 = vsub.f32 %v1911, %v1912
  %v1914 = vand.u32 %v1913, 4294901760
  %1915 = vmatpush1.msra.mxu0 %v1914
  %v1916 = vand.u32 %v1404, 4294901760
  %v1917 = vsub.f32 %v1404, %v1916
  %v1918 = vand.u32 %v1917, 4294901760
  %v1919 = vsub.f32 %v1917, %v1918
  %v1920 = vand.u32 %v1919, 4294901760
  %1921 = vmatprep.subr.mxu0 %v1920
  %v1922 = vand.u32 %v1403, 4294901760
  %v1923 = vsub.f32 %v1403, %v1922
  %v1924 = vand.u32 %v1923, 4294901760
  %v1925 = vsub.f32 %v1923, %v1924
  %v1926 = vand.u32 %v1925, 4294901760
  %1927 = vmatpush1.msra.mxu0 %v1926
  %v1928 = vand.u32 %v1402, 4294901760
  %v1929 = vsub.f32 %v1402, %v1928
  %v1930 = vand.u32 %v1929, 4294901760
  %v1931 = vsub.f32 %v1929, %v1930
  %v1932 = vand.u32 %v1931, 4294901760
  %1933 = vmatprep.subr.mxu0 %v1932
  %v1934 = vand.u32 %v1401, 4294901760
  %v1935 = vsub.f32 %v1401, %v1934
  %v1936 = vand.u32 %v1935, 4294901760
  %v1937 = vsub.f32 %v1935, %v1936
  %v1938 = vand.u32 %v1937, 4294901760
  %1939 = vmatpush1.msra.mxu0 %v1938
  %v1940 = vand.u32 %v1400, 4294901760
  %v1941 = vsub.f32 %v1400, %v1940
  %v1942 = vand.u32 %v1941, 4294901760
  %v1943 = vsub.f32 %v1941, %v1942
  %v1944 = vand.u32 %v1943, 4294901760
  %1945 = vmatprep.subr.mxu0 %v1944
  %v1946 = vand.u32 %v1399, 4294901760
  %v1947 = vsub.f32 %v1399, %v1946
  %v1948 = vand.u32 %v1947, 4294901760
  %v1949 = vsub.f32 %v1947, %v1948
  %v1950 = vand.u32 %v1949, 4294901760
  %1951 = vmatpush1.msra.mxu0 %v1950
  %v1952 = vand.u32 %v1398, 4294901760
  %v1953 = vsub.f32 %v1398, %v1952
  %v1954 = vand.u32 %v1953, 4294901760
  %v1955 = vsub.f32 %v1953, %v1954
  %v1956 = vand.u32 %v1955, 4294901760
  %1957 = vmatprep.subr.mxu0 %v1956
  %v1958 = vand.u32 %v1397, 4294901760
  %v1959 = vsub.f32 %v1397, %v1958
  %v1960 = vand.u32 %v1959, 4294901760
  %v1961 = vsub.f32 %v1959, %v1960
  %v1962 = vand.u32 %v1961, 4294901760
  %1963 = vmatpush1.msra.mxu0 %v1962
  %v1964 = vand.u32 %v1396, 4294901760
  %v1965 = vsub.f32 %v1396, %v1964
  %v1966 = vand.u32 %v1965, 4294901760
  %v1967 = vsub.f32 %v1965, %v1966
  %v1968 = vand.u32 %v1967, 4294901760
  %1969 = vmatprep.subr.mxu0 %v1968
  %v1970 = vand.u32 %v1395, 4294901760
  %v1971 = vsub.f32 %v1395, %v1970
  %v1972 = vand.u32 %v1971, 4294901760
  %v1973 = vsub.f32 %v1971, %v1972
  %v1974 = vand.u32 %v1973, 4294901760
  %1975 = vmatpush1.msra.mxu0 %v1974
  %v1976 = vand.u32 %v1394, 4294901760
  %v1977 = vsub.f32 %v1394, %v1976
  %v1978 = vand.u32 %v1977, 4294901760
  %v1979 = vsub.f32 %v1977, %v1978
  %v1980 = vand.u32 %v1979, 4294901760
  %1981 = vmatprep.subr.mxu0 %v1980
  %v1982 = vand.u32 %v1393, 4294901760
  %v1983 = vsub.f32 %v1393, %v1982
  %v1984 = vand.u32 %v1983, 4294901760
  %v1985 = vsub.f32 %v1983, %v1984
  %v1986 = vand.u32 %v1985, 4294901760
  %1987 = vmatpush1.msra.mxu0 %v1986
  %v1988 = vand.u32 %v1392, 4294901760
  %v1989 = vsub.f32 %v1392, %v1988
  %v1990 = vand.u32 %v1989, 4294901760
  %v1991 = vsub.f32 %v1989, %v1990
  %v1992 = vand.u32 %v1991, 4294901760
  %1993 = vmatprep.subr.mxu0 %v1992
  %v1994 = vand.u32 %v1391, 4294901760
  %v1995 = vsub.f32 %v1391, %v1994
  %v1996 = vand.u32 %v1995, 4294901760
  %v1997 = vsub.f32 %v1995, %v1996
  %v1998 = vand.u32 %v1997, 4294901760
  %1999 = vmatpush1.msra.mxu0 %v1998
  %2000 = vmatprep.subr.mxu0 0.0
  %2001 = vmatpush2.msra.mxu0 0.0
  %2002 = vmatprep.subr.mxu0 0.0
  %2003 = vmatpush2.msra.mxu0 0.0
  %2004 = vmatprep.subr.mxu0 0.0
  %2005 = vmatpush2.msra.mxu0 0.0
  %2006 = vmatprep.subr.mxu0 0.0
  %2007 = vmatpush2.msra.mxu0 0.0
  %2008 = vmatprep.subr.mxu0 0.0
  %2009 = vmatpush2.msra.mxu0 0.0
  %2010 = vmatprep.subr.mxu0 0.0
  %2011 = vmatpush2.msra.mxu0 0.0
  %2012 = vmatprep.subr.mxu0 0.0
  %2013 = vmatpush2.msra.mxu0 0.0
  %2014 = vmatprep.subr.mxu0 0.0
  %2015 = vmatpush2.msra.mxu0 0.0
  %2016 = vmatprep.subr.mxu0 0.0
  %2017 = vmatpush2.msra.mxu0 0.0
  %2018 = vmatprep.subr.mxu0 0.0
  %2019 = vmatpush2.msra.mxu0 0.0
  %2020 = vmatprep.subr.mxu0 0.0
  %2021 = vmatpush2.msra.mxu0 0.0
  %2022 = vmatprep.subr.mxu0 0.0
  %2023 = vmatpush2.msra.mxu0 0.0
  %2024 = vmatprep.subr.mxu0 0.0
  %2025 = vmatpush2.msra.mxu0 0.0
  %2026 = vmatprep.subr.mxu0 0.0
  %2027 = vmatpush2.msra.mxu0 0.0
  %2028 = vmatprep.subr.mxu0 0.0
  %2029 = vmatpush2.msra.mxu0 0.0
  %2030 = vmatprep.subr.mxu0 0.0
  %2031 = vmatpush2.msra.mxu0 0.0
  %2032 = vmatprep.mubr.f32.mxu0 0.0
  %v2033 = vand.u32 %v1423, 4294901760
  %2034 = vmatmul.mubr.f32.gmra.mxu0 %v2033
  %v2035 = vpop.f32.mrf.mxu0
  %v2036 = vadd.f32 %v1639, %v2035
  %v2037 = vpop.f32.mrf.mxu0
  %v2038 = vadd.f32 %v1641, %v2037
  %2039 = vmatprep.mubr.f32.mxu0 0.0
  %v2040 = vand.u32 %v1424, 4294901760
  %2041 = vmatmul.mubr.f32.gmra.mxu0 %v2040
  %v2042 = vpop.f32.mrf.mxu0
  %v2043 = vadd.f32 %v1650, %v2042
  %v2044 = vpop.f32.mrf.mxu0
  %v2045 = vadd.f32 %v1652, %v2044
  %2046 = vmatprep.mubr.f32.mxu0 0.0
  %v2047 = vand.u32 %v1425, 4294901760
  %2048 = vmatmul.mubr.f32.gmra.mxu0 %v2047
  %v2049 = vpop.f32.mrf.mxu0
  %v2050 = vadd.f32 %v1661, %v2049
  %v2051 = vpop.f32.mrf.mxu0
  %v2052 = vadd.f32 %v1663, %v2051
  %2053 = vmatprep.mubr.f32.mxu0 0.0
  %v2054 = vand.u32 %v1426, 4294901760
  %2055 = vmatmul.mubr.f32.gmra.mxu0 %v2054
  %v2056 = vpop.f32.mrf.mxu0
  %v2057 = vadd.f32 %v1672, %v2056
  %v2058 = vpop.f32.mrf.mxu0
  %v2059 = vadd.f32 %v1674, %v2058
  %2060 = vmatprep.mubr.f32.mxu0 0.0
  %v2061 = vand.u32 %v1427, 4294901760
  %2062 = vmatmul.mubr.f32.gmra.mxu0 %v2061
  %v2063 = vpop.f32.mrf.mxu0
  %v2064 = vadd.f32 %v1683, %v2063
  %v2065 = vpop.f32.mrf.mxu0
  %v2066 = vadd.f32 %v1685, %v2065
  %2067 = vmatprep.mubr.f32.mxu0 0.0
  %v2068 = vand.u32 %v1428, 4294901760
  %2069 = vmatmul.mubr.f32.gmra.mxu0 %v2068
  %v2070 = vpop.f32.mrf.mxu0
  %v2071 = vadd.f32 %v1694, %v2070
  %v2072 = vpop.f32.mrf.mxu0
  %v2073 = vadd.f32 %v1696, %v2072
  %2074 = vmatprep.mubr.f32.mxu0 0.0
  %v2075 = vand.u32 %v1429, 4294901760
  %2076 = vmatmul.mubr.f32.gmra.mxu0 %v2075
  %v2077 = vpop.f32.mrf.mxu0
  %v2078 = vadd.f32 %v1705, %v2077
  %v2079 = vpop.f32.mrf.mxu0
  %v2080 = vadd.f32 %v1707, %v2079
  %2081 = vmatprep.mubr.f32.mxu0 0.0
  %v2082 = vand.u32 %v1430, 4294901760
  %2083 = vmatmul.mubr.f32.gmra.mxu0 %v2082
  %v2084 = vpop.f32.mrf.mxu0
  %v2085 = vadd.f32 %v1716, %v2084
  %v2086 = vpop.f32.mrf.mxu0
  %v2087 = vadd.f32 %v1718, %v2086
  %2088 = vmatprep.mubr.f32.mxu0 0.0
  %v2089 = vand.u32 %v1431, 4294901760
  %2090 = vmatmul.mubr.f32.gmra.mxu0 %v2089
  %v2091 = vpop.f32.mrf.mxu0
  %v2092 = vadd.f32 %v1727, %v2091
  %v2093 = vpop.f32.mrf.mxu0
  %v2094 = vadd.f32 %v1729, %v2093
  %2095 = vmatprep.mubr.f32.mxu0 0.0
  %v2096 = vand.u32 %v1432, 4294901760
  %2097 = vmatmul.mubr.f32.gmra.mxu0 %v2096
  %v2098 = vpop.f32.mrf.mxu0
  %v2099 = vadd.f32 %v1738, %v2098
  %v2100 = vpop.f32.mrf.mxu0
  %v2101 = vadd.f32 %v1740, %v2100
  %2102 = vmatprep.mubr.f32.mxu0 0.0
  %v2103 = vand.u32 %v1433, 4294901760
  %2104 = vmatmul.mubr.f32.gmra.mxu0 %v2103
  %v2105 = vpop.f32.mrf.mxu0
  %v2106 = vadd.f32 %v1749, %v2105
  %v2107 = vpop.f32.mrf.mxu0
  %v2108 = vadd.f32 %v1751, %v2107
  %2109 = vmatprep.mubr.f32.mxu0 0.0
  %v2110 = vand.u32 %v1434, 4294901760
  %2111 = vmatmul.mubr.f32.gmra.mxu0 %v2110
  %v2112 = vpop.f32.mrf.mxu0
  %v2113 = vadd.f32 %v1760, %v2112
  %v2114 = vpop.f32.mrf.mxu0
  %v2115 = vadd.f32 %v1762, %v2114
  %2116 = vmatprep.mubr.f32.mxu0 0.0
  %v2117 = vand.u32 %v1435, 4294901760
  %2118 = vmatmul.mubr.f32.gmra.mxu0 %v2117
  %v2119 = vpop.f32.mrf.mxu0
  %v2120 = vadd.f32 %v1771, %v2119
  %v2121 = vpop.f32.mrf.mxu0
  %v2122 = vadd.f32 %v1773, %v2121
  %2123 = vmatprep.mubr.f32.mxu0 0.0
  %v2124 = vand.u32 %v1436, 4294901760
  %2125 = vmatmul.mubr.f32.gmra.mxu0 %v2124
  %v2126 = vpop.f32.mrf.mxu0
  %v2127 = vadd.f32 %v1782, %v2126
  %v2128 = vpop.f32.mrf.mxu0
  %v2129 = vadd.f32 %v1784, %v2128
  %2130 = vmatprep.mubr.f32.mxu0 0.0
  %v2131 = vand.u32 %v1437, 4294901760
  %2132 = vmatmul.mubr.f32.gmra.mxu0 %v2131
  %v2133 = vpop.f32.mrf.mxu0
  %v2134 = vadd.f32 %v1793, %v2133
  %v2135 = vpop.f32.mrf.mxu0
  %v2136 = vadd.f32 %v1795, %v2135
  %2137 = vmatprep.mubr.f32.mxu0 0.0
  %v2138 = vand.u32 %v1438, 4294901760
  %2139 = vmatmul.mubr.f32.gmra.mxu0 %v2138
  %v2140 = vpop.f32.mrf.mxu0
  %v2141 = vadd.f32 %v1804, %v2140
  %v2142 = vpop.f32.mrf.mxu0
  %v2143 = vadd.f32 %v1806, %v2142
  %2144 = vdwg.mxu0
  %v2145 = vand.u32 %v1422, 4294901760
  %v2146 = vsub.f32 %v1422, %v2145
  %2147 = vmatprep.subr.mxu0 %v2146
  %v2148 = vand.u32 %v1421, 4294901760
  %v2149 = vsub.f32 %v1421, %v2148
  %2150 = vmatpush1.msra.mxu0 %v2149
  %v2151 = vand.u32 %v1420, 4294901760
  %v2152 = vsub.f32 %v1420, %v2151
  %2153 = vmatprep.subr.mxu0 %v2152
  %v2154 = vand.u32 %v1419, 4294901760
  %v2155 = vsub.f32 %v1419, %v2154
  %2156 = vmatpush1.msra.mxu0 %v2155
  %v2157 = vand.u32 %v1418, 4294901760
  %v2158 = vsub.f32 %v1418, %v2157
  %2159 = vmatprep.subr.mxu0 %v2158
  %v2160 = vand.u32 %v1417, 4294901760
  %v2161 = vsub.f32 %v1417, %v2160
  %2162 = vmatpush1.msra.mxu0 %v2161
  %v2163 = vand.u32 %v1416, 4294901760
  %v2164 = vsub.f32 %v1416, %v2163
  %2165 = vmatprep.subr.mxu0 %v2164
  %v2166 = vand.u32 %v1415, 4294901760
  %v2167 = vsub.f32 %v1415, %v2166
  %2168 = vmatpush1.msra.mxu0 %v2167
  %v2169 = vand.u32 %v1414, 4294901760
  %v2170 = vsub.f32 %v1414, %v2169
  %2171 = vmatprep.subr.mxu0 %v2170
  %v2172 = vand.u32 %v1413, 4294901760
  %v2173 = vsub.f32 %v1413, %v2172
  %2174 = vmatpush1.msra.mxu0 %v2173
  %v2175 = vand.u32 %v1412, 4294901760
  %v2176 = vsub.f32 %v1412, %v2175
  %2177 = vmatprep.subr.mxu0 %v2176
  %v2178 = vand.u32 %v1411, 4294901760
  %v2179 = vsub.f32 %v1411, %v2178
  %2180 = vmatpush1.msra.mxu0 %v2179
  %v2181 = vand.u32 %v1410, 4294901760
  %v2182 = vsub.f32 %v1410, %v2181
  %2183 = vmatprep.subr.mxu0 %v2182
  %v2184 = vand.u32 %v1409, 4294901760
  %v2185 = vsub.f32 %v1409, %v2184
  %2186 = vmatpush1.msra.mxu0 %v2185
  %v2187 = vand.u32 %v1408, 4294901760
  %v2188 = vsub.f32 %v1408, %v2187
  %2189 = vmatprep.subr.mxu0 %v2188
  %v2190 = vand.u32 %v1407, 4294901760
  %v2191 = vsub.f32 %v1407, %v2190
  %2192 = vmatpush1.msra.mxu0 %v2191
  %v2193 = vand.u32 %v1406, 4294901760
  %v2194 = vsub.f32 %v1406, %v2193
  %2195 = vmatprep.subr.mxu0 %v2194
  %v2196 = vand.u32 %v1405, 4294901760
  %v2197 = vsub.f32 %v1405, %v2196
  %2198 = vmatpush1.msra.mxu0 %v2197
  %v2199 = vand.u32 %v1404, 4294901760
  %v2200 = vsub.f32 %v1404, %v2199
  %2201 = vmatprep.subr.mxu0 %v2200
  %v2202 = vand.u32 %v1403, 4294901760
  %v2203 = vsub.f32 %v1403, %v2202
  %2204 = vmatpush1.msra.mxu0 %v2203
  %v2205 = vand.u32 %v1402, 4294901760
  %v2206 = vsub.f32 %v1402, %v2205
  %2207 = vmatprep.subr.mxu0 %v2206
  %v2208 = vand.u32 %v1401, 4294901760
  %v2209 = vsub.f32 %v1401, %v2208
  %2210 = vmatpush1.msra.mxu0 %v2209
  %v2211 = vand.u32 %v1400, 4294901760
  %v2212 = vsub.f32 %v1400, %v2211
  %2213 = vmatprep.subr.mxu0 %v2212
  %v2214 = vand.u32 %v1399, 4294901760
  %v2215 = vsub.f32 %v1399, %v2214
  %2216 = vmatpush1.msra.mxu0 %v2215
  %v2217 = vand.u32 %v1398, 4294901760
  %v2218 = vsub.f32 %v1398, %v2217
  %2219 = vmatprep.subr.mxu0 %v2218
  %v2220 = vand.u32 %v1397, 4294901760
  %v2221 = vsub.f32 %v1397, %v2220
  %2222 = vmatpush1.msra.mxu0 %v2221
  %v2223 = vand.u32 %v1396, 4294901760
  %v2224 = vsub.f32 %v1396, %v2223
  %2225 = vmatprep.subr.mxu0 %v2224
  %v2226 = vand.u32 %v1395, 4294901760
  %v2227 = vsub.f32 %v1395, %v2226
  %2228 = vmatpush1.msra.mxu0 %v2227
  %v2229 = vand.u32 %v1394, 4294901760
  %v2230 = vsub.f32 %v1394, %v2229
  %2231 = vmatprep.subr.mxu0 %v2230
  %v2232 = vand.u32 %v1393, 4294901760
  %v2233 = vsub.f32 %v1393, %v2232
  %2234 = vmatpush1.msra.mxu0 %v2233
  %v2235 = vand.u32 %v1392, 4294901760
  %v2236 = vsub.f32 %v1392, %v2235
  %2237 = vmatprep.subr.mxu0 %v2236
  %v2238 = vand.u32 %v1391, 4294901760
  %v2239 = vsub.f32 %v1391, %v2238
  %2240 = vmatpush1.msra.mxu0 %v2239
  %2241 = vmatprep.subr.mxu0 0.0
  %2242 = vmatpush2.msra.mxu0 0.0
  %2243 = vmatprep.subr.mxu0 0.0
  %2244 = vmatpush2.msra.mxu0 0.0
  %2245 = vmatprep.subr.mxu0 0.0
  %2246 = vmatpush2.msra.mxu0 0.0
  %2247 = vmatprep.subr.mxu0 0.0
  %2248 = vmatpush2.msra.mxu0 0.0
  %2249 = vmatprep.subr.mxu0 0.0
  %2250 = vmatpush2.msra.mxu0 0.0
  %2251 = vmatprep.subr.mxu0 0.0
  %2252 = vmatpush2.msra.mxu0 0.0
  %2253 = vmatprep.subr.mxu0 0.0
  %2254 = vmatpush2.msra.mxu0 0.0
  %2255 = vmatprep.subr.mxu0 0.0
  %2256 = vmatpush2.msra.mxu0 0.0
  %2257 = vmatprep.subr.mxu0 0.0
  %2258 = vmatpush2.msra.mxu0 0.0
  %2259 = vmatprep.subr.mxu0 0.0
  %2260 = vmatpush2.msra.mxu0 0.0
  %2261 = vmatprep.subr.mxu0 0.0
  %2262 = vmatpush2.msra.mxu0 0.0
  %2263 = vmatprep.subr.mxu0 0.0
  %2264 = vmatpush2.msra.mxu0 0.0
  %2265 = vmatprep.subr.mxu0 0.0
  %2266 = vmatpush2.msra.mxu0 0.0
  %2267 = vmatprep.subr.mxu0 0.0
  %2268 = vmatpush2.msra.mxu0 0.0
  %2269 = vmatprep.subr.mxu0 0.0
  %2270 = vmatpush2.msra.mxu0 0.0
  %2271 = vmatprep.subr.mxu0 0.0
  %2272 = vmatpush2.msra.mxu0 0.0
  %2273 = vmatprep.mubr.f32.mxu0 0.0
  %v2274 = vand.u32 %v1423, 4294901760
  %v2275 = vsub.f32 %v1423, %v2274
  %2276 = vmatmul.mubr.f32.gmra.mxu0 %v2275
  %v2277 = vpop.f32.mrf.mxu0
  %v2278 = vadd.f32 %v2036, %v2277
  %v2279 = vpop.f32.mrf.mxu0
  %v2280 = vadd.f32 %v2038, %v2279
  %2281 = vmatprep.mubr.f32.mxu0 0.0
  %v2282 = vand.u32 %v1424, 4294901760
  %v2283 = vsub.f32 %v1424, %v2282
  %2284 = vmatmul.mubr.f32.gmra.mxu0 %v2283
  %v2285 = vpop.f32.mrf.mxu0
  %v2286 = vadd.f32 %v2043, %v2285
  %v2287 = vpop.f32.mrf.mxu0
  %v2288 = vadd.f32 %v2045, %v2287
  %2289 = vmatprep.mubr.f32.mxu0 0.0
  %v2290 = vand.u32 %v1425, 4294901760
  %v2291 = vsub.f32 %v1425, %v2290
  %2292 = vmatmul.mubr.f32.gmra.mxu0 %v2291
  %v2293 = vpop.f32.mrf.mxu0
  %v2294 = vadd.f32 %v2050, %v2293
  %v2295 = vpop.f32.mrf.mxu0
  %v2296 = vadd.f32 %v2052, %v2295
  %2297 = vmatprep.mubr.f32.mxu0 0.0
  %v2298 = vand.u32 %v1426, 4294901760
  %v2299 = vsub.f32 %v1426, %v2298
  %2300 = vmatmul.mubr.f32.gmra.mxu0 %v2299
  %v2301 = vpop.f32.mrf.mxu0
  %v2302 = vadd.f32 %v2057, %v2301
  %v2303 = vpop.f32.mrf.mxu0
  %v2304 = vadd.f32 %v2059, %v2303
  %2305 = vmatprep.mubr.f32.mxu0 0.0
  %v2306 = vand.u32 %v1427, 4294901760
  %v2307 = vsub.f32 %v1427, %v2306
  %2308 = vmatmul.mubr.f32.gmra.mxu0 %v2307
  %v2309 = vpop.f32.mrf.mxu0
  %v2310 = vadd.f32 %v2064, %v2309
  %v2311 = vpop.f32.mrf.mxu0
  %v2312 = vadd.f32 %v2066, %v2311
  %2313 = vmatprep.mubr.f32.mxu0 0.0
  %v2314 = vand.u32 %v1428, 4294901760
  %v2315 = vsub.f32 %v1428, %v2314
  %2316 = vmatmul.mubr.f32.gmra.mxu0 %v2315
  %v2317 = vpop.f32.mrf.mxu0
  %v2318 = vadd.f32 %v2071, %v2317
  %v2319 = vpop.f32.mrf.mxu0
  %v2320 = vadd.f32 %v2073, %v2319
  %2321 = vmatprep.mubr.f32.mxu0 0.0
  %v2322 = vand.u32 %v1429, 4294901760
  %v2323 = vsub.f32 %v1429, %v2322
  %2324 = vmatmul.mubr.f32.gmra.mxu0 %v2323
  %v2325 = vpop.f32.mrf.mxu0
  %v2326 = vadd.f32 %v2078, %v2325
  %v2327 = vpop.f32.mrf.mxu0
  %v2328 = vadd.f32 %v2080, %v2327
  %2329 = vmatprep.mubr.f32.mxu0 0.0
  %v2330 = vand.u32 %v1430, 4294901760
  %v2331 = vsub.f32 %v1430, %v2330
  %2332 = vmatmul.mubr.f32.gmra.mxu0 %v2331
  %v2333 = vpop.f32.mrf.mxu0
  %v2334 = vadd.f32 %v2085, %v2333
  %v2335 = vpop.f32.mrf.mxu0
  %v2336 = vadd.f32 %v2087, %v2335
  %2337 = vmatprep.mubr.f32.mxu0 0.0
  %v2338 = vand.u32 %v1431, 4294901760
  %v2339 = vsub.f32 %v1431, %v2338
  %2340 = vmatmul.mubr.f32.gmra.mxu0 %v2339
  %v2341 = vpop.f32.mrf.mxu0
  %v2342 = vadd.f32 %v2092, %v2341
  %v2343 = vpop.f32.mrf.mxu0
  %v2344 = vadd.f32 %v2094, %v2343
  %2345 = vmatprep.mubr.f32.mxu0 0.0
  %v2346 = vand.u32 %v1432, 4294901760
  %v2347 = vsub.f32 %v1432, %v2346
  %2348 = vmatmul.mubr.f32.gmra.mxu0 %v2347
  %v2349 = vpop.f32.mrf.mxu0
  %v2350 = vadd.f32 %v2099, %v2349
  %v2351 = vpop.f32.mrf.mxu0
  %v2352 = vadd.f32 %v2101, %v2351
  %2353 = vmatprep.mubr.f32.mxu0 0.0
  %v2354 = vand.u32 %v1433, 4294901760
  %v2355 = vsub.f32 %v1433, %v2354
  %2356 = vmatmul.mubr.f32.gmra.mxu0 %v2355
  %v2357 = vpop.f32.mrf.mxu0
  %v2358 = vadd.f32 %v2106, %v2357
  %v2359 = vpop.f32.mrf.mxu0
  %v2360 = vadd.f32 %v2108, %v2359
  %2361 = vmatprep.mubr.f32.mxu0 0.0
  %v2362 = vand.u32 %v1434, 4294901760
  %v2363 = vsub.f32 %v1434, %v2362
  %2364 = vmatmul.mubr.f32.gmra.mxu0 %v2363
  %v2365 = vpop.f32.mrf.mxu0
  %v2366 = vadd.f32 %v2113, %v2365
  %v2367 = vpop.f32.mrf.mxu0
  %v2368 = vadd.f32 %v2115, %v2367
  %2369 = vmatprep.mubr.f32.mxu0 0.0
  %v2370 = vand.u32 %v1435, 4294901760
  %v2371 = vsub.f32 %v1435, %v2370
  %2372 = vmatmul.mubr.f32.gmra.mxu0 %v2371
  %v2373 = vpop.f32.mrf.mxu0
  %v2374 = vadd.f32 %v2120, %v2373
  %v2375 = vpop.f32.mrf.mxu0
  %v2376 = vadd.f32 %v2122, %v2375
  %2377 = vmatprep.mubr.f32.mxu0 0.0
  %v2378 = vand.u32 %v1436, 4294901760
  %v2379 = vsub.f32 %v1436, %v2378
  %2380 = vmatmul.mubr.f32.gmra.mxu0 %v2379
  %v2381 = vpop.f32.mrf.mxu0
  %v2382 = vadd.f32 %v2127, %v2381
  %v2383 = vpop.f32.mrf.mxu0
  %v2384 = vadd.f32 %v2129, %v2383
  %2385 = vmatprep.mubr.f32.mxu0 0.0
  %v2386 = vand.u32 %v1437, 4294901760
  %v2387 = vsub.f32 %v1437, %v2386
  %2388 = vmatmul.mubr.f32.gmra.mxu0 %v2387
  %v2389 = vpop.f32.mrf.mxu0
  %v2390 = vadd.f32 %v2134, %v2389
  %v2391 = vpop.f32.mrf.mxu0
  %v2392 = vadd.f32 %v2136, %v2391
  %2393 = vmatprep.mubr.f32.mxu0 0.0
  %v2394 = vand.u32 %v1438, 4294901760
  %v2395 = vsub.f32 %v1438, %v2394
  %2396 = vmatmul.mubr.f32.gmra.mxu0 %v2395
  %v2397 = vpop.f32.mrf.mxu0
  %v2398 = vadd.f32 %v2141, %v2397
  %v2399 = vpop.f32.mrf.mxu0
  %v2400 = vadd.f32 %v2143, %v2399
  %2401 = vdwg.mxu0
  %v2402 = vand.u32 %v1422, 4294901760
  %2403 = vmatprep.subr.mxu0 %v2402
  %v2404 = vand.u32 %v1421, 4294901760
  %2405 = vmatpush1.msra.mxu0 %v2404
  %v2406 = vand.u32 %v1420, 4294901760
  %2407 = vmatprep.subr.mxu0 %v2406
  %v2408 = vand.u32 %v1419, 4294901760
  %2409 = vmatpush1.msra.mxu0 %v2408
  %v2410 = vand.u32 %v1418, 4294901760
  %2411 = vmatprep.subr.mxu0 %v2410
  %v2412 = vand.u32 %v1417, 4294901760
  %2413 = vmatpush1.msra.mxu0 %v2412
  %v2414 = vand.u32 %v1416, 4294901760
  %2415 = vmatprep.subr.mxu0 %v2414
  %v2416 = vand.u32 %v1415, 4294901760
  %2417 = vmatpush1.msra.mxu0 %v2416
  %v2418 = vand.u32 %v1414, 4294901760
  %2419 = vmatprep.subr.mxu0 %v2418
  %v2420 = vand.u32 %v1413, 4294901760
  %2421 = vmatpush1.msra.mxu0 %v2420
  %v2422 = vand.u32 %v1412, 4294901760
  %2423 = vmatprep.subr.mxu0 %v2422
  %v2424 = vand.u32 %v1411, 4294901760
  %2425 = vmatpush1.msra.mxu0 %v2424
  %v2426 = vand.u32 %v1410, 4294901760
  %2427 = vmatprep.subr.mxu0 %v2426
  %v2428 = vand.u32 %v1409, 4294901760
  %2429 = vmatpush1.msra.mxu0 %v2428
  %v2430 = vand.u32 %v1408, 4294901760
  %2431 = vmatprep.subr.mxu0 %v2430
  %v2432 = vand.u32 %v1407, 4294901760
  %2433 = vmatpush1.msra.mxu0 %v2432
  %v2434 = vand.u32 %v1406, 4294901760
  %2435 = vmatprep.subr.mxu0 %v2434
  %v2436 = vand.u32 %v1405, 4294901760
  %2437 = vmatpush1.msra.mxu0 %v2436
  %v2438 = vand.u32 %v1404, 4294901760
  %2439 = vmatprep.subr.mxu0 %v2438
  %v2440 = vand.u32 %v1403, 4294901760
  %2441 = vmatpush1.msra.mxu0 %v2440
  %v2442 = vand.u32 %v1402, 4294901760
  %2443 = vmatprep.subr.mxu0 %v2442
  %v2444 = vand.u32 %v1401, 4294901760
  %2445 = vmatpush1.msra.mxu0 %v2444
  %v2446 = vand.u32 %v1400, 4294901760
  %2447 = vmatprep.subr.mxu0 %v2446
  %v2448 = vand.u32 %v1399, 4294901760
  %2449 = vmatpush1.msra.mxu0 %v2448
  %v2450 = vand.u32 %v1398, 4294901760
  %2451 = vmatprep.subr.mxu0 %v2450
  %v2452 = vand.u32 %v1397, 4294901760
  %2453 = vmatpush1.msra.mxu0 %v2452
  %v2454 = vand.u32 %v1396, 4294901760
  %2455 = vmatprep.subr.mxu0 %v2454
  %v2456 = vand.u32 %v1395, 4294901760
  %2457 = vmatpush1.msra.mxu0 %v2456
  %v2458 = vand.u32 %v1394, 4294901760
  %2459 = vmatprep.subr.mxu0 %v2458
  %v2460 = vand.u32 %v1393, 4294901760
  %2461 = vmatpush1.msra.mxu0 %v2460
  %v2462 = vand.u32 %v1392, 4294901760
  %2463 = vmatprep.subr.mxu0 %v2462
  %v2464 = vand.u32 %v1391, 4294901760
  %2465 = vmatpush1.msra.mxu0 %v2464
  %2466 = vmatprep.subr.mxu0 0.0
  %2467 = vmatpush2.msra.mxu0 0.0
  %2468 = vmatprep.subr.mxu0 0.0
  %2469 = vmatpush2.msra.mxu0 0.0
  %2470 = vmatprep.subr.mxu0 0.0
  %2471 = vmatpush2.msra.mxu0 0.0
  %2472 = vmatprep.subr.mxu0 0.0
  %2473 = vmatpush2.msra.mxu0 0.0
  %2474 = vmatprep.subr.mxu0 0.0
  %2475 = vmatpush2.msra.mxu0 0.0
  %2476 = vmatprep.subr.mxu0 0.0
  %2477 = vmatpush2.msra.mxu0 0.0
  %2478 = vmatprep.subr.mxu0 0.0
  %2479 = vmatpush2.msra.mxu0 0.0
  %2480 = vmatprep.subr.mxu0 0.0
  %2481 = vmatpush2.msra.mxu0 0.0
  %2482 = vmatprep.subr.mxu0 0.0
  %2483 = vmatpush2.msra.mxu0 0.0
  %2484 = vmatprep.subr.mxu0 0.0
  %2485 = vmatpush2.msra.mxu0 0.0
  %2486 = vmatprep.subr.mxu0 0.0
  %2487 = vmatpush2.msra.mxu0 0.0
  %2488 = vmatprep.subr.mxu0 0.0
  %2489 = vmatpush2.msra.mxu0 0.0
  %2490 = vmatprep.subr.mxu0 0.0
  %2491 = vmatpush2.msra.mxu0 0.0
  %2492 = vmatprep.subr.mxu0 0.0
  %2493 = vmatpush2.msra.mxu0 0.0
  %2494 = vmatprep.subr.mxu0 0.0
  %2495 = vmatpush2.msra.mxu0 0.0
  %2496 = vmatprep.subr.mxu0 0.0
  %2497 = vmatpush2.msra.mxu0 0.0
  %2498 = vmatprep.mubr.f32.mxu0 0.0
  %v2499 = vand.u32 %v1423, 4294901760
  %v2500 = vsub.f32 %v1423, %v2499
  %v2501 = vand.u32 %v2500, 4294901760
  %2502 = vmatmul.mubr.f32.gmra.mxu0 %v2501
  %v2503 = vpop.f32.mrf.mxu0
  %v2504 = vadd.f32 %v2278, %v2503
  %v2505 = vpop.f32.mrf.mxu0
  %v2506 = vadd.f32 %v2280, %v2505
  %2507 = vmatprep.mubr.f32.mxu0 0.0
  %v2508 = vand.u32 %v1424, 4294901760
  %v2509 = vsub.f32 %v1424, %v2508
  %v2510 = vand.u32 %v2509, 4294901760
  %2511 = vmatmul.mubr.f32.gmra.mxu0 %v2510
  %v2512 = vpop.f32.mrf.mxu0
  %v2513 = vadd.f32 %v2286, %v2512
  %v2514 = vpop.f32.mrf.mxu0
  %v2515 = vadd.f32 %v2288, %v2514
  %2516 = vmatprep.mubr.f32.mxu0 0.0
  %v2517 = vand.u32 %v1425, 4294901760
  %v2518 = vsub.f32 %v1425, %v2517
  %v2519 = vand.u32 %v2518, 4294901760
  %2520 = vmatmul.mubr.f32.gmra.mxu0 %v2519
  %v2521 = vpop.f32.mrf.mxu0
  %v2522 = vadd.f32 %v2294, %v2521
  %v2523 = vpop.f32.mrf.mxu0
  %v2524 = vadd.f32 %v2296, %v2523
  %2525 = vmatprep.mubr.f32.mxu0 0.0
  %v2526 = vand.u32 %v1426, 4294901760
  %v2527 = vsub.f32 %v1426, %v2526
  %v2528 = vand.u32 %v2527, 4294901760
  %2529 = vmatmul.mubr.f32.gmra.mxu0 %v2528
  %v2530 = vpop.f32.mrf.mxu0
  %v2531 = vadd.f32 %v2302, %v2530
  %v2532 = vpop.f32.mrf.mxu0
  %v2533 = vadd.f32 %v2304, %v2532
  %2534 = vmatprep.mubr.f32.mxu0 0.0
  %v2535 = vand.u32 %v1427, 4294901760
  %v2536 = vsub.f32 %v1427, %v2535
  %v2537 = vand.u32 %v2536, 4294901760
  %2538 = vmatmul.mubr.f32.gmra.mxu0 %v2537
  %v2539 = vpop.f32.mrf.mxu0
  %v2540 = vadd.f32 %v2310, %v2539
  %v2541 = vpop.f32.mrf.mxu0
  %v2542 = vadd.f32 %v2312, %v2541
  %2543 = vmatprep.mubr.f32.mxu0 0.0
  %v2544 = vand.u32 %v1428, 4294901760
  %v2545 = vsub.f32 %v1428, %v2544
  %v2546 = vand.u32 %v2545, 4294901760
  %2547 = vmatmul.mubr.f32.gmra.mxu0 %v2546
  %v2548 = vpop.f32.mrf.mxu0
  %v2549 = vadd.f32 %v2318, %v2548
  %v2550 = vpop.f32.mrf.mxu0
  %v2551 = vadd.f32 %v2320, %v2550
  %2552 = vmatprep.mubr.f32.mxu0 0.0
  %v2553 = vand.u32 %v1429, 4294901760
  %v2554 = vsub.f32 %v1429, %v2553
  %v2555 = vand.u32 %v2554, 4294901760
  %2556 = vmatmul.mubr.f32.gmra.mxu0 %v2555
  %v2557 = vpop.f32.mrf.mxu0
  %v2558 = vadd.f32 %v2326, %v2557
  %v2559 = vpop.f32.mrf.mxu0
  %v2560 = vadd.f32 %v2328, %v2559
  %2561 = vmatprep.mubr.f32.mxu0 0.0
  %v2562 = vand.u32 %v1430, 4294901760
  %v2563 = vsub.f32 %v1430, %v2562
  %v2564 = vand.u32 %v2563, 4294901760
  %2565 = vmatmul.mubr.f32.gmra.mxu0 %v2564
  %v2566 = vpop.f32.mrf.mxu0
  %v2567 = vadd.f32 %v2334, %v2566
  %v2568 = vpop.f32.mrf.mxu0
  %v2569 = vadd.f32 %v2336, %v2568
  %2570 = vmatprep.mubr.f32.mxu0 0.0
  %v2571 = vand.u32 %v1431, 4294901760
  %v2572 = vsub.f32 %v1431, %v2571
  %v2573 = vand.u32 %v2572, 4294901760
  %2574 = vmatmul.mubr.f32.gmra.mxu0 %v2573
  %v2575 = vpop.f32.mrf.mxu0
  %v2576 = vadd.f32 %v2342, %v2575
  %v2577 = vpop.f32.mrf.mxu0
  %v2578 = vadd.f32 %v2344, %v2577
  %2579 = vmatprep.mubr.f32.mxu0 0.0
  %v2580 = vand.u32 %v1432, 4294901760
  %v2581 = vsub.f32 %v1432, %v2580
  %v2582 = vand.u32 %v2581, 4294901760
  %2583 = vmatmul.mubr.f32.gmra.mxu0 %v2582
  %v2584 = vpop.f32.mrf.mxu0
  %v2585 = vadd.f32 %v2350, %v2584
  %v2586 = vpop.f32.mrf.mxu0
  %v2587 = vadd.f32 %v2352, %v2586
  %2588 = vmatprep.mubr.f32.mxu0 0.0
  %v2589 = vand.u32 %v1433, 4294901760
  %v2590 = vsub.f32 %v1433, %v2589
  %v2591 = vand.u32 %v2590, 4294901760
  %2592 = vmatmul.mubr.f32.gmra.mxu0 %v2591
  %v2593 = vpop.f32.mrf.mxu0
  %v2594 = vadd.f32 %v2358, %v2593
  %v2595 = vpop.f32.mrf.mxu0
  %v2596 = vadd.f32 %v2360, %v2595
  %2597 = vmatprep.mubr.f32.mxu0 0.0
  %v2598 = vand.u32 %v1434, 4294901760
  %v2599 = vsub.f32 %v1434, %v2598
  %v2600 = vand.u32 %v2599, 4294901760
  %2601 = vmatmul.mubr.f32.gmra.mxu0 %v2600
  %v2602 = vpop.f32.mrf.mxu0
  %v2603 = vadd.f32 %v2366, %v2602
  %v2604 = vpop.f32.mrf.mxu0
  %v2605 = vadd.f32 %v2368, %v2604
  %2606 = vmatprep.mubr.f32.mxu0 0.0
  %v2607 = vand.u32 %v1435, 4294901760
  %v2608 = vsub.f32 %v1435, %v2607
  %v2609 = vand.u32 %v2608, 4294901760
  %2610 = vmatmul.mubr.f32.gmra.mxu0 %v2609
  %v2611 = vpop.f32.mrf.mxu0
  %v2612 = vadd.f32 %v2374, %v2611
  %v2613 = vpop.f32.mrf.mxu0
  %v2614 = vadd.f32 %v2376, %v2613
  %2615 = vmatprep.mubr.f32.mxu0 0.0
  %v2616 = vand.u32 %v1436, 4294901760
  %v2617 = vsub.f32 %v1436, %v2616
  %v2618 = vand.u32 %v2617, 4294901760
  %2619 = vmatmul.mubr.f32.gmra.mxu0 %v2618
  %v2620 = vpop.f32.mrf.mxu0
  %v2621 = vadd.f32 %v2382, %v2620
  %v2622 = vpop.f32.mrf.mxu0
  %v2623 = vadd.f32 %v2384, %v2622
  %2624 = vmatprep.mubr.f32.mxu0 0.0
  %v2625 = vand.u32 %v1437, 4294901760
  %v2626 = vsub.f32 %v1437, %v2625
  %v2627 = vand.u32 %v2626, 4294901760
  %2628 = vmatmul.mubr.f32.gmra.mxu0 %v2627
  %v2629 = vpop.f32.mrf.mxu0
  %v2630 = vadd.f32 %v2390, %v2629
  %v2631 = vpop.f32.mrf.mxu0
  %v2632 = vadd.f32 %v2392, %v2631
  %2633 = vmatprep.mubr.f32.mxu0 0.0
  %v2634 = vand.u32 %v1438, 4294901760
  %v2635 = vsub.f32 %v1438, %v2634
  %v2636 = vand.u32 %v2635, 4294901760
  %2637 = vmatmul.mubr.f32.gmra.mxu0 %v2636
  %v2638 = vpop.f32.mrf.mxu0
  %v2639 = vadd.f32 %v2398, %v2638
  %v2640 = vpop.f32.mrf.mxu0
  %v2641 = vadd.f32 %v2400, %v2640
  %2642 = vdwg.mxu0
  %v2643 = vand.u32 %v1422, 4294901760
  %v2644 = vsub.f32 %v1422, %v2643
  %v2645 = vand.u32 %v2644, 4294901760
  %2646 = vmatprep.subr.mxu0 %v2645
  %v2647 = vand.u32 %v1421, 4294901760
  %v2648 = vsub.f32 %v1421, %v2647
  %v2649 = vand.u32 %v2648, 4294901760
  %2650 = vmatpush1.msra.mxu0 %v2649
  %v2651 = vand.u32 %v1420, 4294901760
  %v2652 = vsub.f32 %v1420, %v2651
  %v2653 = vand.u32 %v2652, 4294901760
  %2654 = vmatprep.subr.mxu0 %v2653
  %v2655 = vand.u32 %v1419, 4294901760
  %v2656 = vsub.f32 %v1419, %v2655
  %v2657 = vand.u32 %v2656, 4294901760
  %2658 = vmatpush1.msra.mxu0 %v2657
  %v2659 = vand.u32 %v1418, 4294901760
  %v2660 = vsub.f32 %v1418, %v2659
  %v2661 = vand.u32 %v2660, 4294901760
  %2662 = vmatprep.subr.mxu0 %v2661
  %v2663 = vand.u32 %v1417, 4294901760
  %v2664 = vsub.f32 %v1417, %v2663
  %v2665 = vand.u32 %v2664, 4294901760
  %2666 = vmatpush1.msra.mxu0 %v2665
  %v2667 = vand.u32 %v1416, 4294901760
  %v2668 = vsub.f32 %v1416, %v2667
  %v2669 = vand.u32 %v2668, 4294901760
  %2670 = vmatprep.subr.mxu0 %v2669
  %v2671 = vand.u32 %v1415, 4294901760
  %v2672 = vsub.f32 %v1415, %v2671
  %v2673 = vand.u32 %v2672, 4294901760
  %2674 = vmatpush1.msra.mxu0 %v2673
  %v2675 = vand.u32 %v1414, 4294901760
  %v2676 = vsub.f32 %v1414, %v2675
  %v2677 = vand.u32 %v2676, 4294901760
  %2678 = vmatprep.subr.mxu0 %v2677
  %v2679 = vand.u32 %v1413, 4294901760
  %v2680 = vsub.f32 %v1413, %v2679
  %v2681 = vand.u32 %v2680, 4294901760
  %2682 = vmatpush1.msra.mxu0 %v2681
  %v2683 = vand.u32 %v1412, 4294901760
  %v2684 = vsub.f32 %v1412, %v2683
  %v2685 = vand.u32 %v2684, 4294901760
  %2686 = vmatprep.subr.mxu0 %v2685
  %v2687 = vand.u32 %v1411, 4294901760
  %v2688 = vsub.f32 %v1411, %v2687
  %v2689 = vand.u32 %v2688, 4294901760
  %2690 = vmatpush1.msra.mxu0 %v2689
  %v2691 = vand.u32 %v1410, 4294901760
  %v2692 = vsub.f32 %v1410, %v2691
  %v2693 = vand.u32 %v2692, 4294901760
  %2694 = vmatprep.subr.mxu0 %v2693
  %v2695 = vand.u32 %v1409, 4294901760
  %v2696 = vsub.f32 %v1409, %v2695
  %v2697 = vand.u32 %v2696, 4294901760
  %2698 = vmatpush1.msra.mxu0 %v2697
  %v2699 = vand.u32 %v1408, 4294901760
  %v2700 = vsub.f32 %v1408, %v2699
  %v2701 = vand.u32 %v2700, 4294901760
  %2702 = vmatprep.subr.mxu0 %v2701
  %v2703 = vand.u32 %v1407, 4294901760
  %v2704 = vsub.f32 %v1407, %v2703
  %v2705 = vand.u32 %v2704, 4294901760
  %2706 = vmatpush1.msra.mxu0 %v2705
  %v2707 = vand.u32 %v1406, 4294901760
  %v2708 = vsub.f32 %v1406, %v2707
  %v2709 = vand.u32 %v2708, 4294901760
  %2710 = vmatprep.subr.mxu0 %v2709
  %v2711 = vand.u32 %v1405, 4294901760
  %v2712 = vsub.f32 %v1405, %v2711
  %v2713 = vand.u32 %v2712, 4294901760
  %2714 = vmatpush1.msra.mxu0 %v2713
  %v2715 = vand.u32 %v1404, 4294901760
  %v2716 = vsub.f32 %v1404, %v2715
  %v2717 = vand.u32 %v2716, 4294901760
  %2718 = vmatprep.subr.mxu0 %v2717
  %v2719 = vand.u32 %v1403, 4294901760
  %v2720 = vsub.f32 %v1403, %v2719
  %v2721 = vand.u32 %v2720, 4294901760
  %2722 = vmatpush1.msra.mxu0 %v2721
  %v2723 = vand.u32 %v1402, 4294901760
  %v2724 = vsub.f32 %v1402, %v2723
  %v2725 = vand.u32 %v2724, 4294901760
  %2726 = vmatprep.subr.mxu0 %v2725
  %v2727 = vand.u32 %v1401, 4294901760
  %v2728 = vsub.f32 %v1401, %v2727
  %v2729 = vand.u32 %v2728, 4294901760
  %2730 = vmatpush1.msra.mxu0 %v2729
  %v2731 = vand.u32 %v1400, 4294901760
  %v2732 = vsub.f32 %v1400, %v2731
  %v2733 = vand.u32 %v2732, 4294901760
  %2734 = vmatprep.subr.mxu0 %v2733
  %v2735 = vand.u32 %v1399, 4294901760
  %v2736 = vsub.f32 %v1399, %v2735
  %v2737 = vand.u32 %v2736, 4294901760
  %2738 = vmatpush1.msra.mxu0 %v2737
  %v2739 = vand.u32 %v1398, 4294901760
  %v2740 = vsub.f32 %v1398, %v2739
  %v2741 = vand.u32 %v2740, 4294901760
  %2742 = vmatprep.subr.mxu0 %v2741
  %v2743 = vand.u32 %v1397, 4294901760
  %v2744 = vsub.f32 %v1397, %v2743
  %v2745 = vand.u32 %v2744, 4294901760
  %2746 = vmatpush1.msra.mxu0 %v2745
  %v2747 = vand.u32 %v1396, 4294901760
  %v2748 = vsub.f32 %v1396, %v2747
  %v2749 = vand.u32 %v2748, 4294901760
  %2750 = vmatprep.subr.mxu0 %v2749
  %v2751 = vand.u32 %v1395, 4294901760
  %v2752 = vsub.f32 %v1395, %v2751
  %v2753 = vand.u32 %v2752, 4294901760
  %2754 = vmatpush1.msra.mxu0 %v2753
  %v2755 = vand.u32 %v1394, 4294901760
  %v2756 = vsub.f32 %v1394, %v2755
  %v2757 = vand.u32 %v2756, 4294901760
  %2758 = vmatprep.subr.mxu0 %v2757
  %v2759 = vand.u32 %v1393, 4294901760
  %v2760 = vsub.f32 %v1393, %v2759
  %v2761 = vand.u32 %v2760, 4294901760
  %2762 = vmatpush1.msra.mxu0 %v2761
  %v2763 = vand.u32 %v1392, 4294901760
  %v2764 = vsub.f32 %v1392, %v2763
  %v2765 = vand.u32 %v2764, 4294901760
  %2766 = vmatprep.subr.mxu0 %v2765
  %v2767 = vand.u32 %v1391, 4294901760
  %v2768 = vsub.f32 %v1391, %v2767
  %v2769 = vand.u32 %v2768, 4294901760
  %2770 = vmatpush1.msra.mxu0 %v2769
  %2771 = vmatprep.subr.mxu0 0.0
  %2772 = vmatpush2.msra.mxu0 0.0
  %2773 = vmatprep.subr.mxu0 0.0
  %2774 = vmatpush2.msra.mxu0 0.0
  %2775 = vmatprep.subr.mxu0 0.0
  %2776 = vmatpush2.msra.mxu0 0.0
  %2777 = vmatprep.subr.mxu0 0.0
  %2778 = vmatpush2.msra.mxu0 0.0
  %2779 = vmatprep.subr.mxu0 0.0
  %2780 = vmatpush2.msra.mxu0 0.0
  %2781 = vmatprep.subr.mxu0 0.0
  %2782 = vmatpush2.msra.mxu0 0.0
  %2783 = vmatprep.subr.mxu0 0.0
  %2784 = vmatpush2.msra.mxu0 0.0
  %2785 = vmatprep.subr.mxu0 0.0
  %2786 = vmatpush2.msra.mxu0 0.0
  %2787 = vmatprep.subr.mxu0 0.0
  %2788 = vmatpush2.msra.mxu0 0.0
  %2789 = vmatprep.subr.mxu0 0.0
  %2790 = vmatpush2.msra.mxu0 0.0
  %2791 = vmatprep.subr.mxu0 0.0
  %2792 = vmatpush2.msra.mxu0 0.0
  %2793 = vmatprep.subr.mxu0 0.0
  %2794 = vmatpush2.msra.mxu0 0.0
  %2795 = vmatprep.subr.mxu0 0.0
  %2796 = vmatpush2.msra.mxu0 0.0
  %2797 = vmatprep.subr.mxu0 0.0
  %2798 = vmatpush2.msra.mxu0 0.0
  %2799 = vmatprep.subr.mxu0 0.0
  %2800 = vmatpush2.msra.mxu0 0.0
  %2801 = vmatprep.subr.mxu0 0.0
  %2802 = vmatpush2.msra.mxu0 0.0
  %2803 = vmatprep.mubr.f32.mxu0 0.0
  %v2804 = vand.u32 %v1423, 4294901760
  %2805 = vmatmul.mubr.f32.gmra.mxu0 %v2804
  %v2806 = vpop.f32.mrf.mxu0
  %v2807 = vadd.f32 %v2504, %v2806
  %v2808 = vpop.f32.mrf.mxu0
  %v2809 = vadd.f32 %v2506, %v2808
  %2810 = vmatprep.mubr.f32.mxu0 0.0
  %v2811 = vand.u32 %v1424, 4294901760
  %2812 = vmatmul.mubr.f32.gmra.mxu0 %v2811
  %v2813 = vpop.f32.mrf.mxu0
  %v2814 = vadd.f32 %v2513, %v2813
  %v2815 = vpop.f32.mrf.mxu0
  %v2816 = vadd.f32 %v2515, %v2815
  %2817 = vmatprep.mubr.f32.mxu0 0.0
  %v2818 = vand.u32 %v1425, 4294901760
  %2819 = vmatmul.mubr.f32.gmra.mxu0 %v2818
  %v2820 = vpop.f32.mrf.mxu0
  %v2821 = vadd.f32 %v2522, %v2820
  %v2822 = vpop.f32.mrf.mxu0
  %v2823 = vadd.f32 %v2524, %v2822
  %2824 = vmatprep.mubr.f32.mxu0 0.0
  %v2825 = vand.u32 %v1426, 4294901760
  %2826 = vmatmul.mubr.f32.gmra.mxu0 %v2825
  %v2827 = vpop.f32.mrf.mxu0
  %v2828 = vadd.f32 %v2531, %v2827
  %v2829 = vpop.f32.mrf.mxu0
  %v2830 = vadd.f32 %v2533, %v2829
  %2831 = vmatprep.mubr.f32.mxu0 0.0
  %v2832 = vand.u32 %v1427, 4294901760
  %2833 = vmatmul.mubr.f32.gmra.mxu0 %v2832
  %v2834 = vpop.f32.mrf.mxu0
  %v2835 = vadd.f32 %v2540, %v2834
  %v2836 = vpop.f32.mrf.mxu0
  %v2837 = vadd.f32 %v2542, %v2836
  %2838 = vmatprep.mubr.f32.mxu0 0.0
  %v2839 = vand.u32 %v1428, 4294901760
  %2840 = vmatmul.mubr.f32.gmra.mxu0 %v2839
  %v2841 = vpop.f32.mrf.mxu0
  %v2842 = vadd.f32 %v2549, %v2841
  %v2843 = vpop.f32.mrf.mxu0
  %v2844 = vadd.f32 %v2551, %v2843
  %2845 = vmatprep.mubr.f32.mxu0 0.0
  %v2846 = vand.u32 %v1429, 4294901760
  %2847 = vmatmul.mubr.f32.gmra.mxu0 %v2846
  %v2848 = vpop.f32.mrf.mxu0
  %v2849 = vadd.f32 %v2558, %v2848
  %v2850 = vpop.f32.mrf.mxu0
  %v2851 = vadd.f32 %v2560, %v2850
  %2852 = vmatprep.mubr.f32.mxu0 0.0
  %v2853 = vand.u32 %v1430, 4294901760
  %2854 = vmatmul.mubr.f32.gmra.mxu0 %v2853
  %v2855 = vpop.f32.mrf.mxu0
  %v2856 = vadd.f32 %v2567, %v2855
  %v2857 = vpop.f32.mrf.mxu0
  %v2858 = vadd.f32 %v2569, %v2857
  %2859 = vmatprep.mubr.f32.mxu0 0.0
  %v2860 = vand.u32 %v1431, 4294901760
  %2861 = vmatmul.mubr.f32.gmra.mxu0 %v2860
  %v2862 = vpop.f32.mrf.mxu0
  %v2863 = vadd.f32 %v2576, %v2862
  %v2864 = vpop.f32.mrf.mxu0
  %v2865 = vadd.f32 %v2578, %v2864
  %2866 = vmatprep.mubr.f32.mxu0 0.0
  %v2867 = vand.u32 %v1432, 4294901760
  %2868 = vmatmul.mubr.f32.gmra.mxu0 %v2867
  %v2869 = vpop.f32.mrf.mxu0
  %v2870 = vadd.f32 %v2585, %v2869
  %v2871 = vpop.f32.mrf.mxu0
  %v2872 = vadd.f32 %v2587, %v2871
  %2873 = vmatprep.mubr.f32.mxu0 0.0
  %v2874 = vand.u32 %v1433, 4294901760
  %2875 = vmatmul.mubr.f32.gmra.mxu0 %v2874
  %v2876 = vpop.f32.mrf.mxu0
  %v2877 = vadd.f32 %v2594, %v2876
  %v2878 = vpop.f32.mrf.mxu0
  %v2879 = vadd.f32 %v2596, %v2878
  %2880 = vmatprep.mubr.f32.mxu0 0.0
  %v2881 = vand.u32 %v1434, 4294901760
  %2882 = vmatmul.mubr.f32.gmra.mxu0 %v2881
  %v2883 = vpop.f32.mrf.mxu0
  %v2884 = vadd.f32 %v2603, %v2883
  %v2885 = vpop.f32.mrf.mxu0
  %v2886 = vadd.f32 %v2605, %v2885
  %2887 = vmatprep.mubr.f32.mxu0 0.0
  %v2888 = vand.u32 %v1435, 4294901760
  %2889 = vmatmul.mubr.f32.gmra.mxu0 %v2888
  %v2890 = vpop.f32.mrf.mxu0
  %v2891 = vadd.f32 %v2612, %v2890
  %v2892 = vpop.f32.mrf.mxu0
  %v2893 = vadd.f32 %v2614, %v2892
  %2894 = vmatprep.mubr.f32.mxu0 0.0
  %v2895 = vand.u32 %v1436, 4294901760
  %2896 = vmatmul.mubr.f32.gmra.mxu0 %v2895
  %v2897 = vpop.f32.mrf.mxu0
  %v2898 = vadd.f32 %v2621, %v2897
  %v2899 = vpop.f32.mrf.mxu0
  %v2900 = vadd.f32 %v2623, %v2899
  %2901 = vmatprep.mubr.f32.mxu0 0.0
  %v2902 = vand.u32 %v1437, 4294901760
  %2903 = vmatmul.mubr.f32.gmra.mxu0 %v2902
  %v2904 = vpop.f32.mrf.mxu0
  %v2905 = vadd.f32 %v2630, %v2904
  %v2906 = vpop.f32.mrf.mxu0
  %v2907 = vadd.f32 %v2632, %v2906
  %2908 = vmatprep.mubr.f32.mxu0 0.0
  %v2909 = vand.u32 %v1438, 4294901760
  %2910 = vmatmul.mubr.f32.gmra.mxu0 %v2909
  %v2911 = vpop.f32.mrf.mxu0
  %v2912 = vadd.f32 %v2639, %v2911
  %v2913 = vpop.f32.mrf.mxu0
  %v2914 = vadd.f32 %v2641, %v2913
  %2915 = vdwg.mxu0
  %v2916 = vand.u32 %v1422, 4294901760
  %2917 = vmatprep.subr.mxu0 %v2916
  %v2918 = vand.u32 %v1421, 4294901760
  %2919 = vmatpush1.msra.mxu0 %v2918
  %v2920 = vand.u32 %v1420, 4294901760
  %2921 = vmatprep.subr.mxu0 %v2920
  %v2922 = vand.u32 %v1419, 4294901760
  %2923 = vmatpush1.msra.mxu0 %v2922
  %v2924 = vand.u32 %v1418, 4294901760
  %2925 = vmatprep.subr.mxu0 %v2924
  %v2926 = vand.u32 %v1417, 4294901760
  %2927 = vmatpush1.msra.mxu0 %v2926
  %v2928 = vand.u32 %v1416, 4294901760
  %2929 = vmatprep.subr.mxu0 %v2928
  %v2930 = vand.u32 %v1415, 4294901760
  %2931 = vmatpush1.msra.mxu0 %v2930
  %v2932 = vand.u32 %v1414, 4294901760
  %2933 = vmatprep.subr.mxu0 %v2932
  %v2934 = vand.u32 %v1413, 4294901760
  %2935 = vmatpush1.msra.mxu0 %v2934
  %v2936 = vand.u32 %v1412, 4294901760
  %2937 = vmatprep.subr.mxu0 %v2936
  %v2938 = vand.u32 %v1411, 4294901760
  %2939 = vmatpush1.msra.mxu0 %v2938
  %v2940 = vand.u32 %v1410, 4294901760
  %2941 = vmatprep.subr.mxu0 %v2940
  %v2942 = vand.u32 %v1409, 4294901760
  %2943 = vmatpush1.msra.mxu0 %v2942
  %v2944 = vand.u32 %v1408, 4294901760
  %2945 = vmatprep.subr.mxu0 %v2944
  %v2946 = vand.u32 %v1407, 4294901760
  %2947 = vmatpush1.msra.mxu0 %v2946
  %v2948 = vand.u32 %v1406, 4294901760
  %2949 = vmatprep.subr.mxu0 %v2948
  %v2950 = vand.u32 %v1405, 4294901760
  %2951 = vmatpush1.msra.mxu0 %v2950
  %v2952 = vand.u32 %v1404, 4294901760
  %2953 = vmatprep.subr.mxu0 %v2952
  %v2954 = vand.u32 %v1403, 4294901760
  %2955 = vmatpush1.msra.mxu0 %v2954
  %v2956 = vand.u32 %v1402, 4294901760
  %2957 = vmatprep.subr.mxu0 %v2956
  %v2958 = vand.u32 %v1401, 4294901760
  %2959 = vmatpush1.msra.mxu0 %v2958
  %v2960 = vand.u32 %v1400, 4294901760
  %2961 = vmatprep.subr.mxu0 %v2960
  %v2962 = vand.u32 %v1399, 4294901760
  %2963 = vmatpush1.msra.mxu0 %v2962
  %v2964 = vand.u32 %v1398, 4294901760
  %2965 = vmatprep.subr.mxu0 %v2964
  %v2966 = vand.u32 %v1397, 4294901760
  %2967 = vmatpush1.msra.mxu0 %v2966
  %v2968 = vand.u32 %v1396, 4294901760
  %2969 = vmatprep.subr.mxu0 %v2968
  %v2970 = vand.u32 %v1395, 4294901760
  %2971 = vmatpush1.msra.mxu0 %v2970
  %v2972 = vand.u32 %v1394, 4294901760
  %2973 = vmatprep.subr.mxu0 %v2972
  %v2974 = vand.u32 %v1393, 4294901760
  %2975 = vmatpush1.msra.mxu0 %v2974
  %v2976 = vand.u32 %v1392, 4294901760
  %2977 = vmatprep.subr.mxu0 %v2976
  %v2978 = vand.u32 %v1391, 4294901760
  %2979 = vmatpush1.msra.mxu0 %v2978
  %2980 = vmatprep.subr.mxu0 0.0
  %2981 = vmatpush2.msra.mxu0 0.0
  %2982 = vmatprep.subr.mxu0 0.0
  %2983 = vmatpush2.msra.mxu0 0.0
  %2984 = vmatprep.subr.mxu0 0.0
  %2985 = vmatpush2.msra.mxu0 0.0
  %2986 = vmatprep.subr.mxu0 0.0
  %2987 = vmatpush2.msra.mxu0 0.0
  %2988 = vmatprep.subr.mxu0 0.0
  %2989 = vmatpush2.msra.mxu0 0.0
  %2990 = vmatprep.subr.mxu0 0.0
  %2991 = vmatpush2.msra.mxu0 0.0
  %2992 = vmatprep.subr.mxu0 0.0
  %2993 = vmatpush2.msra.mxu0 0.0
  %2994 = vmatprep.subr.mxu0 0.0
  %2995 = vmatpush2.msra.mxu0 0.0
  %2996 = vmatprep.subr.mxu0 0.0
  %2997 = vmatpush2.msra.mxu0 0.0
  %2998 = vmatprep.subr.mxu0 0.0
  %2999 = vmatpush2.msra.mxu0 0.0
  %3000 = vmatprep.subr.mxu0 0.0
  %3001 = vmatpush2.msra.mxu0 0.0
  %3002 = vmatprep.subr.mxu0 0.0
  %3003 = vmatpush2.msra.mxu0 0.0
  %3004 = vmatprep.subr.mxu0 0.0
  %3005 = vmatpush2.msra.mxu0 0.0
  %3006 = vmatprep.subr.mxu0 0.0
  %3007 = vmatpush2.msra.mxu0 0.0
  %3008 = vmatprep.subr.mxu0 0.0
  %3009 = vmatpush2.msra.mxu0 0.0
  %3010 = vmatprep.subr.mxu0 0.0
  %3011 = vmatpush2.msra.mxu0 0.0
  %3012 = vmatprep.mubr.f32.mxu0 0.0
  %v3013 = vand.u32 %v1423, 4294901760
  %3014 = vmatmul.mubr.f32.gmra.mxu0 %v3013
  %v3015 = vpop.f32.mrf.mxu0
  %v3016 = vadd.f32 %v2807, %v3015
  %v3017 = vpop.f32.mrf.mxu0
  %v3018 = vadd.f32 %v2809, %v3017
  %3019 = vmatprep.mubr.f32.mxu0 0.0
  %v3020 = vand.u32 %v1424, 4294901760
  %3021 = vmatmul.mubr.f32.gmra.mxu0 %v3020
  %v3022 = vpop.f32.mrf.mxu0
  %v3023 = vadd.f32 %v2814, %v3022
  %v3024 = vpop.f32.mrf.mxu0
  %v3025 = vadd.f32 %v2816, %v3024
  %3026 = vmatprep.mubr.f32.mxu0 0.0
  %v3027 = vand.u32 %v1425, 4294901760
  %3028 = vmatmul.mubr.f32.gmra.mxu0 %v3027
  %v3029 = vpop.f32.mrf.mxu0
  %v3030 = vadd.f32 %v2821, %v3029
  %v3031 = vpop.f32.mrf.mxu0
  %v3032 = vadd.f32 %v2823, %v3031
  %3033 = vmatprep.mubr.f32.mxu0 0.0
  %v3034 = vand.u32 %v1426, 4294901760
  %3035 = vmatmul.mubr.f32.gmra.mxu0 %v3034
  %v3036 = vpop.f32.mrf.mxu0
  %v3037 = vadd.f32 %v2828, %v3036
  %v3038 = vpop.f32.mrf.mxu0
  %v3039 = vadd.f32 %v2830, %v3038
  %3040 = vmatprep.mubr.f32.mxu0 0.0
  %v3041 = vand.u32 %v1427, 4294901760
  %3042 = vmatmul.mubr.f32.gmra.mxu0 %v3041
  %v3043 = vpop.f32.mrf.mxu0
  %v3044 = vadd.f32 %v2835, %v3043
  %v3045 = vpop.f32.mrf.mxu0
  %v3046 = vadd.f32 %v2837, %v3045
  %3047 = vmatprep.mubr.f32.mxu0 0.0
  %v3048 = vand.u32 %v1428, 4294901760
  %3049 = vmatmul.mubr.f32.gmra.mxu0 %v3048
  %v3050 = vpop.f32.mrf.mxu0
  %v3051 = vadd.f32 %v2842, %v3050
  %v3052 = vpop.f32.mrf.mxu0
  %v3053 = vadd.f32 %v2844, %v3052
  %3054 = vmatprep.mubr.f32.mxu0 0.0
  %v3055 = vand.u32 %v1429, 4294901760
  %3056 = vmatmul.mubr.f32.gmra.mxu0 %v3055
  %v3057 = vpop.f32.mrf.mxu0
  %v3058 = vadd.f32 %v2849, %v3057
  %v3059 = vpop.f32.mrf.mxu0
  %v3060 = vadd.f32 %v2851, %v3059
  %3061 = vmatprep.mubr.f32.mxu0 0.0
  %v3062 = vand.u32 %v1430, 4294901760
  %3063 = vmatmul.mubr.f32.gmra.mxu0 %v3062
  %v3064 = vpop.f32.mrf.mxu0
  %v3065 = vadd.f32 %v2856, %v3064
  %v3066 = vpop.f32.mrf.mxu0
  %v3067 = vadd.f32 %v2858, %v3066
  %3068 = vmatprep.mubr.f32.mxu0 0.0
  %v3069 = vand.u32 %v1431, 4294901760
  %3070 = vmatmul.mubr.f32.gmra.mxu0 %v3069
  %v3071 = vpop.f32.mrf.mxu0
  %v3072 = vadd.f32 %v2863, %v3071
  %v3073 = vpop.f32.mrf.mxu0
  %v3074 = vadd.f32 %v2865, %v3073
  %3075 = vmatprep.mubr.f32.mxu0 0.0
  %v3076 = vand.u32 %v1432, 4294901760
  %3077 = vmatmul.mubr.f32.gmra.mxu0 %v3076
  %v3078 = vpop.f32.mrf.mxu0
  %v3079 = vadd.f32 %v2870, %v3078
  %v3080 = vpop.f32.mrf.mxu0
  %v3081 = vadd.f32 %v2872, %v3080
  %3082 = vmatprep.mubr.f32.mxu0 0.0
  %v3083 = vand.u32 %v1433, 4294901760
  %3084 = vmatmul.mubr.f32.gmra.mxu0 %v3083
  %v3085 = vpop.f32.mrf.mxu0
  %v3086 = vadd.f32 %v2877, %v3085
  %v3087 = vpop.f32.mrf.mxu0
  %v3088 = vadd.f32 %v2879, %v3087
  %3089 = vmatprep.mubr.f32.mxu0 0.0
  %v3090 = vand.u32 %v1434, 4294901760
  %3091 = vmatmul.mubr.f32.gmra.mxu0 %v3090
  %v3092 = vpop.f32.mrf.mxu0
  %v3093 = vadd.f32 %v2884, %v3092
  %v3094 = vpop.f32.mrf.mxu0
  %v3095 = vadd.f32 %v2886, %v3094
  %3096 = vmatprep.mubr.f32.mxu0 0.0
  %v3097 = vand.u32 %v1435, 4294901760
  %3098 = vmatmul.mubr.f32.gmra.mxu0 %v3097
  %v3099 = vpop.f32.mrf.mxu0
  %v3100 = vadd.f32 %v2891, %v3099
  %v3101 = vpop.f32.mrf.mxu0
  %v3102 = vadd.f32 %v2893, %v3101
  %3103 = vmatprep.mubr.f32.mxu0 0.0
  %v3104 = vand.u32 %v1436, 4294901760
  %3105 = vmatmul.mubr.f32.gmra.mxu0 %v3104
  %v3106 = vpop.f32.mrf.mxu0
  %v3107 = vadd.f32 %v2898, %v3106
  %v3108 = vpop.f32.mrf.mxu0
  %v3109 = vadd.f32 %v2900, %v3108
  %3110 = vmatprep.mubr.f32.mxu0 0.0
  %v3111 = vand.u32 %v1437, 4294901760
  %3112 = vmatmul.mubr.f32.gmra.mxu0 %v3111
  %v3113 = vpop.f32.mrf.mxu0
  %v3114 = vadd.f32 %v2905, %v3113
  %v3115 = vpop.f32.mrf.mxu0
  %v3116 = vadd.f32 %v2907, %v3115
  %3117 = vmatprep.mubr.f32.mxu0 0.0
  %v3118 = vand.u32 %v1438, 4294901760
  %3119 = vmatmul.mubr.f32.gmra.mxu0 %v3118
  %v3120 = vpop.f32.mrf.mxu0
  %v3121 = vadd.f32 %v2912, %v3120
  %v3122 = vpop.f32.mrf.mxu0
  %v3123 = vadd.f32 %v2914, %v3122
  %3124 = vdwg.mxu0
  %v3125 = vmax.f32 %v3016, 0.0
  %v3126 = vmax.f32 %v3018, 0.0
  %v3127 = vmax.f32 %v3023, 0.0
  %v3128 = vmax.f32 %v3025, 0.0
  %v3129 = vmax.f32 %v3030, 0.0
  %v3130 = vmax.f32 %v3032, 0.0
  %v3131 = vmax.f32 %v3037, 0.0
  %v3132 = vmax.f32 %v3039, 0.0
  %v3133 = vmax.f32 %v3044, 0.0
  %v3134 = vmax.f32 %v3046, 0.0
  %v3135 = vmax.f32 %v3051, 0.0
  %v3136 = vmax.f32 %v3053, 0.0
  %v3137 = vmax.f32 %v3058, 0.0
  %v3138 = vmax.f32 %v3060, 0.0
  %v3139 = vmax.f32 %v3065, 0.0
  %v3140 = vmax.f32 %v3067, 0.0
  %v3141 = vmax.f32 %v3072, 0.0
  %v3142 = vmax.f32 %v3074, 0.0
  %v3143 = vmax.f32 %v3079, 0.0
  %v3144 = vmax.f32 %v3081, 0.0
  %v3145 = vmax.f32 %v3086, 0.0
  %v3146 = vmax.f32 %v3088, 0.0
  %v3147 = vmax.f32 %v3093, 0.0
  %v3148 = vmax.f32 %v3095, 0.0
  %v3149 = vmax.f32 %v3100, 0.0
  %v3150 = vmax.f32 %v3102, 0.0
  %v3151 = vmax.f32 %v3107, 0.0
  %v3152 = vmax.f32 %v3109, 0.0
  %v3153 = vmax.f32 %v3114, 0.0
  %v3154 = vmax.f32 %v3116, 0.0
  %v3155 = vmax.f32 %v3121, 0.0
  %v3156 = vmax.f32 %v3123, 0.0
  %v3157 = vld [vmem:[%s5] sm:$0xff]
  %v3158 = vand.u32 %v3156, 4294901760
  %3159 = vmatprep.subr.mxu0 %v3158
  %v3160 = vand.u32 %v3155, 4294901760
  %3161 = vmatpush1.msra.mxu0 %v3160
  %v3162 = vand.u32 %v3154, 4294901760
  %3163 = vmatprep.subr.mxu0 %v3162
  %v3164 = vand.u32 %v3153, 4294901760
  %3165 = vmatpush1.msra.mxu0 %v3164
  %v3166 = vand.u32 %v3152, 4294901760
  %3167 = vmatprep.subr.mxu0 %v3166
  %v3168 = vand.u32 %v3151, 4294901760
  %3169 = vmatpush1.msra.mxu0 %v3168
  %v3170 = vand.u32 %v3150, 4294901760
  %3171 = vmatprep.subr.mxu0 %v3170
  %v3172 = vand.u32 %v3149, 4294901760
  %3173 = vmatpush1.msra.mxu0 %v3172
  %v3174 = vand.u32 %v3148, 4294901760
  %3175 = vmatprep.subr.mxu0 %v3174
  %v3176 = vand.u32 %v3147, 4294901760
  %3177 = vmatpush1.msra.mxu0 %v3176
  %v3178 = vand.u32 %v3146, 4294901760
  %3179 = vmatprep.subr.mxu0 %v3178
  %v3180 = vand.u32 %v3145, 4294901760
  %3181 = vmatpush1.msra.mxu0 %v3180
  %v3182 = vand.u32 %v3144, 4294901760
  %3183 = vmatprep.subr.mxu0 %v3182
  %v3184 = vand.u32 %v3143, 4294901760
  %3185 = vmatpush1.msra.mxu0 %v3184
  %v3186 = vand.u32 %v3142, 4294901760
  %3187 = vmatprep.subr.mxu0 %v3186
  %v3188 = vand.u32 %v3141, 4294901760
  %3189 = vmatpush1.msra.mxu0 %v3188
  %v3190 = vand.u32 %v3140, 4294901760
  %3191 = vmatprep.subr.mxu0 %v3190
  %v3192 = vand.u32 %v3139, 4294901760
  %3193 = vmatpush1.msra.mxu0 %v3192
  %v3194 = vand.u32 %v3138, 4294901760
  %3195 = vmatprep.subr.mxu0 %v3194
  %v3196 = vand.u32 %v3137, 4294901760
  %3197 = vmatpush1.msra.mxu0 %v3196
  %v3198 = vand.u32 %v3136, 4294901760
  %3199 = vmatprep.subr.mxu0 %v3198
  %v3200 = vand.u32 %v3135, 4294901760
  %3201 = vmatpush1.msra.mxu0 %v3200
  %v3202 = vand.u32 %v3134, 4294901760
  %3203 = vmatprep.subr.mxu0 %v3202
  %v3204 = vand.u32 %v3133, 4294901760
  %3205 = vmatpush1.msra.mxu0 %v3204
  %v3206 = vand.u32 %v3132, 4294901760
  %3207 = vmatprep.subr.mxu0 %v3206
  %v3208 = vand.u32 %v3131, 4294901760
  %3209 = vmatpush1.msra.mxu0 %v3208
  %v3210 = vand.u32 %v3130, 4294901760
  %3211 = vmatprep.subr.mxu0 %v3210
  %v3212 = vand.u32 %v3129, 4294901760
  %3213 = vmatpush1.msra.mxu0 %v3212
  %v3214 = vand.u32 %v3128, 4294901760
  %3215 = vmatprep.subr.mxu0 %v3214
  %v3216 = vand.u32 %v3127, 4294901760
  %3217 = vmatpush1.msra.mxu0 %v3216
  %v3218 = vand.u32 %v3126, 4294901760
  %3219 = vmatprep.subr.mxu0 %v3218
  %v3220 = vand.u32 %v3125, 4294901760
  %3221 = vmatpush1.msra.mxu0 %v3220
  %3222 = vmatprep.subr.mxu0 0.0
  %3223 = vmatpush2.msra.mxu0 0.0
  %3224 = vmatprep.subr.mxu0 0.0
  %3225 = vmatpush2.msra.mxu0 0.0
  %3226 = vmatprep.subr.mxu0 0.0
  %3227 = vmatpush2.msra.mxu0 0.0
  %3228 = vmatprep.subr.mxu0 0.0
  %3229 = vmatpush2.msra.mxu0 0.0
  %3230 = vmatprep.subr.mxu0 0.0
  %3231 = vmatpush2.msra.mxu0 0.0
  %3232 = vmatprep.subr.mxu0 0.0
  %3233 = vmatpush2.msra.mxu0 0.0
  %3234 = vmatprep.subr.mxu0 0.0
  %3235 = vmatpush2.msra.mxu0 0.0
  %3236 = vmatprep.subr.mxu0 0.0
  %3237 = vmatpush2.msra.mxu0 0.0
  %3238 = vmatprep.subr.mxu0 0.0
  %3239 = vmatpush2.msra.mxu0 0.0
  %3240 = vmatprep.subr.mxu0 0.0
  %3241 = vmatpush2.msra.mxu0 0.0
  %3242 = vmatprep.subr.mxu0 0.0
  %3243 = vmatpush2.msra.mxu0 0.0
  %3244 = vmatprep.subr.mxu0 0.0
  %3245 = vmatpush2.msra.mxu0 0.0
  %3246 = vmatprep.subr.mxu0 0.0
  %3247 = vmatpush2.msra.mxu0 0.0
  %3248 = vmatprep.subr.mxu0 0.0
  %3249 = vmatpush2.msra.mxu0 0.0
  %3250 = vmatprep.subr.mxu0 0.0
  %3251 = vmatpush2.msra.mxu0 0.0
  %3252 = vmatprep.subr.mxu0 0.0
  %3253 = vmatpush2.msra.mxu0 0.0
  %3254 = vmatprep.mubr.f32.mxu0 0.0
  %v3255 = vand.u32 %v3157, 4294901760
  %v3256 = vsub.f32 %v3157, %v3255
  %v3257 = vand.u32 %v3256, 4294901760
  %v3258 = vsub.f32 %v3256, %v3257
  %v3259 = vand.u32 %v3258, 4294901760
  %3260 = vmatmul.mubr.f32.gmra.mxu0 %v3259
  %v3261 = vpop.f32.mrf.mxu0
  %v3262 = vadd.f32 0.0, %v3261
  %v3263 = vpop.f32.mrf.mxu0
  %v3264 = vadd.f32 0.0, %v3263
  %3265 = vdwg.mxu0
  %v3266 = vand.u32 %v3156, 4294901760
  %v3267 = vsub.f32 %v3156, %v3266
  %v3268 = vand.u32 %v3267, 4294901760
  %v3269 = vsub.f32 %v3267, %v3268
  %v3270 = vand.u32 %v3269, 4294901760
  %3271 = vmatprep.subr.mxu0 %v3270
  %v3272 = vand.u32 %v3155, 4294901760
  %v3273 = vsub.f32 %v3155, %v3272
  %v3274 = vand.u32 %v3273, 4294901760
  %v3275 = vsub.f32 %v3273, %v3274
  %v3276 = vand.u32 %v3275, 4294901760
  %3277 = vmatpush1.msra.mxu0 %v3276
  %v3278 = vand.u32 %v3154, 4294901760
  %v3279 = vsub.f32 %v3154, %v3278
  %v3280 = vand.u32 %v3279, 4294901760
  %v3281 = vsub.f32 %v3279, %v3280
  %v3282 = vand.u32 %v3281, 4294901760
  %3283 = vmatprep.subr.mxu0 %v3282
  %v3284 = vand.u32 %v3153, 4294901760
  %v3285 = vsub.f32 %v3153, %v3284
  %v3286 = vand.u32 %v3285, 4294901760
  %v3287 = vsub.f32 %v3285, %v3286
  %v3288 = vand.u32 %v3287, 4294901760
  %3289 = vmatpush1.msra.mxu0 %v3288
  %v3290 = vand.u32 %v3152, 4294901760
  %v3291 = vsub.f32 %v3152, %v3290
  %v3292 = vand.u32 %v3291, 4294901760
  %v3293 = vsub.f32 %v3291, %v3292
  %v3294 = vand.u32 %v3293, 4294901760
  %3295 = vmatprep.subr.mxu0 %v3294
  %v3296 = vand.u32 %v3151, 4294901760
  %v3297 = vsub.f32 %v3151, %v3296
  %v3298 = vand.u32 %v3297, 4294901760
  %v3299 = vsub.f32 %v3297, %v3298
  %v3300 = vand.u32 %v3299, 4294901760
  %3301 = vmatpush1.msra.mxu0 %v3300
  %v3302 = vand.u32 %v3150, 4294901760
  %v3303 = vsub.f32 %v3150, %v3302
  %v3304 = vand.u32 %v3303, 4294901760
  %v3305 = vsub.f32 %v3303, %v3304
  %v3306 = vand.u32 %v3305, 4294901760
  %3307 = vmatprep.subr.mxu0 %v3306
  %v3308 = vand.u32 %v3149, 4294901760
  %v3309 = vsub.f32 %v3149, %v3308
  %v3310 = vand.u32 %v3309, 4294901760
  %v3311 = vsub.f32 %v3309, %v3310
  %v3312 = vand.u32 %v3311, 4294901760
  %3313 = vmatpush1.msra.mxu0 %v3312
  %v3314 = vand.u32 %v3148, 4294901760
  %v3315 = vsub.f32 %v3148, %v3314
  %v3316 = vand.u32 %v3315, 4294901760
  %v3317 = vsub.f32 %v3315, %v3316
  %v3318 = vand.u32 %v3317, 4294901760
  %3319 = vmatprep.subr.mxu0 %v3318
  %v3320 = vand.u32 %v3147, 4294901760
  %v3321 = vsub.f32 %v3147, %v3320
  %v3322 = vand.u32 %v3321, 4294901760
  %v3323 = vsub.f32 %v3321, %v3322
  %v3324 = vand.u32 %v3323, 4294901760
  %3325 = vmatpush1.msra.mxu0 %v3324
  %v3326 = vand.u32 %v3146, 4294901760
  %v3327 = vsub.f32 %v3146, %v3326
  %v3328 = vand.u32 %v3327, 4294901760
  %v3329 = vsub.f32 %v3327, %v3328
  %v3330 = vand.u32 %v3329, 4294901760
  %3331 = vmatprep.subr.mxu0 %v3330
  %v3332 = vand.u32 %v3145, 4294901760
  %v3333 = vsub.f32 %v3145, %v3332
  %v3334 = vand.u32 %v3333, 4294901760
  %v3335 = vsub.f32 %v3333, %v3334
  %v3336 = vand.u32 %v3335, 4294901760
  %3337 = vmatpush1.msra.mxu0 %v3336
  %v3338 = vand.u32 %v3144, 4294901760
  %v3339 = vsub.f32 %v3144, %v3338
  %v3340 = vand.u32 %v3339, 4294901760
  %v3341 = vsub.f32 %v3339, %v3340
  %v3342 = vand.u32 %v3341, 4294901760
  %3343 = vmatprep.subr.mxu0 %v3342
  %v3344 = vand.u32 %v3143, 4294901760
  %v3345 = vsub.f32 %v3143, %v3344
  %v3346 = vand.u32 %v3345, 4294901760
  %v3347 = vsub.f32 %v3345, %v3346
  %v3348 = vand.u32 %v3347, 4294901760
  %3349 = vmatpush1.msra.mxu0 %v3348
  %v3350 = vand.u32 %v3142, 4294901760
  %v3351 = vsub.f32 %v3142, %v3350
  %v3352 = vand.u32 %v3351, 4294901760
  %v3353 = vsub.f32 %v3351, %v3352
  %v3354 = vand.u32 %v3353, 4294901760
  %3355 = vmatprep.subr.mxu0 %v3354
  %v3356 = vand.u32 %v3141, 4294901760
  %v3357 = vsub.f32 %v3141, %v3356
  %v3358 = vand.u32 %v3357, 4294901760
  %v3359 = vsub.f32 %v3357, %v3358
  %v3360 = vand.u32 %v3359, 4294901760
  %3361 = vmatpush1.msra.mxu0 %v3360
  %v3362 = vand.u32 %v3140, 4294901760
  %v3363 = vsub.f32 %v3140, %v3362
  %v3364 = vand.u32 %v3363, 4294901760
  %v3365 = vsub.f32 %v3363, %v3364
  %v3366 = vand.u32 %v3365, 4294901760
  %3367 = vmatprep.subr.mxu0 %v3366
  %v3368 = vand.u32 %v3139, 4294901760
  %v3369 = vsub.f32 %v3139, %v3368
  %v3370 = vand.u32 %v3369, 4294901760
  %v3371 = vsub.f32 %v3369, %v3370
  %v3372 = vand.u32 %v3371, 4294901760
  %3373 = vmatpush1.msra.mxu0 %v3372
  %v3374 = vand.u32 %v3138, 4294901760
  %v3375 = vsub.f32 %v3138, %v3374
  %v3376 = vand.u32 %v3375, 4294901760
  %v3377 = vsub.f32 %v3375, %v3376
  %v3378 = vand.u32 %v3377, 4294901760
  %3379 = vmatprep.subr.mxu0 %v3378
  %v3380 = vand.u32 %v3137, 4294901760
  %v3381 = vsub.f32 %v3137, %v3380
  %v3382 = vand.u32 %v3381, 4294901760
  %v3383 = vsub.f32 %v3381, %v3382
  %v3384 = vand.u32 %v3383, 4294901760
  %3385 = vmatpush1.msra.mxu0 %v3384
  %v3386 = vand.u32 %v3136, 4294901760
  %v3387 = vsub.f32 %v3136, %v3386
  %v3388 = vand.u32 %v3387, 4294901760
  %v3389 = vsub.f32 %v3387, %v3388
  %v3390 = vand.u32 %v3389, 4294901760
  %3391 = vmatprep.subr.mxu0 %v3390
  %v3392 = vand.u32 %v3135, 4294901760
  %v3393 = vsub.f32 %v3135, %v3392
  %v3394 = vand.u32 %v3393, 4294901760
  %v3395 = vsub.f32 %v3393, %v3394
  %v3396 = vand.u32 %v3395, 4294901760
  %3397 = vmatpush1.msra.mxu0 %v3396
  %v3398 = vand.u32 %v3134, 4294901760
  %v3399 = vsub.f32 %v3134, %v3398
  %v3400 = vand.u32 %v3399, 4294901760
  %v3401 = vsub.f32 %v3399, %v3400
  %v3402 = vand.u32 %v3401, 4294901760
  %3403 = vmatprep.subr.mxu0 %v3402
  %v3404 = vand.u32 %v3133, 4294901760
  %v3405 = vsub.f32 %v3133, %v3404
  %v3406 = vand.u32 %v3405, 4294901760
  %v3407 = vsub.f32 %v3405, %v3406
  %v3408 = vand.u32 %v3407, 4294901760
  %3409 = vmatpush1.msra.mxu0 %v3408
  %v3410 = vand.u32 %v3132, 4294901760
  %v3411 = vsub.f32 %v3132, %v3410
  %v3412 = vand.u32 %v3411, 4294901760
  %v3413 = vsub.f32 %v3411, %v3412
  %v3414 = vand.u32 %v3413, 4294901760
  %3415 = vmatprep.subr.mxu0 %v3414
  %v3416 = vand.u32 %v3131, 4294901760
  %v3417 = vsub.f32 %v3131, %v3416
  %v3418 = vand.u32 %v3417, 4294901760
  %v3419 = vsub.f32 %v3417, %v3418
  %v3420 = vand.u32 %v3419, 4294901760
  %3421 = vmatpush1.msra.mxu0 %v3420
  %v3422 = vand.u32 %v3130, 4294901760
  %v3423 = vsub.f32 %v3130, %v3422
  %v3424 = vand.u32 %v3423, 4294901760
  %v3425 = vsub.f32 %v3423, %v3424
  %v3426 = vand.u32 %v3425, 4294901760
  %3427 = vmatprep.subr.mxu0 %v3426
  %v3428 = vand.u32 %v3129, 4294901760
  %v3429 = vsub.f32 %v3129, %v3428
  %v3430 = vand.u32 %v3429, 4294901760
  %v3431 = vsub.f32 %v3429, %v3430
  %v3432 = vand.u32 %v3431, 4294901760
  %3433 = vmatpush1.msra.mxu0 %v3432
  %v3434 = vand.u32 %v3128, 4294901760
  %v3435 = vsub.f32 %v3128, %v3434
  %v3436 = vand.u32 %v3435, 4294901760
  %v3437 = vsub.f32 %v3435, %v3436
  %v3438 = vand.u32 %v3437, 4294901760
  %3439 = vmatprep.subr.mxu0 %v3438
  %v3440 = vand.u32 %v3127, 4294901760
  %v3441 = vsub.f32 %v3127, %v3440
  %v3442 = vand.u32 %v3441, 4294901760
  %v3443 = vsub.f32 %v3441, %v3442
  %v3444 = vand.u32 %v3443, 4294901760
  %3445 = vmatpush1.msra.mxu0 %v3444
  %v3446 = vand.u32 %v3126, 4294901760
  %v3447 = vsub.f32 %v3126, %v3446
  %v3448 = vand.u32 %v3447, 4294901760
  %v3449 = vsub.f32 %v3447, %v3448
  %v3450 = vand.u32 %v3449, 4294901760
  %3451 = vmatprep.subr.mxu0 %v3450
  %v3452 = vand.u32 %v3125, 4294901760
  %v3453 = vsub.f32 %v3125, %v3452
  %v3454 = vand.u32 %v3453, 4294901760
  %v3455 = vsub.f32 %v3453, %v3454
  %v3456 = vand.u32 %v3455, 4294901760
  %3457 = vmatpush1.msra.mxu0 %v3456
  %3458 = vmatprep.subr.mxu0 0.0
  %3459 = vmatpush2.msra.mxu0 0.0
  %3460 = vmatprep.subr.mxu0 0.0
  %3461 = vmatpush2.msra.mxu0 0.0
  %3462 = vmatprep.subr.mxu0 0.0
  %3463 = vmatpush2.msra.mxu0 0.0
  %3464 = vmatprep.subr.mxu0 0.0
  %3465 = vmatpush2.msra.mxu0 0.0
  %3466 = vmatprep.subr.mxu0 0.0
  %3467 = vmatpush2.msra.mxu0 0.0
  %3468 = vmatprep.subr.mxu0 0.0
  %3469 = vmatpush2.msra.mxu0 0.0
  %3470 = vmatprep.subr.mxu0 0.0
  %3471 = vmatpush2.msra.mxu0 0.0
  %3472 = vmatprep.subr.mxu0 0.0
  %3473 = vmatpush2.msra.mxu0 0.0
  %3474 = vmatprep.subr.mxu0 0.0
  %3475 = vmatpush2.msra.mxu0 0.0
  %3476 = vmatprep.subr.mxu0 0.0
  %3477 = vmatpush2.msra.mxu0 0.0
  %3478 = vmatprep.subr.mxu0 0.0
  %3479 = vmatpush2.msra.mxu0 0.0
  %3480 = vmatprep.subr.mxu0 0.0
  %3481 = vmatpush2.msra.mxu0 0.0
  %3482 = vmatprep.subr.mxu0 0.0
  %3483 = vmatpush2.msra.mxu0 0.0
  %3484 = vmatprep.subr.mxu0 0.0
  %3485 = vmatpush2.msra.mxu0 0.0
  %3486 = vmatprep.subr.mxu0 0.0
  %3487 = vmatpush2.msra.mxu0 0.0
  %3488 = vmatprep.subr.mxu0 0.0
  %3489 = vmatpush2.msra.mxu0 0.0
  %3490 = vmatprep.mubr.f32.mxu0 0.0
  %v3491 = vand.u32 %v3157, 4294901760
  %3492 = vmatmul.mubr.f32.gmra.mxu0 %v3491
  %v3493 = vpop.f32.mrf.mxu0
  %v3494 = vadd.f32 %v3262, %v3493
  %v3495 = vpop.f32.mrf.mxu0
  %v3496 = vadd.f32 %v3264, %v3495
  %3497 = vdwg.mxu0
  %v3498 = vand.u32 %v3156, 4294901760
  %v3499 = vsub.f32 %v3156, %v3498
  %3500 = vmatprep.subr.mxu0 %v3499
  %v3501 = vand.u32 %v3155, 4294901760
  %v3502 = vsub.f32 %v3155, %v3501
  %3503 = vmatpush1.msra.mxu0 %v3502
  %v3504 = vand.u32 %v3154, 4294901760
  %v3505 = vsub.f32 %v3154, %v3504
  %3506 = vmatprep.subr.mxu0 %v3505
  %v3507 = vand.u32 %v3153, 4294901760
  %v3508 = vsub.f32 %v3153, %v3507
  %3509 = vmatpush1.msra.mxu0 %v3508
  %v3510 = vand.u32 %v3152, 4294901760
  %v3511 = vsub.f32 %v3152, %v3510
  %3512 = vmatprep.subr.mxu0 %v3511
  %v3513 = vand.u32 %v3151, 4294901760
  %v3514 = vsub.f32 %v3151, %v3513
  %3515 = vmatpush1.msra.mxu0 %v3514
  %v3516 = vand.u32 %v3150, 4294901760
  %v3517 = vsub.f32 %v3150, %v3516
  %3518 = vmatprep.subr.mxu0 %v3517
  %v3519 = vand.u32 %v3149, 4294901760
  %v3520 = vsub.f32 %v3149, %v3519
  %3521 = vmatpush1.msra.mxu0 %v3520
  %v3522 = vand.u32 %v3148, 4294901760
  %v3523 = vsub.f32 %v3148, %v3522
  %3524 = vmatprep.subr.mxu0 %v3523
  %v3525 = vand.u32 %v3147, 4294901760
  %v3526 = vsub.f32 %v3147, %v3525
  %3527 = vmatpush1.msra.mxu0 %v3526
  %v3528 = vand.u32 %v3146, 4294901760
  %v3529 = vsub.f32 %v3146, %v3528
  %3530 = vmatprep.subr.mxu0 %v3529
  %v3531 = vand.u32 %v3145, 4294901760
  %v3532 = vsub.f32 %v3145, %v3531
  %3533 = vmatpush1.msra.mxu0 %v3532
  %v3534 = vand.u32 %v3144, 4294901760
  %v3535 = vsub.f32 %v3144, %v3534
  %3536 = vmatprep.subr.mxu0 %v3535
  %v3537 = vand.u32 %v3143, 4294901760
  %v3538 = vsub.f32 %v3143, %v3537
  %3539 = vmatpush1.msra.mxu0 %v3538
  %v3540 = vand.u32 %v3142, 4294901760
  %v3541 = vsub.f32 %v3142, %v3540
  %3542 = vmatprep.subr.mxu0 %v3541
  %v3543 = vand.u32 %v3141, 4294901760
  %v3544 = vsub.f32 %v3141, %v3543
  %3545 = vmatpush1.msra.mxu0 %v3544
  %v3546 = vand.u32 %v3140, 4294901760
  %v3547 = vsub.f32 %v3140, %v3546
  %3548 = vmatprep.subr.mxu0 %v3547
  %v3549 = vand.u32 %v3139, 4294901760
  %v3550 = vsub.f32 %v3139, %v3549
  %3551 = vmatpush1.msra.mxu0 %v3550
  %v3552 = vand.u32 %v3138, 4294901760
  %v3553 = vsub.f32 %v3138, %v3552
  %3554 = vmatprep.subr.mxu0 %v3553
  %v3555 = vand.u32 %v3137, 4294901760
  %v3556 = vsub.f32 %v3137, %v3555
  %3557 = vmatpush1.msra.mxu0 %v3556
  %v3558 = vand.u32 %v3136, 4294901760
  %v3559 = vsub.f32 %v3136, %v3558
  %3560 = vmatprep.subr.mxu0 %v3559
  %v3561 = vand.u32 %v3135, 4294901760
  %v3562 = vsub.f32 %v3135, %v3561
  %3563 = vmatpush1.msra.mxu0 %v3562
  %v3564 = vand.u32 %v3134, 4294901760
  %v3565 = vsub.f32 %v3134, %v3564
  %3566 = vmatprep.subr.mxu0 %v3565
  %v3567 = vand.u32 %v3133, 4294901760
  %v3568 = vsub.f32 %v3133, %v3567
  %3569 = vmatpush1.msra.mxu0 %v3568
  %v3570 = vand.u32 %v3132, 4294901760
  %v3571 = vsub.f32 %v3132, %v3570
  %3572 = vmatprep.subr.mxu0 %v3571
  %v3573 = vand.u32 %v3131, 4294901760
  %v3574 = vsub.f32 %v3131, %v3573
  %3575 = vmatpush1.msra.mxu0 %v3574
  %v3576 = vand.u32 %v3130, 4294901760
  %v3577 = vsub.f32 %v3130, %v3576
  %3578 = vmatprep.subr.mxu0 %v3577
  %v3579 = vand.u32 %v3129, 4294901760
  %v3580 = vsub.f32 %v3129, %v3579
  %3581 = vmatpush1.msra.mxu0 %v3580
  %v3582 = vand.u32 %v3128, 4294901760
  %v3583 = vsub.f32 %v3128, %v3582
  %3584 = vmatprep.subr.mxu0 %v3583
  %v3585 = vand.u32 %v3127, 4294901760
  %v3586 = vsub.f32 %v3127, %v3585
  %3587 = vmatpush1.msra.mxu0 %v3586
  %v3588 = vand.u32 %v3126, 4294901760
  %v3589 = vsub.f32 %v3126, %v3588
  %3590 = vmatprep.subr.mxu0 %v3589
  %v3591 = vand.u32 %v3125, 4294901760
  %v3592 = vsub.f32 %v3125, %v3591
  %3593 = vmatpush1.msra.mxu0 %v3592
  %3594 = vmatprep.subr.mxu0 0.0
  %3595 = vmatpush2.msra.mxu0 0.0
  %3596 = vmatprep.subr.mxu0 0.0
  %3597 = vmatpush2.msra.mxu0 0.0
  %3598 = vmatprep.subr.mxu0 0.0
  %3599 = vmatpush2.msra.mxu0 0.0
  %3600 = vmatprep.subr.mxu0 0.0
  %3601 = vmatpush2.msra.mxu0 0.0
  %3602 = vmatprep.subr.mxu0 0.0
  %3603 = vmatpush2.msra.mxu0 0.0
  %3604 = vmatprep.subr.mxu0 0.0
  %3605 = vmatpush2.msra.mxu0 0.0
  %3606 = vmatprep.subr.mxu0 0.0
  %3607 = vmatpush2.msra.mxu0 0.0
  %3608 = vmatprep.subr.mxu0 0.0
  %3609 = vmatpush2.msra.mxu0 0.0
  %3610 = vmatprep.subr.mxu0 0.0
  %3611 = vmatpush2.msra.mxu0 0.0
  %3612 = vmatprep.subr.mxu0 0.0
  %3613 = vmatpush2.msra.mxu0 0.0
  %3614 = vmatprep.subr.mxu0 0.0
  %3615 = vmatpush2.msra.mxu0 0.0
  %3616 = vmatprep.subr.mxu0 0.0
  %3617 = vmatpush2.msra.mxu0 0.0
  %3618 = vmatprep.subr.mxu0 0.0
  %3619 = vmatpush2.msra.mxu0 0.0
  %3620 = vmatprep.subr.mxu0 0.0
  %3621 = vmatpush2.msra.mxu0 0.0
  %3622 = vmatprep.subr.mxu0 0.0
  %3623 = vmatpush2.msra.mxu0 0.0
  %3624 = vmatprep.subr.mxu0 0.0
  %3625 = vmatpush2.msra.mxu0 0.0
  %3626 = vmatprep.mubr.f32.mxu0 0.0
  %v3627 = vand.u32 %v3157, 4294901760
  %v3628 = vsub.f32 %v3157, %v3627
  %3629 = vmatmul.mubr.f32.gmra.mxu0 %v3628
  %v3630 = vpop.f32.mrf.mxu0
  %v3631 = vadd.f32 %v3494, %v3630
  %v3632 = vpop.f32.mrf.mxu0
  %v3633 = vadd.f32 %v3496, %v3632
  %3634 = vdwg.mxu0
  %v3635 = vand.u32 %v3156, 4294901760
  %3636 = vmatprep.subr.mxu0 %v3635
  %v3637 = vand.u32 %v3155, 4294901760
  %3638 = vmatpush1.msra.mxu0 %v3637
  %v3639 = vand.u32 %v3154, 4294901760
  %3640 = vmatprep.subr.mxu0 %v3639
  %v3641 = vand.u32 %v3153, 4294901760
  %3642 = vmatpush1.msra.mxu0 %v3641
  %v3643 = vand.u32 %v3152, 4294901760
  %3644 = vmatprep.subr.mxu0 %v3643
  %v3645 = vand.u32 %v3151, 4294901760
  %3646 = vmatpush1.msra.mxu0 %v3645
  %v3647 = vand.u32 %v3150, 4294901760
  %3648 = vmatprep.subr.mxu0 %v3647
  %v3649 = vand.u32 %v3149, 4294901760
  %3650 = vmatpush1.msra.mxu0 %v3649
  %v3651 = vand.u32 %v3148, 4294901760
  %3652 = vmatprep.subr.mxu0 %v3651
  %v3653 = vand.u32 %v3147, 4294901760
  %3654 = vmatpush1.msra.mxu0 %v3653
  %v3655 = vand.u32 %v3146, 4294901760
  %3656 = vmatprep.subr.mxu0 %v3655
  %v3657 = vand.u32 %v3145, 4294901760
  %3658 = vmatpush1.msra.mxu0 %v3657
  %v3659 = vand.u32 %v3144, 4294901760
  %3660 = vmatprep.subr.mxu0 %v3659
  %v3661 = vand.u32 %v3143, 4294901760
  %3662 = vmatpush1.msra.mxu0 %v3661
  %v3663 = vand.u32 %v3142, 4294901760
  %3664 = vmatprep.subr.mxu0 %v3663
  %v3665 = vand.u32 %v3141, 4294901760
  %3666 = vmatpush1.msra.mxu0 %v3665
  %v3667 = vand.u32 %v3140, 4294901760
  %3668 = vmatprep.subr.mxu0 %v3667
  %v3669 = vand.u32 %v3139, 4294901760
  %3670 = vmatpush1.msra.mxu0 %v3669
  %v3671 = vand.u32 %v3138, 4294901760
  %3672 = vmatprep.subr.mxu0 %v3671
  %v3673 = vand.u32 %v3137, 4294901760
  %3674 = vmatpush1.msra.mxu0 %v3673
  %v3675 = vand.u32 %v3136, 4294901760
  %3676 = vmatprep.subr.mxu0 %v3675
  %v3677 = vand.u32 %v3135, 4294901760
  %3678 = vmatpush1.msra.mxu0 %v3677
  %v3679 = vand.u32 %v3134, 4294901760
  %3680 = vmatprep.subr.mxu0 %v3679
  %v3681 = vand.u32 %v3133, 4294901760
  %3682 = vmatpush1.msra.mxu0 %v3681
  %v3683 = vand.u32 %v3132, 4294901760
  %3684 = vmatprep.subr.mxu0 %v3683
  %v3685 = vand.u32 %v3131, 4294901760
  %3686 = vmatpush1.msra.mxu0 %v3685
  %v3687 = vand.u32 %v3130, 4294901760
  %3688 = vmatprep.subr.mxu0 %v3687
  %v3689 = vand.u32 %v3129, 4294901760
  %3690 = vmatpush1.msra.mxu0 %v3689
  %v3691 = vand.u32 %v3128, 4294901760
  %3692 = vmatprep.subr.mxu0 %v3691
  %v3693 = vand.u32 %v3127, 4294901760
  %3694 = vmatpush1.msra.mxu0 %v3693
  %v3695 = vand.u32 %v3126, 4294901760
  %3696 = vmatprep.subr.mxu0 %v3695
  %v3697 = vand.u32 %v3125, 4294901760
  %3698 = vmatpush1.msra.mxu0 %v3697
  %3699 = vmatprep.subr.mxu0 0.0
  %3700 = vmatpush2.msra.mxu0 0.0
  %3701 = vmatprep.subr.mxu0 0.0
  %3702 = vmatpush2.msra.mxu0 0.0
  %3703 = vmatprep.subr.mxu0 0.0
  %3704 = vmatpush2.msra.mxu0 0.0
  %3705 = vmatprep.subr.mxu0 0.0
  %3706 = vmatpush2.msra.mxu0 0.0
  %3707 = vmatprep.subr.mxu0 0.0
  %3708 = vmatpush2.msra.mxu0 0.0
  %3709 = vmatprep.subr.mxu0 0.0
  %3710 = vmatpush2.msra.mxu0 0.0
  %3711 = vmatprep.subr.mxu0 0.0
  %3712 = vmatpush2.msra.mxu0 0.0
  %3713 = vmatprep.subr.mxu0 0.0
  %3714 = vmatpush2.msra.mxu0 0.0
  %3715 = vmatprep.subr.mxu0 0.0
  %3716 = vmatpush2.msra.mxu0 0.0
  %3717 = vmatprep.subr.mxu0 0.0
  %3718 = vmatpush2.msra.mxu0 0.0
  %3719 = vmatprep.subr.mxu0 0.0
  %3720 = vmatpush2.msra.mxu0 0.0
  %3721 = vmatprep.subr.mxu0 0.0
  %3722 = vmatpush2.msra.mxu0 0.0
  %3723 = vmatprep.subr.mxu0 0.0
  %3724 = vmatpush2.msra.mxu0 0.0
  %3725 = vmatprep.subr.mxu0 0.0
  %3726 = vmatpush2.msra.mxu0 0.0
  %3727 = vmatprep.subr.mxu0 0.0
  %3728 = vmatpush2.msra.mxu0 0.0
  %3729 = vmatprep.subr.mxu0 0.0
  %3730 = vmatpush2.msra.mxu0 0.0
  %3731 = vmatprep.mubr.f32.mxu0 0.0
  %v3732 = vand.u32 %v3157, 4294901760
  %v3733 = vsub.f32 %v3157, %v3732
  %v3734 = vand.u32 %v3733, 4294901760
  %3735 = vmatmul.mubr.f32.gmra.mxu0 %v3734
  %v3736 = vpop.f32.mrf.mxu0
  %v3737 = vadd.f32 %v3631, %v3736
  %v3738 = vpop.f32.mrf.mxu0
  %v3739 = vadd.f32 %v3633, %v3738
  %3740 = vdwg.mxu0
  %v3741 = vand.u32 %v3156, 4294901760
  %v3742 = vsub.f32 %v3156, %v3741
  %v3743 = vand.u32 %v3742, 4294901760
  %3744 = vmatprep.subr.mxu0 %v3743
  %v3745 = vand.u32 %v3155, 4294901760
  %v3746 = vsub.f32 %v3155, %v3745
  %v3747 = vand.u32 %v3746, 4294901760
  %3748 = vmatpush1.msra.mxu0 %v3747
  %v3749 = vand.u32 %v3154, 4294901760
  %v3750 = vsub.f32 %v3154, %v3749
  %v3751 = vand.u32 %v3750, 4294901760
  %3752 = vmatprep.subr.mxu0 %v3751
  %v3753 = vand.u32 %v3153, 4294901760
  %v3754 = vsub.f32 %v3153, %v3753
  %v3755 = vand.u32 %v3754, 4294901760
  %3756 = vmatpush1.msra.mxu0 %v3755
  %v3757 = vand.u32 %v3152, 4294901760
  %v3758 = vsub.f32 %v3152, %v3757
  %v3759 = vand.u32 %v3758, 4294901760
  %3760 = vmatprep.subr.mxu0 %v3759
  %v3761 = vand.u32 %v3151, 4294901760
  %v3762 = vsub.f32 %v3151, %v3761
  %v3763 = vand.u32 %v3762, 4294901760
  %3764 = vmatpush1.msra.mxu0 %v3763
  %v3765 = vand.u32 %v3150, 4294901760
  %v3766 = vsub.f32 %v3150, %v3765
  %v3767 = vand.u32 %v3766, 4294901760
  %3768 = vmatprep.subr.mxu0 %v3767
  %v3769 = vand.u32 %v3149, 4294901760
  %v3770 = vsub.f32 %v3149, %v3769
  %v3771 = vand.u32 %v3770, 4294901760
  %3772 = vmatpush1.msra.mxu0 %v3771
  %v3773 = vand.u32 %v3148, 4294901760
  %v3774 = vsub.f32 %v3148, %v3773
  %v3775 = vand.u32 %v3774, 4294901760
  %3776 = vmatprep.subr.mxu0 %v3775
  %v3777 = vand.u32 %v3147, 4294901760
  %v3778 = vsub.f32 %v3147, %v3777
  %v3779 = vand.u32 %v3778, 4294901760
  %3780 = vmatpush1.msra.mxu0 %v3779
  %v3781 = vand.u32 %v3146, 4294901760
  %v3782 = vsub.f32 %v3146, %v3781
  %v3783 = vand.u32 %v3782, 4294901760
  %3784 = vmatprep.subr.mxu0 %v3783
  %v3785 = vand.u32 %v3145, 4294901760
  %v3786 = vsub.f32 %v3145, %v3785
  %v3787 = vand.u32 %v3786, 4294901760
  %3788 = vmatpush1.msra.mxu0 %v3787
  %v3789 = vand.u32 %v3144, 4294901760
  %v3790 = vsub.f32 %v3144, %v3789
  %v3791 = vand.u32 %v3790, 4294901760
  %3792 = vmatprep.subr.mxu0 %v3791
  %v3793 = vand.u32 %v3143, 4294901760
  %v3794 = vsub.f32 %v3143, %v3793
  %v3795 = vand.u32 %v3794, 4294901760
  %3796 = vmatpush1.msra.mxu0 %v3795
  %v3797 = vand.u32 %v3142, 4294901760
  %v3798 = vsub.f32 %v3142, %v3797
  %v3799 = vand.u32 %v3798, 4294901760
  %3800 = vmatprep.subr.mxu0 %v3799
  %v3801 = vand.u32 %v3141, 4294901760
  %v3802 = vsub.f32 %v3141, %v3801
  %v3803 = vand.u32 %v3802, 4294901760
  %3804 = vmatpush1.msra.mxu0 %v3803
  %v3805 = vand.u32 %v3140, 4294901760
  %v3806 = vsub.f32 %v3140, %v3805
  %v3807 = vand.u32 %v3806, 4294901760
  %3808 = vmatprep.subr.mxu0 %v3807
  %v3809 = vand.u32 %v3139, 4294901760
  %v3810 = vsub.f32 %v3139, %v3809
  %v3811 = vand.u32 %v3810, 4294901760
  %3812 = vmatpush1.msra.mxu0 %v3811
  %v3813 = vand.u32 %v3138, 4294901760
  %v3814 = vsub.f32 %v3138, %v3813
  %v3815 = vand.u32 %v3814, 4294901760
  %3816 = vmatprep.subr.mxu0 %v3815
  %v3817 = vand.u32 %v3137, 4294901760
  %v3818 = vsub.f32 %v3137, %v3817
  %v3819 = vand.u32 %v3818, 4294901760
  %3820 = vmatpush1.msra.mxu0 %v3819
  %v3821 = vand.u32 %v3136, 4294901760
  %v3822 = vsub.f32 %v3136, %v3821
  %v3823 = vand.u32 %v3822, 4294901760
  %3824 = vmatprep.subr.mxu0 %v3823
  %v3825 = vand.u32 %v3135, 4294901760
  %v3826 = vsub.f32 %v3135, %v3825
  %v3827 = vand.u32 %v3826, 4294901760
  %3828 = vmatpush1.msra.mxu0 %v3827
  %v3829 = vand.u32 %v3134, 4294901760
  %v3830 = vsub.f32 %v3134, %v3829
  %v3831 = vand.u32 %v3830, 4294901760
  %3832 = vmatprep.subr.mxu0 %v3831
  %v3833 = vand.u32 %v3133, 4294901760
  %v3834 = vsub.f32 %v3133, %v3833
  %v3835 = vand.u32 %v3834, 4294901760
  %3836 = vmatpush1.msra.mxu0 %v3835
  %v3837 = vand.u32 %v3132, 4294901760
  %v3838 = vsub.f32 %v3132, %v3837
  %v3839 = vand.u32 %v3838, 4294901760
  %3840 = vmatprep.subr.mxu0 %v3839
  %v3841 = vand.u32 %v3131, 4294901760
  %v3842 = vsub.f32 %v3131, %v3841
  %v3843 = vand.u32 %v3842, 4294901760
  %3844 = vmatpush1.msra.mxu0 %v3843
  %v3845 = vand.u32 %v3130, 4294901760
  %v3846 = vsub.f32 %v3130, %v3845
  %v3847 = vand.u32 %v3846, 4294901760
  %3848 = vmatprep.subr.mxu0 %v3847
  %v3849 = vand.u32 %v3129, 4294901760
  %v3850 = vsub.f32 %v3129, %v3849
  %v3851 = vand.u32 %v3850, 4294901760
  %3852 = vmatpush1.msra.mxu0 %v3851
  %v3853 = vand.u32 %v3128, 4294901760
  %v3854 = vsub.f32 %v3128, %v3853
  %v3855 = vand.u32 %v3854, 4294901760
  %3856 = vmatprep.subr.mxu0 %v3855
  %v3857 = vand.u32 %v3127, 4294901760
  %v3858 = vsub.f32 %v3127, %v3857
  %v3859 = vand.u32 %v3858, 4294901760
  %3860 = vmatpush1.msra.mxu0 %v3859
  %v3861 = vand.u32 %v3126, 4294901760
  %v3862 = vsub.f32 %v3126, %v3861
  %v3863 = vand.u32 %v3862, 4294901760
  %3864 = vmatprep.subr.mxu0 %v3863
  %v3865 = vand.u32 %v3125, 4294901760
  %v3866 = vsub.f32 %v3125, %v3865
  %v3867 = vand.u32 %v3866, 4294901760
  %3868 = vmatpush1.msra.mxu0 %v3867
  %3869 = vmatprep.subr.mxu0 0.0
  %3870 = vmatpush2.msra.mxu0 0.0
  %3871 = vmatprep.subr.mxu0 0.0
  %3872 = vmatpush2.msra.mxu0 0.0
  %3873 = vmatprep.subr.mxu0 0.0
  %3874 = vmatpush2.msra.mxu0 0.0
  %3875 = vmatprep.subr.mxu0 0.0
  %3876 = vmatpush2.msra.mxu0 0.0
  %3877 = vmatprep.subr.mxu0 0.0
  %3878 = vmatpush2.msra.mxu0 0.0
  %3879 = vmatprep.subr.mxu0 0.0
  %3880 = vmatpush2.msra.mxu0 0.0
  %3881 = vmatprep.subr.mxu0 0.0
  %3882 = vmatpush2.msra.mxu0 0.0
  %3883 = vmatprep.subr.mxu0 0.0
  %3884 = vmatpush2.msra.mxu0 0.0
  %3885 = vmatprep.subr.mxu0 0.0
  %3886 = vmatpush2.msra.mxu0 0.0
  %3887 = vmatprep.subr.mxu0 0.0
  %3888 = vmatpush2.msra.mxu0 0.0
  %3889 = vmatprep.subr.mxu0 0.0
  %3890 = vmatpush2.msra.mxu0 0.0
  %3891 = vmatprep.subr.mxu0 0.0
  %3892 = vmatpush2.msra.mxu0 0.0
  %3893 = vmatprep.subr.mxu0 0.0
  %3894 = vmatpush2.msra.mxu0 0.0
  %3895 = vmatprep.subr.mxu0 0.0
  %3896 = vmatpush2.msra.mxu0 0.0
  %3897 = vmatprep.subr.mxu0 0.0
  %3898 = vmatpush2.msra.mxu0 0.0
  %3899 = vmatprep.subr.mxu0 0.0
  %3900 = vmatpush2.msra.mxu0 0.0
  %3901 = vmatprep.mubr.f32.mxu0 0.0
  %v3902 = vand.u32 %v3157, 4294901760
  %3903 = vmatmul.mubr.f32.gmra.mxu0 %v3902
  %v3904 = vpop.f32.mrf.mxu0
  %v3905 = vadd.f32 %v3737, %v3904
  %v3906 = vpop.f32.mrf.mxu0
  %v3907 = vadd.f32 %v3739, %v3906
  %3908 = vdwg.mxu0
  %v3909 = vand.u32 %v3156, 4294901760
  %3910 = vmatprep.subr.mxu0 %v3909
  %v3911 = vand.u32 %v3155, 4294901760
  %3912 = vmatpush1.msra.mxu0 %v3911
  %v3913 = vand.u32 %v3154, 4294901760
  %3914 = vmatprep.subr.mxu0 %v3913
  %v3915 = vand.u32 %v3153, 4294901760
  %3916 = vmatpush1.msra.mxu0 %v3915
  %v3917 = vand.u32 %v3152, 4294901760
  %3918 = vmatprep.subr.mxu0 %v3917
  %v3919 = vand.u32 %v3151, 4294901760
  %3920 = vmatpush1.msra.mxu0 %v3919
  %v3921 = vand.u32 %v3150, 4294901760
  %3922 = vmatprep.subr.mxu0 %v3921
  %v3923 = vand.u32 %v3149, 4294901760
  %3924 = vmatpush1.msra.mxu0 %v3923
  %v3925 = vand.u32 %v3148, 4294901760
  %3926 = vmatprep.subr.mxu0 %v3925
  %v3927 = vand.u32 %v3147, 4294901760
  %3928 = vmatpush1.msra.mxu0 %v3927
  %v3929 = vand.u32 %v3146, 4294901760
  %3930 = vmatprep.subr.mxu0 %v3929
  %v3931 = vand.u32 %v3145, 4294901760
  %3932 = vmatpush1.msra.mxu0 %v3931
  %v3933 = vand.u32 %v3144, 4294901760
  %3934 = vmatprep.subr.mxu0 %v3933
  %v3935 = vand.u32 %v3143, 4294901760
  %3936 = vmatpush1.msra.mxu0 %v3935
  %v3937 = vand.u32 %v3142, 4294901760
  %3938 = vmatprep.subr.mxu0 %v3937
  %v3939 = vand.u32 %v3141, 4294901760
  %3940 = vmatpush1.msra.mxu0 %v3939
  %v3941 = vand.u32 %v3140, 4294901760
  %3942 = vmatprep.subr.mxu0 %v3941
  %v3943 = vand.u32 %v3139, 4294901760
  %3944 = vmatpush1.msra.mxu0 %v3943
  %v3945 = vand.u32 %v3138, 4294901760
  %3946 = vmatprep.subr.mxu0 %v3945
  %v3947 = vand.u32 %v3137, 4294901760
  %3948 = vmatpush1.msra.mxu0 %v3947
  %v3949 = vand.u32 %v3136, 4294901760
  %3950 = vmatprep.subr.mxu0 %v3949
  %v3951 = vand.u32 %v3135, 4294901760
  %3952 = vmatpush1.msra.mxu0 %v3951
  %v3953 = vand.u32 %v3134, 4294901760
  %3954 = vmatprep.subr.mxu0 %v3953
  %v3955 = vand.u32 %v3133, 4294901760
  %3956 = vmatpush1.msra.mxu0 %v3955
  %v3957 = vand.u32 %v3132, 4294901760
  %3958 = vmatprep.subr.mxu0 %v3957
  %v3959 = vand.u32 %v3131, 4294901760
  %3960 = vmatpush1.msra.mxu0 %v3959
  %v3961 = vand.u32 %v3130, 4294901760
  %3962 = vmatprep.subr.mxu0 %v3961
  %v3963 = vand.u32 %v3129, 4294901760
  %3964 = vmatpush1.msra.mxu0 %v3963
  %v3965 = vand.u32 %v3128, 4294901760
  %3966 = vmatprep.subr.mxu0 %v3965
  %v3967 = vand.u32 %v3127, 4294901760
  %3968 = vmatpush1.msra.mxu0 %v3967
  %v3969 = vand.u32 %v3126, 4294901760
  %3970 = vmatprep.subr.mxu0 %v3969
  %v3971 = vand.u32 %v3125, 4294901760
  %3972 = vmatpush1.msra.mxu0 %v3971
  %3973 = vmatprep.subr.mxu0 0.0
  %3974 = vmatpush2.msra.mxu0 0.0
  %3975 = vmatprep.subr.mxu0 0.0
  %3976 = vmatpush2.msra.mxu0 0.0
  %3977 = vmatprep.subr.mxu0 0.0
  %3978 = vmatpush2.msra.mxu0 0.0
  %3979 = vmatprep.subr.mxu0 0.0
  %3980 = vmatpush2.msra.mxu0 0.0
  %3981 = vmatprep.subr.mxu0 0.0
  %3982 = vmatpush2.msra.mxu0 0.0
  %3983 = vmatprep.subr.mxu0 0.0
  %3984 = vmatpush2.msra.mxu0 0.0
  %3985 = vmatprep.subr.mxu0 0.0
  %3986 = vmatpush2.msra.mxu0 0.0
  %3987 = vmatprep.subr.mxu0 0.0
  %3988 = vmatpush2.msra.mxu0 0.0
  %3989 = vmatprep.subr.mxu0 0.0
  %3990 = vmatpush2.msra.mxu0 0.0
  %3991 = vmatprep.subr.mxu0 0.0
  %3992 = vmatpush2.msra.mxu0 0.0
  %3993 = vmatprep.subr.mxu0 0.0
  %3994 = vmatpush2.msra.mxu0 0.0
  %3995 = vmatprep.subr.mxu0 0.0
  %3996 = vmatpush2.msra.mxu0 0.0
  %3997 = vmatprep.subr.mxu0 0.0
  %3998 = vmatpush2.msra.mxu0 0.0
  %3999 = vmatprep.subr.mxu0 0.0
  %4000 = vmatpush2.msra.mxu0 0.0
  %4001 = vmatprep.subr.mxu0 0.0
  %4002 = vmatpush2.msra.mxu0 0.0
  %4003 = vmatprep.subr.mxu0 0.0
  %4004 = vmatpush2.msra.mxu0 0.0
  %4005 = vmatprep.mubr.f32.mxu0 0.0
  %v4006 = vand.u32 %v3157, 4294901760
  %4007 = vmatmul.mubr.f32.gmra.mxu0 %v4006
  %v4008 = vpop.f32.mrf.mxu0
  %v4009 = vadd.f32 %v3905, %v4008
  %v4010 = vpop.f32.mrf.mxu0
  %v4011 = vadd.f32 %v3907, %v4010
  %4012 = vdwg.mxu0
  %v4013 = vld [vmem:[#allocation2] sm:$0x1]
  %4015 = vset.pattern.permute.xlu0 0
  %4016 = vperm.xlu0 %4015, %v4013
  %v4017 = vpop.permute.xlu0 %4016
  %v4019 = vlaneseq
  %v4020 = vshrl.u32 %v4019, 7
  %v4021 = vsub.s32 0, %v4020
  %v4022 = vrot.slane %v4017, %v4021
  %v4023 = vadd.f32 %v4009, %v4022
  %v4024 = vadd.f32 %v4011, %v4022
  %v4025 = vxor.u32 %v4023, 2147483648
  %v4026 = vxor.u32 %v4024, 2147483648
  %v4027 = vmul.f32 %v4025, 1.442695
  %v4028 = vpow.pop %v4027
  %v4029 = vmul.f32 %v4026, 1.442695
  %v4030 = vpow.pop %v4029
  %v4031 = vadd.f32 %v4028, 1.0
  %v4032 = vadd.f32 %v4030, 1.0
  %v4033 = vrcp.pop %v4031
  %v4034 = vmul.f32 1.0, %v4033
  %v4035 = vrcp.pop %v4032
  %v4036 = vmul.f32 1.0, %v4035
  %v4039 = vcombine.low %v4034, %v4036
  %v4041 = vunpack.c.l.s4 1966171168
  %v4042 = vunpack.c.0.s8 %v4041
  %v4043 = vlaneseq
  %v4044 = vshrl.u32 %v4043, 7
  %v4045 = vsub.s32 %v4042, %v4044
  %v4046 = vrot.slane %v4039, %v4045
  %v4048 = vunpack.c.l.s4 1966171168
  %v4049 = vunpack.c.0.s8 %v4048
  %v4050 = vlaneseq
  %v4051 = vshrl.u32 %v4050, 7
  %v4052 = vsub.s32 %v4049, %v4051
  %v4053 = vrot.slane %v4046, %v4052
  %v4055 = vlaneseq
  %vm4056 = vcmp.ge.s32.totalorder %v4055, 0
  %vm4057 = vcmp.lt.s32.totalorder %v4055, 256
  %vm4058 = vmand %vm4056, %vm4057
  %4059 = vst.msk [vmem:[%s7] sm:$0x3] %vm4058, %v4053
  // Predicated region
  $region30: #{net_forward.1} parent=0 // pred_check
    _
  $region31: #{net_forward.1} parent=0 // pred_check_branch
    %4061 = sbr.rel (0) target = $region33
  $region32: #{net_forward.1} parent=0 // pred_region
    _
  $region33: #{net_forward.1} parent=0 // pred_fallthru
    _
  // Predicated region
  $region34: #{net_forward.1} parent=0 // pred_check
    _
  $region35: #{net_forward.1} parent=0 // pred_check_branch
    %4063 = sbr.rel (0) target = $region37
  $region36: #{net_forward.1} parent=0 // pred_region
    _
  $region37: #{net_forward.1} parent=0 // pred_fallthru
    _

</llo_original>
